<compile_context>
chip_gen: v7x
topology: tpu7x:2x2x1
jax: 0.10.0
libtpu: 0.0.40
codegen_flags: <defaults>
</compile_context>

<pallas_src>
import math

import jax
import jax.numpy as jnp
from jax.experimental import pallas as pl
from jax.experimental.pallas import tpu as pltpu

# ----------------------------- small synthetic BERT config -------------------
VOCAB = 128
HIDDEN = 32
N_LAYERS = 2
N_HEADS = 4
HEAD_DIM = HIDDEN // N_HEADS
INTERMEDIATE = 64
MAX_POS = 64
TYPE_VOCAB = 2
N_CLASSES = 5
LN_EPS = 1e-12
LANE = 128          # lane-dense padding for the classifier output


# ----------------------------- fused Pallas kernel ---------------------------
def _bert_kernel(emb_ref, mask_ref, eg_ref, eb_ref,
                 wq_ref, bq_ref, wk_ref, bk_ref, wv_ref, bv_ref,
                 wo_ref, bo_ref, g1_ref, b1_ref,
                 wi_ref, bi_ref, wo2_ref, bo2_ref, g2_ref, b2_ref,
                 pw_ref, pb_ref, cw_ref, cb_ref, out_ref):
    """One grid step = one batch element through the whole network."""
    f32, bf16 = jnp.float32, jnp.bfloat16

    def mm(x, w):  # bf16 MXU matmul, f32 accumulation
        return jnp.dot(x.astype(bf16), w, preferred_element_type=f32)

    def layer_norm(x, gamma, beta):  # statistics in f32
        mean = jnp.mean(x, axis=-1, keepdims=True)
        var = jnp.mean(jnp.square(x - mean), axis=-1, keepdims=True)
        return (x - mean) * jax.lax.rsqrt(var + LN_EPS) * gamma + beta

    def erf(x):
        # Abramowitz & Stegun 7.1.26 (|err| < 1.5e-7): only exp/mul/add/where,
        # guaranteed to lower on all TPU generations.
        a1, a2, a3, a4, a5 = (0.254829592, -0.284496736, 1.421413741,
                              -1.453152027, 1.061405429)
        p = 0.3275911
        ax = jnp.abs(x)
        t = 1.0 / (1.0 + p * ax)
        poly = ((((a5 * t + a4) * t + a3) * t + a2) * t + a1) * t
        y = 1.0 - poly * jnp.exp(-ax * ax)
        return jnp.where(x >= 0.0, y, -y)

    def gelu(x):  # exact (erf) GELU -> matches torch.nn.functional.gelu default
        return 0.5 * x * (1.0 + erf(x * (1.0 / math.sqrt(2.0))))

    scale = 1.0 / math.sqrt(HEAD_DIM)
    mask = mask_ref[0]                                                  # [1, S]
    h = layer_norm(emb_ref[0].astype(f32), eg_ref[...], eb_ref[...])    # [S, H]

    for l in range(N_LAYERS):
        # ---- multi-head self-attention; output projection accumulated per head
        attn = jnp.zeros(h.shape, f32)
        for n in range(N_HEADS):
            q = (mm(h, wq_ref[l, n]) + bq_ref[l, n]) * scale            # [S, HD]
            k = mm(h, wk_ref[l, n]) + bk_ref[l, n]
            v = mm(h, wv_ref[l, n]) + bv_ref[l, n]
            s = jnp.einsum("qd,kd->qk", q.astype(bf16), k.astype(bf16),
                           preferred_element_type=f32)                  # [S, S]
            s = s + mask                                                # key mask
            m = jnp.max(s, axis=-1, keepdims=True)                      # stable softmax
            p = jnp.exp(s - m)
            p = p * pl.reciprocal(jnp.sum(p, axis=-1, keepdims=True), approx=True)
            ctx = mm(p, v.astype(bf16))                                 # [S, HD]
            attn = attn + mm(ctx, wo_ref[l, n])                         # [S, H]
        h = layer_norm(attn + bo_ref[l] + h, g1_ref[l], b1_ref[l])

        # ---- feed-forward
        f = gelu(mm(h, wi_ref[l]) + bi_ref[l])                          # [S, I]
        f = mm(f, wo2_ref[l]) + bo2_ref[l]                              # [S, H]
        h = layer_norm(f + h, g2_ref[l], b2_ref[l])

    # ---- pooler (tanh on [CLS]) + classifier; lane-padded (128) output store
    cls = h[0:1, :]                                                     # [1, H]
    pooled = jnp.tanh(mm(cls, pw_ref[...]) + pb_ref[...])               # [1, H]
    logits = mm(pooled, cw_ref[...]) + cb_ref[...]                      # [1, LANE]
    out_ref[0] = logits.astype(out_ref.dtype)


# ----------------------------- parameter init --------------------------------
def init_params(key):
    std = 0.02
    ks = iter(jax.random.split(key, 16))

    def nrm(shape):
        return std * jax.random.normal(next(ks), shape, jnp.float32)

    L = N_LAYERS
    return dict(
        word_emb=nrm((VOCAB, HIDDEN)),
        pos_emb=nrm((MAX_POS, HIDDEN)),
        type_emb=nrm((TYPE_VOCAB, HIDDEN)),
        emb_ln_g=jnp.ones((HIDDEN,), jnp.float32),
        emb_ln_b=jnp.zeros((HIDDEN,), jnp.float32),
        wq=nrm((L, HIDDEN, HIDDEN)), bq=jnp.zeros((L, HIDDEN), jnp.float32),
        wk=nrm((L, HIDDEN, HIDDEN)), bk=jnp.zeros((L, HIDDEN), jnp.float32),
        wv=nrm((L, HIDDEN, HIDDEN)), bv=jnp.zeros((L, HIDDEN), jnp.float32),
        wo=nrm((L, HIDDEN, HIDDEN)), bo=jnp.zeros((L, HIDDEN), jnp.float32),
        ln1_g=jnp.ones((L, HIDDEN), jnp.float32),
        ln1_b=jnp.zeros((L, HIDDEN), jnp.float32),
        wi=nrm((L, HIDDEN, INTERMEDIATE)),
        bi=jnp.zeros((L, INTERMEDIATE), jnp.float32),
        wo2=nrm((L, INTERMEDIATE, HIDDEN)),
        bo2=jnp.zeros((L, HIDDEN), jnp.float32),
        ln2_g=jnp.ones((L, HIDDEN), jnp.float32),
        ln2_b=jnp.zeros((L, HIDDEN), jnp.float32),
        pooler_w=nrm((HIDDEN, HIDDEN)),
        pooler_b=jnp.zeros((HIDDEN,), jnp.float32),
        cls_w=nrm((HIDDEN, N_CLASSES)),
        cls_b=jnp.zeros((N_CLASSES,), jnp.float32),
    )


# ----------------------------- forward pass ----------------------------------
def custom_bert_forward(params, input_ids, attention_mask):
    B, S = input_ids.shape
    f32, bf16 = jnp.float32, jnp.bfloat16
    L, H, NH, HD, I = N_LAYERS, HIDDEN, N_HEADS, HEAD_DIM, INTERMEDIATE

    # ---- embeddings: gathers stay in plain JAX (glue); the rest is in-kernel
    pos_ids = jnp.arange(S, dtype=jnp.int32)
    tok_type = jnp.zeros((B, S), dtype=jnp.int32)
    emb = (params["word_emb"][input_ids]
           + params["pos_emb"][pos_ids][None, :, :]
           + params["type_emb"][tok_type])                              # [B,S,H]

    # additive attention-mask bias, one row per batch element: [B, 1, S]
    mask_bias = ((1.0 - attention_mask.astype(f32)) * -10000.0)[:, None, :]

    # ---- per-head weight layout so the kernel only indexes leading dims ----
    def split_cols(w):  # [L,H,H] -> [L,NH,H,HD] (split output columns by head)
        return w.reshape(L, H, NH, HD).transpose(0, 2, 1, 3).astype(bf16)

    wq, wk, wv = (split_cols(params["wq"]), split_cols(params["wk"]),
                  split_cols(params["wv"]))
    bq = params["bq"].reshape(L, NH, 1, HD)
    bk = params["bk"].reshape(L, NH, 1, HD)
    bv = params["bv"].reshape(L, NH, 1, HD)
    wo = params["wo"].reshape(L, NH, HD, H).astype(bf16)   # split rows by head
    bo = params["bo"].reshape(L, 1, H)
    g1, b1 = params["ln1_g"].reshape(L, 1, H), params["ln1_b"].reshape(L, 1, H)
    wi, bi = params["wi"].astype(bf16), params["bi"].reshape(L, 1, I)
    wo2, bo2 = params["wo2"].astype(bf16), params["bo2"].reshape(L, 1, H)
    g2, b2 = params["ln2_g"].reshape(L, 1, H), params["ln2_b"].reshape(L, 1, H)
    eg, eb = params["emb_ln_g"].reshape(1, H), params["emb_ln_b"].reshape(1, H)
    pw, pb = params["pooler_w"].astype(bf16), params["pooler_b"].reshape(1, H)
    cw = jnp.pad(params["cls_w"], ((0, 0), (0, LANE - N_CLASSES))).astype(bf16)
    cb = jnp.pad(params["cls_b"], (0, LANE - N_CLASSES)).reshape(1, LANE)

    def fixed(shape):   # whole-array block, resident across the batch grid
        return pl.BlockSpec(shape, lambda b: (0,) * len(shape))

    logits_pad = pl.pallas_call(
        _bert_kernel,
        out_shape=jax.ShapeDtypeStruct((B, 1, LANE), f32),
        grid=(B,),
        in_specs=[
            pl.BlockSpec((1, S, H), lambda b: (b, 0, 0)),      # embeddings
            pl.BlockSpec((1, 1, S), lambda b: (b, 0, 0)),      # mask bias
            fixed((1, H)), fixed((1, H)),                      # emb LN g,b
            fixed((L, NH, H, HD)), fixed((L, NH, 1, HD)),      # Wq, bq
            fixed((L, NH, H, HD)), fixed((L, NH, 1, HD)),      # Wk, bk
            fixed((L, NH, H, HD)), fixed((L, NH, 1, HD)),      # Wv, bv
            fixed((L, NH, HD, H)), fixed((L, 1, H)),           # Wo, bo
            fixed((L, 1, H)), fixed((L, 1, H)),                # LN1 g,b
            fixed((L, H, I)), fixed((L, 1, I)),                # Wi, bi
            fixed((L, I, H)), fixed((L, 1, H)),                # Wo2, bo2
            fixed((L, 1, H)), fixed((L, 1, H)),                # LN2 g,b
            fixed((H, H)), fixed((1, H)),                      # pooler
            fixed((H, LANE)), fixed((1, LANE)),                # classifier (padded)
        ],
        out_specs=pl.BlockSpec((1, 1, LANE), lambda b: (b, 0, 0)),
        compiler_params=pltpu.CompilerParams(
            dimension_semantics=("parallel",)),                # v7x: 2 TensorCores
    )(emb, mask_bias, eg, eb, wq, bq, wk, bk, wv, bv, wo, bo,
      g1, b1, wi, bi, wo2, bo2, g2, b2, pw, pb, cw, cb)

    return logits_pad[:, 0, :N_CLASSES]                        # [B, N_CLASSES]


# ----------------------------- driver -----------------------------------------
if __name__ == "__main__":
    key = jax.random.PRNGKey(0)
    k_param, k_ids = jax.random.split(key)

    params = init_params(k_param)

    B, S = 2, 8
    input_ids = jax.random.randint(k_ids, (B, S), 0, VOCAB, dtype=jnp.int32)
    attention_mask = jnp.array(
        [[1, 1, 1, 1, 1, 1, 1, 1],
         [1, 1, 1, 1, 1, 1, 0, 0]], dtype=jnp.int32)

    logits = jax.jit(custom_bert_forward)(params, input_ids, attention_mask)
    jax.block_until_ready(logits)

    assert logits.shape == (B, N_CLASSES)
    assert bool(jnp.all(jnp.isfinite(logits)))
    print("KERNEL_OK")
</pallas_src>

<mosaic_0001>
module attributes {stable_mosaic.version = 11 : i64} {
  func.func @_bert_kernel(%arg0: i32, %arg1: memref<1x8x32xf32, #tpu.memory_space<vmem>>, %arg2: memref<1x1x8xf32, #tpu.memory_space<vmem>>, %arg3: memref<1x32xf32, #tpu.memory_space<vmem>>, %arg4: memref<1x32xf32, #tpu.memory_space<vmem>>, %arg5: memref<2x4x32x8xbf16, #tpu.memory_space<vmem>>, %arg6: memref<2x4x1x8xf32, #tpu.memory_space<vmem>>, %arg7: memref<2x4x32x8xbf16, #tpu.memory_space<vmem>>, %arg8: memref<2x4x1x8xf32, #tpu.memory_space<vmem>>, %arg9: memref<2x4x32x8xbf16, #tpu.memory_space<vmem>>, %arg10: memref<2x4x1x8xf32, #tpu.memory_space<vmem>>, %arg11: memref<2x4x8x32xbf16, #tpu.memory_space<vmem>>, %arg12: memref<2x1x32xf32, #tpu.memory_space<vmem>>, %arg13: memref<2x1x32xf32, #tpu.memory_space<vmem>>, %arg14: memref<2x1x32xf32, #tpu.memory_space<vmem>>, %arg15: memref<2x32x64xbf16, #tpu.memory_space<vmem>>, %arg16: memref<2x1x64xf32, #tpu.memory_space<vmem>>, %arg17: memref<2x64x32xbf16, #tpu.memory_space<vmem>>, %arg18: memref<2x1x32xf32, #tpu.memory_space<vmem>>, %arg19: memref<2x1x32xf32, #tpu.memory_space<vmem>>, %arg20: memref<2x1x32xf32, #tpu.memory_space<vmem>>, %arg21: memref<32x32xbf16, #tpu.memory_space<vmem>>, %arg22: memref<1x32xf32, #tpu.memory_space<vmem>>, %arg23: memref<32x128xbf16, #tpu.memory_space<vmem>>, %arg24: memref<1x128xf32, #tpu.memory_space<vmem>>, %arg25: memref<1x1x128xf32, #tpu.memory_space<vmem>>) attributes {dimension_semantics = [#tpu.dimension_semantics<parallel>], iteration_bounds = array<i64: 2>, scalar_prefetch = 0 : i64, scratch_operands = 0 : i64, tpu.core_type = #tpu.core_type<tc>, window_params = [{transform_indices = @transform_0, window_bounds = array<i64: 1, 8, 32>}, {transform_indices = @transform_1, window_bounds = array<i64: 1, 1, 8>}, {pipeline_mode = #tpu.pipeline_mode<synchronous>, transform_indices = @transform_2, window_bounds = array<i64: 1, 32>}, {pipeline_mode = #tpu.pipeline_mode<synchronous>, transform_indices = @transform_3, window_bounds = array<i64: 1, 32>}, {pipeline_mode = #tpu.pipeline_mode<synchronous>, transform_indices = @transform_4, window_bounds = array<i64: 2, 4, 32, 8>}, {pipeline_mode = #tpu.pipeline_mode<synchronous>, transform_indices = @transform_5, window_bounds = array<i64: 2, 4, 1, 8>}, {pipeline_mode = #tpu.pipeline_mode<synchronous>, transform_indices = @transform_6, window_bounds = array<i64: 2, 4, 32, 8>}, {pipeline_mode = #tpu.pipeline_mode<synchronous>, transform_indices = @transform_7, window_bounds = array<i64: 2, 4, 1, 8>}, {pipeline_mode = #tpu.pipeline_mode<synchronous>, transform_indices = @transform_8, window_bounds = array<i64: 2, 4, 32, 8>}, {pipeline_mode = #tpu.pipeline_mode<synchronous>, transform_indices = @transform_9, window_bounds = array<i64: 2, 4, 1, 8>}, {pipeline_mode = #tpu.pipeline_mode<synchronous>, transform_indices = @transform_10, window_bounds = array<i64: 2, 4, 8, 32>}, {pipeline_mode = #tpu.pipeline_mode<synchronous>, transform_indices = @transform_11, window_bounds = array<i64: 2, 1, 32>}, {pipeline_mode = #tpu.pipeline_mode<synchronous>, transform_indices = @transform_12, window_bounds = array<i64: 2, 1, 32>}, {pipeline_mode = #tpu.pipeline_mode<synchronous>, transform_indices = @transform_13, window_bounds = array<i64: 2, 1, 32>}, {pipeline_mode = #tpu.pipeline_mode<synchronous>, transform_indices = @transform_14, window_bounds = array<i64: 2, 32, 64>}, {pipeline_mode = #tpu.pipeline_mode<synchronous>, transform_indices = @transform_15, window_bounds = array<i64: 2, 1, 64>}, {pipeline_mode = #tpu.pipeline_mode<synchronous>, transform_indices = @transform_16, window_bounds = array<i64: 2, 64, 32>}, {pipeline_mode = #tpu.pipeline_mode<synchronous>, transform_indices = @transform_17, window_bounds = array<i64: 2, 1, 32>}, {pipeline_mode = #tpu.pipeline_mode<synchronous>, transform_indices = @transform_18, window_bounds = array<i64: 2, 1, 32>}, {pipeline_mode = #tpu.pipeline_mode<synchronous>, transform_indices = @transform_19, window_bounds = array<i64: 2, 1, 32>}, {pipeline_mode = #tpu.pipeline_mode<synchronous>, transform_indices = @transform_20, window_bounds = array<i64: 32, 32>}, {pipeline_mode = #tpu.pipeline_mode<synchronous>, transform_indices = @transform_21, window_bounds = array<i64: 1, 32>}, {pipeline_mode = #tpu.pipeline_mode<synchronous>, transform_indices = @transform_22, window_bounds = array<i64: 32, 128>}, {pipeline_mode = #tpu.pipeline_mode<synchronous>, transform_indices = @transform_23, window_bounds = array<i64: 1, 128>}, {transform_indices = @transform_24, window_bounds = array<i64: 1, 1, 128>}]} {
    %c0 = arith.constant 0 : index
    %c0_0 = arith.constant 0 : index
    %c0_1 = arith.constant 0 : index
    %0 = vector.load %arg2[%c0, %c0_0, %c0_1] : memref<1x1x8xf32, #tpu.memory_space<vmem>>, vector<1x1x8xf32>
    %1 = vector.shape_cast %0 : vector<1x1x8xf32> to vector<1x8xf32>
    %c0_2 = arith.constant 0 : index
    %c0_3 = arith.constant 0 : index
    %c0_4 = arith.constant 0 : index
    %2 = vector.load %arg1[%c0_2, %c0_3, %c0_4] : memref<1x8x32xf32, #tpu.memory_space<vmem>>, vector<1x8x32xf32>
    %3 = vector.shape_cast %2 : vector<1x8x32xf32> to vector<8x32xf32>
    %c0_5 = arith.constant 0 : index
    %c0_6 = arith.constant 0 : index
    %4 = vector.load %arg3[%c0_5, %c0_6] : memref<1x32xf32, #tpu.memory_space<vmem>>, vector<1x32xf32>
    %c0_7 = arith.constant 0 : index
    %c0_8 = arith.constant 0 : index
    %5 = vector.load %arg4[%c0_7, %c0_8] : memref<1x32xf32, #tpu.memory_space<vmem>>, vector<1x32xf32>
    %cst = arith.constant dense<0.000000e+00> : vector<8xf32>
    %6 = vector.multi_reduction <add>, %3, %cst [1] : vector<8x32xf32> to vector<8xf32>
    %7 = vector.shape_cast %6 : vector<8xf32> to vector<8x1xf32>
    %cst_9 = arith.constant 3.200000e+01 : f32
    %8 = vector.broadcast %cst_9 : f32 to vector<8x1xf32>
    %9 = arith.divf %7, %8 : vector<8x1xf32>
    %10 = vector.broadcast %9 : vector<8x1xf32> to vector<8x32xf32>
    %11 = arith.subf %3, %10 : vector<8x32xf32>
    %12 = arith.mulf %11, %11 : vector<8x32xf32>
    %cst_10 = arith.constant dense<0.000000e+00> : vector<8xf32>
    %13 = vector.multi_reduction <add>, %12, %cst_10 [1] : vector<8x32xf32> to vector<8xf32>
    %14 = vector.shape_cast %13 : vector<8xf32> to vector<8x1xf32>
    %cst_11 = arith.constant 3.200000e+01 : f32
    %15 = vector.broadcast %cst_11 : f32 to vector<8x1xf32>
    %16 = arith.divf %14, %15 : vector<8x1xf32>
    %17 = vector.broadcast %9 : vector<8x1xf32> to vector<8x32xf32>
    %18 = arith.subf %3, %17 : vector<8x32xf32>
    %cst_12 = arith.constant 9.99999996E-13 : f32
    %19 = vector.broadcast %cst_12 : f32 to vector<8x1xf32>
    %20 = arith.addf %16, %19 : vector<8x1xf32>
    %21 = math.rsqrt %20 : vector<8x1xf32>
    %22 = vector.broadcast %21 : vector<8x1xf32> to vector<8x32xf32>
    %23 = arith.mulf %18, %22 : vector<8x32xf32>
    %24 = vector.broadcast %4 : vector<1x32xf32> to vector<8x32xf32>
    %25 = arith.mulf %23, %24 : vector<8x32xf32>
    %26 = vector.broadcast %5 : vector<1x32xf32> to vector<8x32xf32>
    %27 = arith.addf %25, %26 : vector<8x32xf32>
    %cst_13 = arith.constant 0.000000e+00 : f32
    %28 = vector.broadcast %cst_13 : f32 to vector<8x32xf32>
    %c0_14 = arith.constant 0 : index
    %c0_15 = arith.constant 0 : index
    %c0_16 = arith.constant 0 : index
    %c0_17 = arith.constant 0 : index
    %29 = vector.load %arg5[%c0_14, %c0_15, %c0_16, %c0_17] : memref<2x4x32x8xbf16, #tpu.memory_space<vmem>>, vector<1x1x32x8xbf16>
    %30 = vector.shape_cast %29 : vector<1x1x32x8xbf16> to vector<32x8xbf16>
    %31 = arith.truncf %27 : vector<8x32xf32> to vector<8x32xbf16>
    %cst_18 = arith.constant dense<0.000000e+00> : vector<8x8xf32>
    %32 = tpu.matmul %31, %30, %cst_18 {dimension_numbers = #tpu.dot_dimension_numbers<[1], [0], [0], [1], [0, 0, 1, 1], [], []>} : vector<8x32xbf16>, vector<32x8xbf16>, vector<8x8xf32> -> vector<8x8xf32>
    %c0_19 = arith.constant 0 : index
    %c0_20 = arith.constant 0 : index
    %c0_21 = arith.constant 0 : index
    %c0_22 = arith.constant 0 : index
    %33 = vector.load %arg6[%c0_19, %c0_20, %c0_21, %c0_22] : memref<2x4x1x8xf32, #tpu.memory_space<vmem>>, vector<1x1x1x8xf32>
    %34 = vector.shape_cast %33 : vector<1x1x1x8xf32> to vector<1x8xf32>
    %35 = vector.broadcast %34 : vector<1x8xf32> to vector<8x8xf32>
    %36 = arith.addf %32, %35 : vector<8x8xf32>
    %cst_23 = arith.constant 0.353553385 : f32
    %37 = vector.broadcast %cst_23 : f32 to vector<8x8xf32>
    %38 = arith.mulf %36, %37 : vector<8x8xf32>
    %c0_24 = arith.constant 0 : index
    %c0_25 = arith.constant 0 : index
    %c0_26 = arith.constant 0 : index
    %c0_27 = arith.constant 0 : index
    %39 = vector.load %arg7[%c0_24, %c0_25, %c0_26, %c0_27] : memref<2x4x32x8xbf16, #tpu.memory_space<vmem>>, vector<1x1x32x8xbf16>
    %40 = vector.shape_cast %39 : vector<1x1x32x8xbf16> to vector<32x8xbf16>
    %41 = arith.truncf %27 : vector<8x32xf32> to vector<8x32xbf16>
    %cst_28 = arith.constant dense<0.000000e+00> : vector<8x8xf32>
    %42 = tpu.matmul %41, %40, %cst_28 {dimension_numbers = #tpu.dot_dimension_numbers<[1], [0], [0], [1], [0, 0, 1, 1], [], []>} : vector<8x32xbf16>, vector<32x8xbf16>, vector<8x8xf32> -> vector<8x8xf32>
    %c0_29 = arith.constant 0 : index
    %c0_30 = arith.constant 0 : index
    %c0_31 = arith.constant 0 : index
    %c0_32 = arith.constant 0 : index
    %43 = vector.load %arg8[%c0_29, %c0_30, %c0_31, %c0_32] : memref<2x4x1x8xf32, #tpu.memory_space<vmem>>, vector<1x1x1x8xf32>
    %44 = vector.shape_cast %43 : vector<1x1x1x8xf32> to vector<1x8xf32>
    %45 = vector.broadcast %44 : vector<1x8xf32> to vector<8x8xf32>
    %46 = arith.addf %42, %45 : vector<8x8xf32>
    %c0_33 = arith.constant 0 : index
    %c0_34 = arith.constant 0 : index
    %c0_35 = arith.constant 0 : index
    %c0_36 = arith.constant 0 : index
    %47 = vector.load %arg9[%c0_33, %c0_34, %c0_35, %c0_36] : memref<2x4x32x8xbf16, #tpu.memory_space<vmem>>, vector<1x1x32x8xbf16>
    %48 = vector.shape_cast %47 : vector<1x1x32x8xbf16> to vector<32x8xbf16>
    %49 = arith.truncf %27 : vector<8x32xf32> to vector<8x32xbf16>
    %cst_37 = arith.constant dense<0.000000e+00> : vector<8x8xf32>
    %50 = tpu.matmul %49, %48, %cst_37 {dimension_numbers = #tpu.dot_dimension_numbers<[1], [0], [0], [1], [0, 0, 1, 1], [], []>} : vector<8x32xbf16>, vector<32x8xbf16>, vector<8x8xf32> -> vector<8x8xf32>
    %c0_38 = arith.constant 0 : index
    %c0_39 = arith.constant 0 : index
    %c0_40 = arith.constant 0 : index
    %c0_41 = arith.constant 0 : index
    %51 = vector.load %arg10[%c0_38, %c0_39, %c0_40, %c0_41] : memref<2x4x1x8xf32, #tpu.memory_space<vmem>>, vector<1x1x1x8xf32>
    %52 = vector.shape_cast %51 : vector<1x1x1x8xf32> to vector<1x8xf32>
    %53 = vector.broadcast %52 : vector<1x8xf32> to vector<8x8xf32>
    %54 = arith.addf %50, %53 : vector<8x8xf32>
    %55 = arith.truncf %38 : vector<8x8xf32> to vector<8x8xbf16>
    %56 = arith.truncf %46 : vector<8x8xf32> to vector<8x8xbf16>
    "tpu.trace_start"() <{level = 10 : i32, message = "qd,kd->qk"}> : () -> ()
    %cst_42 = arith.constant dense<0.000000e+00> : vector<8x8xf32>
    %57 = tpu.matmul %55, %56, %cst_42 {dimension_numbers = #tpu.dot_dimension_numbers<[1], [1], [0], [0], [0, 0, 1, 0], [], []>} : vector<8x8xbf16>, vector<8x8xbf16>, vector<8x8xf32> -> vector<8x8xf32>
    "tpu.trace_stop"() : () -> ()
    %58 = vector.broadcast %1 : vector<1x8xf32> to vector<8x8xf32>
    %59 = arith.addf %57, %58 : vector<8x8xf32>
    %cst_43 = arith.constant dense<0xFF800000> : vector<8xf32>
    %60 = vector.multi_reduction <maximumf>, %59, %cst_43 [1] : vector<8x8xf32> to vector<8xf32>
    %61 = vector.shape_cast %60 : vector<8xf32> to vector<8x1xf32>
    %62 = vector.broadcast %61 : vector<8x1xf32> to vector<8x8xf32>
    %63 = arith.subf %59, %62 : vector<8x8xf32>
    %64 = math.exp %63 : vector<8x8xf32>
    %cst_44 = arith.constant dense<0.000000e+00> : vector<8xf32>
    %65 = vector.multi_reduction <add>, %64, %cst_44 [1] : vector<8x8xf32> to vector<8xf32>
    %66 = vector.shape_cast %65 : vector<8xf32> to vector<8x1xf32>
    %67 = tpu.reciprocal %66 {approx = true} : vector<8x1xf32> -> vector<8x1xf32>
    %68 = vector.broadcast %67 : vector<8x1xf32> to vector<8x8xf32>
    %69 = arith.mulf %64, %68 : vector<8x8xf32>
    %70 = arith.truncf %54 : vector<8x8xf32> to vector<8x8xbf16>
    %71 = arith.truncf %69 : vector<8x8xf32> to vector<8x8xbf16>
    %cst_45 = arith.constant dense<0.000000e+00> : vector<8x8xf32>
    %72 = tpu.matmul %71, %70, %cst_45 {dimension_numbers = #tpu.dot_dimension_numbers<[1], [0], [0], [1], [0, 0, 1, 1], [], []>} : vector<8x8xbf16>, vector<8x8xbf16>, vector<8x8xf32> -> vector<8x8xf32>
    %c0_46 = arith.constant 0 : index
    %c0_47 = arith.constant 0 : index
    %c0_48 = arith.constant 0 : index
    %c0_49 = arith.constant 0 : index
    %73 = vector.load %arg11[%c0_46, %c0_47, %c0_48, %c0_49] : memref<2x4x8x32xbf16, #tpu.memory_space<vmem>>, vector<1x1x8x32xbf16>
    %74 = vector.shape_cast %73 : vector<1x1x8x32xbf16> to vector<8x32xbf16>
    %75 = arith.truncf %72 : vector<8x8xf32> to vector<8x8xbf16>
    %cst_50 = arith.constant dense<0.000000e+00> : vector<8x32xf32>
    %76 = tpu.matmul %75, %74, %cst_50 {dimension_numbers = #tpu.dot_dimension_numbers<[1], [0], [0], [1], [0, 0, 1, 1], [], []>} : vector<8x8xbf16>, vector<8x32xbf16>, vector<8x32xf32> -> vector<8x32xf32>
    %77 = arith.addf %28, %76 : vector<8x32xf32>
    %c0_51 = arith.constant 0 : index
    %c1 = arith.constant 1 : index
    %c0_52 = arith.constant 0 : index
    %c0_53 = arith.constant 0 : index
    %78 = vector.load %arg5[%c0_51, %c1, %c0_52, %c0_53] : memref<2x4x32x8xbf16, #tpu.memory_space<vmem>>, vector<1x1x32x8xbf16>
    %79 = vector.shape_cast %78 : vector<1x1x32x8xbf16> to vector<32x8xbf16>
    %80 = arith.truncf %27 : vector<8x32xf32> to vector<8x32xbf16>
    %cst_54 = arith.constant dense<0.000000e+00> : vector<8x8xf32>
    %81 = tpu.matmul %80, %79, %cst_54 {dimension_numbers = #tpu.dot_dimension_numbers<[1], [0], [0], [1], [0, 0, 1, 1], [], []>} : vector<8x32xbf16>, vector<32x8xbf16>, vector<8x8xf32> -> vector<8x8xf32>
    %c0_55 = arith.constant 0 : index
    %c1_56 = arith.constant 1 : index
    %c0_57 = arith.constant 0 : index
    %c0_58 = arith.constant 0 : index
    %82 = vector.load %arg6[%c0_55, %c1_56, %c0_57, %c0_58] : memref<2x4x1x8xf32, #tpu.memory_space<vmem>>, vector<1x1x1x8xf32>
    %83 = vector.shape_cast %82 : vector<1x1x1x8xf32> to vector<1x8xf32>
    %84 = vector.broadcast %83 : vector<1x8xf32> to vector<8x8xf32>
    %85 = arith.addf %81, %84 : vector<8x8xf32>
    %cst_59 = arith.constant 0.353553385 : f32
    %86 = vector.broadcast %cst_59 : f32 to vector<8x8xf32>
    %87 = arith.mulf %85, %86 : vector<8x8xf32>
    %c0_60 = arith.constant 0 : index
    %c1_61 = arith.constant 1 : index
    %c0_62 = arith.constant 0 : index
    %c0_63 = arith.constant 0 : index
    %88 = vector.load %arg7[%c0_60, %c1_61, %c0_62, %c0_63] : memref<2x4x32x8xbf16, #tpu.memory_space<vmem>>, vector<1x1x32x8xbf16>
    %89 = vector.shape_cast %88 : vector<1x1x32x8xbf16> to vector<32x8xbf16>
    %90 = arith.truncf %27 : vector<8x32xf32> to vector<8x32xbf16>
    %cst_64 = arith.constant dense<0.000000e+00> : vector<8x8xf32>
    %91 = tpu.matmul %90, %89, %cst_64 {dimension_numbers = #tpu.dot_dimension_numbers<[1], [0], [0], [1], [0, 0, 1, 1], [], []>} : vector<8x32xbf16>, vector<32x8xbf16>, vector<8x8xf32> -> vector<8x8xf32>
    %c0_65 = arith.constant 0 : index
    %c1_66 = arith.constant 1 : index
    %c0_67 = arith.constant 0 : index
    %c0_68 = arith.constant 0 : index
    %92 = vector.load %arg8[%c0_65, %c1_66, %c0_67, %c0_68] : memref<2x4x1x8xf32, #tpu.memory_space<vmem>>, vector<1x1x1x8xf32>
    %93 = vector.shape_cast %92 : vector<1x1x1x8xf32> to vector<1x8xf32>
    %94 = vector.broadcast %93 : vector<1x8xf32> to vector<8x8xf32>
    %95 = arith.addf %91, %94 : vector<8x8xf32>
    %c0_69 = arith.constant 0 : index
    %c1_70 = arith.constant 1 : index
    %c0_71 = arith.constant 0 : index
    %c0_72 = arith.constant 0 : index
    %96 = vector.load %arg9[%c0_69, %c1_70, %c0_71, %c0_72] : memref<2x4x32x8xbf16, #tpu.memory_space<vmem>>, vector<1x1x32x8xbf16>
    %97 = vector.shape_cast %96 : vector<1x1x32x8xbf16> to vector<32x8xbf16>
    %98 = arith.truncf %27 : vector<8x32xf32> to vector<8x32xbf16>
    %cst_73 = arith.constant dense<0.000000e+00> : vector<8x8xf32>
    %99 = tpu.matmul %98, %97, %cst_73 {dimension_numbers = #tpu.dot_dimension_numbers<[1], [0], [0], [1], [0, 0, 1, 1], [], []>} : vector<8x32xbf16>, vector<32x8xbf16>, vector<8x8xf32> -> vector<8x8xf32>
    %c0_74 = arith.constant 0 : index
    %c1_75 = arith.constant 1 : index
    %c0_76 = arith.constant 0 : index
    %c0_77 = arith.constant 0 : index
    %100 = vector.load %arg10[%c0_74, %c1_75, %c0_76, %c0_77] : memref<2x4x1x8xf32, #tpu.memory_space<vmem>>, vector<1x1x1x8xf32>
    %101 = vector.shape_cast %100 : vector<1x1x1x8xf32> to vector<1x8xf32>
    %102 = vector.broadcast %101 : vector<1x8xf32> to vector<8x8xf32>
    %103 = arith.addf %99, %102 : vector<8x8xf32>
    %104 = arith.truncf %87 : vector<8x8xf32> to vector<8x8xbf16>
    %105 = arith.truncf %95 : vector<8x8xf32> to vector<8x8xbf16>
    "tpu.trace_start"() <{level = 10 : i32, message = "qd,kd->qk"}> : () -> ()
    %cst_78 = arith.constant dense<0.000000e+00> : vector<8x8xf32>
    %106 = tpu.matmul %104, %105, %cst_78 {dimension_numbers = #tpu.dot_dimension_numbers<[1], [1], [0], [0], [0, 0, 1, 0], [], []>} : vector<8x8xbf16>, vector<8x8xbf16>, vector<8x8xf32> -> vector<8x8xf32>
    "tpu.trace_stop"() : () -> ()
    %107 = vector.broadcast %1 : vector<1x8xf32> to vector<8x8xf32>
    %108 = arith.addf %106, %107 : vector<8x8xf32>
    %cst_79 = arith.constant dense<0xFF800000> : vector<8xf32>
    %109 = vector.multi_reduction <maximumf>, %108, %cst_79 [1] : vector<8x8xf32> to vector<8xf32>
    %110 = vector.shape_cast %109 : vector<8xf32> to vector<8x1xf32>
    %111 = vector.broadcast %110 : vector<8x1xf32> to vector<8x8xf32>
    %112 = arith.subf %108, %111 : vector<8x8xf32>
    %113 = math.exp %112 : vector<8x8xf32>
    %cst_80 = arith.constant dense<0.000000e+00> : vector<8xf32>
    %114 = vector.multi_reduction <add>, %113, %cst_80 [1] : vector<8x8xf32> to vector<8xf32>
    %115 = vector.shape_cast %114 : vector<8xf32> to vector<8x1xf32>
    %116 = tpu.reciprocal %115 {approx = true} : vector<8x1xf32> -> vector<8x1xf32>
    %117 = vector.broadcast %116 : vector<8x1xf32> to vector<8x8xf32>
    %118 = arith.mulf %113, %117 : vector<8x8xf32>
    %119 = arith.truncf %103 : vector<8x8xf32> to vector<8x8xbf16>
    %120 = arith.truncf %118 : vector<8x8xf32> to vector<8x8xbf16>
    %cst_81 = arith.constant dense<0.000000e+00> : vector<8x8xf32>
    %121 = tpu.matmul %120, %119, %cst_81 {dimension_numbers = #tpu.dot_dimension_numbers<[1], [0], [0], [1], [0, 0, 1, 1], [], []>} : vector<8x8xbf16>, vector<8x8xbf16>, vector<8x8xf32> -> vector<8x8xf32>
    %c0_82 = arith.constant 0 : index
    %c1_83 = arith.constant 1 : index
    %c0_84 = arith.constant 0 : index
    %c0_85 = arith.constant 0 : index
    %122 = vector.load %arg11[%c0_82, %c1_83, %c0_84, %c0_85] : memref<2x4x8x32xbf16, #tpu.memory_space<vmem>>, vector<1x1x8x32xbf16>
    %123 = vector.shape_cast %122 : vector<1x1x8x32xbf16> to vector<8x32xbf16>
    %124 = arith.truncf %121 : vector<8x8xf32> to vector<8x8xbf16>
    %cst_86 = arith.constant dense<0.000000e+00> : vector<8x32xf32>
    %125 = tpu.matmul %124, %123, %cst_86 {dimension_numbers = #tpu.dot_dimension_numbers<[1], [0], [0], [1], [0, 0, 1, 1], [], []>} : vector<8x8xbf16>, vector<8x32xbf16>, vector<8x32xf32> -> vector<8x32xf32>
    %126 = arith.addf %77, %125 : vector<8x32xf32>
    %c0_87 = arith.constant 0 : index
    %c2 = arith.constant 2 : index
    %c0_88 = arith.constant 0 : index
    %c0_89 = arith.constant 0 : index
    %127 = vector.load %arg5[%c0_87, %c2, %c0_88, %c0_89] : memref<2x4x32x8xbf16, #tpu.memory_space<vmem>>, vector<1x1x32x8xbf16>
    %128 = vector.shape_cast %127 : vector<1x1x32x8xbf16> to vector<32x8xbf16>
    %129 = arith.truncf %27 : vector<8x32xf32> to vector<8x32xbf16>
    %cst_90 = arith.constant dense<0.000000e+00> : vector<8x8xf32>
    %130 = tpu.matmul %129, %128, %cst_90 {dimension_numbers = #tpu.dot_dimension_numbers<[1], [0], [0], [1], [0, 0, 1, 1], [], []>} : vector<8x32xbf16>, vector<32x8xbf16>, vector<8x8xf32> -> vector<8x8xf32>
    %c0_91 = arith.constant 0 : index
    %c2_92 = arith.constant 2 : index
    %c0_93 = arith.constant 0 : index
    %c0_94 = arith.constant 0 : index
    %131 = vector.load %arg6[%c0_91, %c2_92, %c0_93, %c0_94] : memref<2x4x1x8xf32, #tpu.memory_space<vmem>>, vector<1x1x1x8xf32>
    %132 = vector.shape_cast %131 : vector<1x1x1x8xf32> to vector<1x8xf32>
    %133 = vector.broadcast %132 : vector<1x8xf32> to vector<8x8xf32>
    %134 = arith.addf %130, %133 : vector<8x8xf32>
    %cst_95 = arith.constant 0.353553385 : f32
    %135 = vector.broadcast %cst_95 : f32 to vector<8x8xf32>
    %136 = arith.mulf %134, %135 : vector<8x8xf32>
    %c0_96 = arith.constant 0 : index
    %c2_97 = arith.constant 2 : index
    %c0_98 = arith.constant 0 : index
    %c0_99 = arith.constant 0 : index
    %137 = vector.load %arg7[%c0_96, %c2_97, %c0_98, %c0_99] : memref<2x4x32x8xbf16, #tpu.memory_space<vmem>>, vector<1x1x32x8xbf16>
    %138 = vector.shape_cast %137 : vector<1x1x32x8xbf16> to vector<32x8xbf16>
    %139 = arith.truncf %27 : vector<8x32xf32> to vector<8x32xbf16>
    %cst_100 = arith.constant dense<0.000000e+00> : vector<8x8xf32>
    %140 = tpu.matmul %139, %138, %cst_100 {dimension_numbers = #tpu.dot_dimension_numbers<[1], [0], [0], [1], [0, 0, 1, 1], [], []>} : vector<8x32xbf16>, vector<32x8xbf16>, vector<8x8xf32> -> vector<8x8xf32>
    %c0_101 = arith.constant 0 : index
    %c2_102 = arith.constant 2 : index
    %c0_103 = arith.constant 0 : index
    %c0_104 = arith.constant 0 : index
    %141 = vector.load %arg8[%c0_101, %c2_102, %c0_103, %c0_104] : memref<2x4x1x8xf32, #tpu.memory_space<vmem>>, vector<1x1x1x8xf32>
    %142 = vector.shape_cast %141 : vector<1x1x1x8xf32> to vector<1x8xf32>
    %143 = vector.broadcast %142 : vector<1x8xf32> to vector<8x8xf32>
    %144 = arith.addf %140, %143 : vector<8x8xf32>
    %c0_105 = arith.constant 0 : index
    %c2_106 = arith.constant 2 : index
    %c0_107 = arith.constant 0 : index
    %c0_108 = arith.constant 0 : index
    %145 = vector.load %arg9[%c0_105, %c2_106, %c0_107, %c0_108] : memref<2x4x32x8xbf16, #tpu.memory_space<vmem>>, vector<1x1x32x8xbf16>
    %146 = vector.shape_cast %145 : vector<1x1x32x8xbf16> to vector<32x8xbf16>
    %147 = arith.truncf %27 : vector<8x32xf32> to vector<8x32xbf16>
    %cst_109 = arith.constant dense<0.000000e+00> : vector<8x8xf32>
    %148 = tpu.matmul %147, %146, %cst_109 {dimension_numbers = #tpu.dot_dimension_numbers<[1], [0], [0], [1], [0, 0, 1, 1], [], []>} : vector<8x32xbf16>, vector<32x8xbf16>, vector<8x8xf32> -> vector<8x8xf32>
    %c0_110 = arith.constant 0 : index
    %c2_111 = arith.constant 2 : index
    %c0_112 = arith.constant 0 : index
    %c0_113 = arith.constant 0 : index
    %149 = vector.load %arg10[%c0_110, %c2_111, %c0_112, %c0_113] : memref<2x4x1x8xf32, #tpu.memory_space<vmem>>, vector<1x1x1x8xf32>
    %150 = vector.shape_cast %149 : vector<1x1x1x8xf32> to vector<1x8xf32>
    %151 = vector.broadcast %150 : vector<1x8xf32> to vector<8x8xf32>
    %152 = arith.addf %148, %151 : vector<8x8xf32>
    %153 = arith.truncf %136 : vector<8x8xf32> to vector<8x8xbf16>
    %154 = arith.truncf %144 : vector<8x8xf32> to vector<8x8xbf16>
    "tpu.trace_start"() <{level = 10 : i32, message = "qd,kd->qk"}> : () -> ()
    %cst_114 = arith.constant dense<0.000000e+00> : vector<8x8xf32>
    %155 = tpu.matmul %153, %154, %cst_114 {dimension_numbers = #tpu.dot_dimension_numbers<[1], [1], [0], [0], [0, 0, 1, 0], [], []>} : vector<8x8xbf16>, vector<8x8xbf16>, vector<8x8xf32> -> vector<8x8xf32>
    "tpu.trace_stop"() : () -> ()
    %156 = vector.broadcast %1 : vector<1x8xf32> to vector<8x8xf32>
    %157 = arith.addf %155, %156 : vector<8x8xf32>
    %cst_115 = arith.constant dense<0xFF800000> : vector<8xf32>
    %158 = vector.multi_reduction <maximumf>, %157, %cst_115 [1] : vector<8x8xf32> to vector<8xf32>
    %159 = vector.shape_cast %158 : vector<8xf32> to vector<8x1xf32>
    %160 = vector.broadcast %159 : vector<8x1xf32> to vector<8x8xf32>
    %161 = arith.subf %157, %160 : vector<8x8xf32>
    %162 = math.exp %161 : vector<8x8xf32>
    %cst_116 = arith.constant dense<0.000000e+00> : vector<8xf32>
    %163 = vector.multi_reduction <add>, %162, %cst_116 [1] : vector<8x8xf32> to vector<8xf32>
    %164 = vector.shape_cast %163 : vector<8xf32> to vector<8x1xf32>
    %165 = tpu.reciprocal %164 {approx = true} : vector<8x1xf32> -> vector<8x1xf32>
    %166 = vector.broadcast %165 : vector<8x1xf32> to vector<8x8xf32>
    %167 = arith.mulf %162, %166 : vector<8x8xf32>
    %168 = arith.truncf %152 : vector<8x8xf32> to vector<8x8xbf16>
    %169 = arith.truncf %167 : vector<8x8xf32> to vector<8x8xbf16>
    %cst_117 = arith.constant dense<0.000000e+00> : vector<8x8xf32>
    %170 = tpu.matmul %169, %168, %cst_117 {dimension_numbers = #tpu.dot_dimension_numbers<[1], [0], [0], [1], [0, 0, 1, 1], [], []>} : vector<8x8xbf16>, vector<8x8xbf16>, vector<8x8xf32> -> vector<8x8xf32>
    %c0_118 = arith.constant 0 : index
    %c2_119 = arith.constant 2 : index
    %c0_120 = arith.constant 0 : index
    %c0_121 = arith.constant 0 : index
    %171 = vector.load %arg11[%c0_118, %c2_119, %c0_120, %c0_121] : memref<2x4x8x32xbf16, #tpu.memory_space<vmem>>, vector<1x1x8x32xbf16>
    %172 = vector.shape_cast %171 : vector<1x1x8x32xbf16> to vector<8x32xbf16>
    %173 = arith.truncf %170 : vector<8x8xf32> to vector<8x8xbf16>
    %cst_122 = arith.constant dense<0.000000e+00> : vector<8x32xf32>
    %174 = tpu.matmul %173, %172, %cst_122 {dimension_numbers = #tpu.dot_dimension_numbers<[1], [0], [0], [1], [0, 0, 1, 1], [], []>} : vector<8x8xbf16>, vector<8x32xbf16>, vector<8x32xf32> -> vector<8x32xf32>
    %175 = arith.addf %126, %174 : vector<8x32xf32>
    %c0_123 = arith.constant 0 : index
    %c3 = arith.constant 3 : index
    %c0_124 = arith.constant 0 : index
    %c0_125 = arith.constant 0 : index
    %176 = vector.load %arg5[%c0_123, %c3, %c0_124, %c0_125] : memref<2x4x32x8xbf16, #tpu.memory_space<vmem>>, vector<1x1x32x8xbf16>
    %177 = vector.shape_cast %176 : vector<1x1x32x8xbf16> to vector<32x8xbf16>
    %178 = arith.truncf %27 : vector<8x32xf32> to vector<8x32xbf16>
    %cst_126 = arith.constant dense<0.000000e+00> : vector<8x8xf32>
    %179 = tpu.matmul %178, %177, %cst_126 {dimension_numbers = #tpu.dot_dimension_numbers<[1], [0], [0], [1], [0, 0, 1, 1], [], []>} : vector<8x32xbf16>, vector<32x8xbf16>, vector<8x8xf32> -> vector<8x8xf32>
    %c0_127 = arith.constant 0 : index
    %c3_128 = arith.constant 3 : index
    %c0_129 = arith.constant 0 : index
    %c0_130 = arith.constant 0 : index
    %180 = vector.load %arg6[%c0_127, %c3_128, %c0_129, %c0_130] : memref<2x4x1x8xf32, #tpu.memory_space<vmem>>, vector<1x1x1x8xf32>
    %181 = vector.shape_cast %180 : vector<1x1x1x8xf32> to vector<1x8xf32>
    %182 = vector.broadcast %181 : vector<1x8xf32> to vector<8x8xf32>
    %183 = arith.addf %179, %182 : vector<8x8xf32>
    %cst_131 = arith.constant 0.353553385 : f32
    %184 = vector.broadcast %cst_131 : f32 to vector<8x8xf32>
    %185 = arith.mulf %183, %184 : vector<8x8xf32>
    %c0_132 = arith.constant 0 : index
    %c3_133 = arith.constant 3 : index
    %c0_134 = arith.constant 0 : index
    %c0_135 = arith.constant 0 : index
    %186 = vector.load %arg7[%c0_132, %c3_133, %c0_134, %c0_135] : memref<2x4x32x8xbf16, #tpu.memory_space<vmem>>, vector<1x1x32x8xbf16>
    %187 = vector.shape_cast %186 : vector<1x1x32x8xbf16> to vector<32x8xbf16>
    %188 = arith.truncf %27 : vector<8x32xf32> to vector<8x32xbf16>
    %cst_136 = arith.constant dense<0.000000e+00> : vector<8x8xf32>
    %189 = tpu.matmul %188, %187, %cst_136 {dimension_numbers = #tpu.dot_dimension_numbers<[1], [0], [0], [1], [0, 0, 1, 1], [], []>} : vector<8x32xbf16>, vector<32x8xbf16>, vector<8x8xf32> -> vector<8x8xf32>
    %c0_137 = arith.constant 0 : index
    %c3_138 = arith.constant 3 : index
    %c0_139 = arith.constant 0 : index
    %c0_140 = arith.constant 0 : index
    %190 = vector.load %arg8[%c0_137, %c3_138, %c0_139, %c0_140] : memref<2x4x1x8xf32, #tpu.memory_space<vmem>>, vector<1x1x1x8xf32>
    %191 = vector.shape_cast %190 : vector<1x1x1x8xf32> to vector<1x8xf32>
    %192 = vector.broadcast %191 : vector<1x8xf32> to vector<8x8xf32>
    %193 = arith.addf %189, %192 : vector<8x8xf32>
    %c0_141 = arith.constant 0 : index
    %c3_142 = arith.constant 3 : index
    %c0_143 = arith.constant 0 : index
    %c0_144 = arith.constant 0 : index
    %194 = vector.load %arg9[%c0_141, %c3_142, %c0_143, %c0_144] : memref<2x4x32x8xbf16, #tpu.memory_space<vmem>>, vector<1x1x32x8xbf16>
    %195 = vector.shape_cast %194 : vector<1x1x32x8xbf16> to vector<32x8xbf16>
    %196 = arith.truncf %27 : vector<8x32xf32> to vector<8x32xbf16>
    %cst_145 = arith.constant dense<0.000000e+00> : vector<8x8xf32>
    %197 = tpu.matmul %196, %195, %cst_145 {dimension_numbers = #tpu.dot_dimension_numbers<[1], [0], [0], [1], [0, 0, 1, 1], [], []>} : vector<8x32xbf16>, vector<32x8xbf16>, vector<8x8xf32> -> vector<8x8xf32>
    %c0_146 = arith.constant 0 : index
    %c3_147 = arith.constant 3 : index
    %c0_148 = arith.constant 0 : index
    %c0_149 = arith.constant 0 : index
    %198 = vector.load %arg10[%c0_146, %c3_147, %c0_148, %c0_149] : memref<2x4x1x8xf32, #tpu.memory_space<vmem>>, vector<1x1x1x8xf32>
    %199 = vector.shape_cast %198 : vector<1x1x1x8xf32> to vector<1x8xf32>
    %200 = vector.broadcast %199 : vector<1x8xf32> to vector<8x8xf32>
    %201 = arith.addf %197, %200 : vector<8x8xf32>
    %202 = arith.truncf %185 : vector<8x8xf32> to vector<8x8xbf16>
    %203 = arith.truncf %193 : vector<8x8xf32> to vector<8x8xbf16>
    "tpu.trace_start"() <{level = 10 : i32, message = "qd,kd->qk"}> : () -> ()
    %cst_150 = arith.constant dense<0.000000e+00> : vector<8x8xf32>
    %204 = tpu.matmul %202, %203, %cst_150 {dimension_numbers = #tpu.dot_dimension_numbers<[1], [1], [0], [0], [0, 0, 1, 0], [], []>} : vector<8x8xbf16>, vector<8x8xbf16>, vector<8x8xf32> -> vector<8x8xf32>
    "tpu.trace_stop"() : () -> ()
    %205 = vector.broadcast %1 : vector<1x8xf32> to vector<8x8xf32>
    %206 = arith.addf %204, %205 : vector<8x8xf32>
    %cst_151 = arith.constant dense<0xFF800000> : vector<8xf32>
    %207 = vector.multi_reduction <maximumf>, %206, %cst_151 [1] : vector<8x8xf32> to vector<8xf32>
    %208 = vector.shape_cast %207 : vector<8xf32> to vector<8x1xf32>
    %209 = vector.broadcast %208 : vector<8x1xf32> to vector<8x8xf32>
    %210 = arith.subf %206, %209 : vector<8x8xf32>
    %211 = math.exp %210 : vector<8x8xf32>
    %cst_152 = arith.constant dense<0.000000e+00> : vector<8xf32>
    %212 = vector.multi_reduction <add>, %211, %cst_152 [1] : vector<8x8xf32> to vector<8xf32>
    %213 = vector.shape_cast %212 : vector<8xf32> to vector<8x1xf32>
    %214 = tpu.reciprocal %213 {approx = true} : vector<8x1xf32> -> vector<8x1xf32>
    %215 = vector.broadcast %214 : vector<8x1xf32> to vector<8x8xf32>
    %216 = arith.mulf %211, %215 : vector<8x8xf32>
    %217 = arith.truncf %201 : vector<8x8xf32> to vector<8x8xbf16>
    %218 = arith.truncf %216 : vector<8x8xf32> to vector<8x8xbf16>
    %cst_153 = arith.constant dense<0.000000e+00> : vector<8x8xf32>
    %219 = tpu.matmul %218, %217, %cst_153 {dimension_numbers = #tpu.dot_dimension_numbers<[1], [0], [0], [1], [0, 0, 1, 1], [], []>} : vector<8x8xbf16>, vector<8x8xbf16>, vector<8x8xf32> -> vector<8x8xf32>
    %c0_154 = arith.constant 0 : index
    %c3_155 = arith.constant 3 : index
    %c0_156 = arith.constant 0 : index
    %c0_157 = arith.constant 0 : index
    %220 = vector.load %arg11[%c0_154, %c3_155, %c0_156, %c0_157] : memref<2x4x8x32xbf16, #tpu.memory_space<vmem>>, vector<1x1x8x32xbf16>
    %221 = vector.shape_cast %220 : vector<1x1x8x32xbf16> to vector<8x32xbf16>
    %222 = arith.truncf %219 : vector<8x8xf32> to vector<8x8xbf16>
    %cst_158 = arith.constant dense<0.000000e+00> : vector<8x32xf32>
    %223 = tpu.matmul %222, %221, %cst_158 {dimension_numbers = #tpu.dot_dimension_numbers<[1], [0], [0], [1], [0, 0, 1, 1], [], []>} : vector<8x8xbf16>, vector<8x32xbf16>, vector<8x32xf32> -> vector<8x32xf32>
    %224 = arith.addf %175, %223 : vector<8x32xf32>
    %c0_159 = arith.constant 0 : index
    %c0_160 = arith.constant 0 : index
    %c0_161 = arith.constant 0 : index
    %225 = vector.load %arg12[%c0_159, %c0_160, %c0_161] : memref<2x1x32xf32, #tpu.memory_space<vmem>>, vector<1x1x32xf32>
    %226 = vector.shape_cast %225 : vector<1x1x32xf32> to vector<1x32xf32>
    %227 = vector.broadcast %226 : vector<1x32xf32> to vector<8x32xf32>
    %228 = arith.addf %224, %227 : vector<8x32xf32>
    %229 = arith.addf %228, %27 : vector<8x32xf32>
    %c0_162 = arith.constant 0 : index
    %c0_163 = arith.constant 0 : index
    %c0_164 = arith.constant 0 : index
    %230 = vector.load %arg13[%c0_162, %c0_163, %c0_164] : memref<2x1x32xf32, #tpu.memory_space<vmem>>, vector<1x1x32xf32>
    %231 = vector.shape_cast %230 : vector<1x1x32xf32> to vector<1x32xf32>
    %c0_165 = arith.constant 0 : index
    %c0_166 = arith.constant 0 : index
    %c0_167 = arith.constant 0 : index
    %232 = vector.load %arg14[%c0_165, %c0_166, %c0_167] : memref<2x1x32xf32, #tpu.memory_space<vmem>>, vector<1x1x32xf32>
    %233 = vector.shape_cast %232 : vector<1x1x32xf32> to vector<1x32xf32>
    %cst_168 = arith.constant dense<0.000000e+00> : vector<8xf32>
    %234 = vector.multi_reduction <add>, %229, %cst_168 [1] : vector<8x32xf32> to vector<8xf32>
    %235 = vector.shape_cast %234 : vector<8xf32> to vector<8x1xf32>
    %cst_169 = arith.constant 3.200000e+01 : f32
    %236 = vector.broadcast %cst_169 : f32 to vector<8x1xf32>
    %237 = arith.divf %235, %236 : vector<8x1xf32>
    %238 = vector.broadcast %237 : vector<8x1xf32> to vector<8x32xf32>
    %239 = arith.subf %229, %238 : vector<8x32xf32>
    %240 = arith.mulf %239, %239 : vector<8x32xf32>
    %cst_170 = arith.constant dense<0.000000e+00> : vector<8xf32>
    %241 = vector.multi_reduction <add>, %240, %cst_170 [1] : vector<8x32xf32> to vector<8xf32>
    %242 = vector.shape_cast %241 : vector<8xf32> to vector<8x1xf32>
    %cst_171 = arith.constant 3.200000e+01 : f32
    %243 = vector.broadcast %cst_171 : f32 to vector<8x1xf32>
    %244 = arith.divf %242, %243 : vector<8x1xf32>
    %245 = vector.broadcast %237 : vector<8x1xf32> to vector<8x32xf32>
    %246 = arith.subf %229, %245 : vector<8x32xf32>
    %cst_172 = arith.constant 9.99999996E-13 : f32
    %247 = vector.broadcast %cst_172 : f32 to vector<8x1xf32>
    %248 = arith.addf %244, %247 : vector<8x1xf32>
    %249 = math.rsqrt %248 : vector<8x1xf32>
    %250 = vector.broadcast %249 : vector<8x1xf32> to vector<8x32xf32>
    %251 = arith.mulf %246, %250 : vector<8x32xf32>
    %252 = vector.broadcast %231 : vector<1x32xf32> to vector<8x32xf32>
    %253 = arith.mulf %251, %252 : vector<8x32xf32>
    %254 = vector.broadcast %233 : vector<1x32xf32> to vector<8x32xf32>
    %255 = arith.addf %253, %254 : vector<8x32xf32>
    %c0_173 = arith.constant 0 : index
    %c0_174 = arith.constant 0 : index
    %c0_175 = arith.constant 0 : index
    %256 = vector.load %arg15[%c0_173, %c0_174, %c0_175] : memref<2x32x64xbf16, #tpu.memory_space<vmem>>, vector<1x32x64xbf16>
    %257 = vector.shape_cast %256 : vector<1x32x64xbf16> to vector<32x64xbf16>
    %258 = arith.truncf %255 : vector<8x32xf32> to vector<8x32xbf16>
    %cst_176 = arith.constant dense<0.000000e+00> : vector<8x64xf32>
    %259 = tpu.matmul %258, %257, %cst_176 {dimension_numbers = #tpu.dot_dimension_numbers<[1], [0], [0], [1], [0, 0, 1, 1], [], []>} : vector<8x32xbf16>, vector<32x64xbf16>, vector<8x64xf32> -> vector<8x64xf32>
    %c0_177 = arith.constant 0 : index
    %c0_178 = arith.constant 0 : index
    %c0_179 = arith.constant 0 : index
    %260 = vector.load %arg16[%c0_177, %c0_178, %c0_179] : memref<2x1x64xf32, #tpu.memory_space<vmem>>, vector<1x1x64xf32>
    %261 = vector.shape_cast %260 : vector<1x1x64xf32> to vector<1x64xf32>
    %262 = vector.broadcast %261 : vector<1x64xf32> to vector<8x64xf32>
    %263 = arith.addf %259, %262 : vector<8x64xf32>
    %cst_180 = arith.constant 5.000000e-01 : f32
    %264 = vector.broadcast %cst_180 : f32 to vector<8x64xf32>
    %265 = arith.mulf %264, %263 : vector<8x64xf32>
    %cst_181 = arith.constant 0.707106769 : f32
    %266 = vector.broadcast %cst_181 : f32 to vector<8x64xf32>
    %267 = arith.mulf %263, %266 : vector<8x64xf32>
    %268 = math.absf %267 : vector<8x64xf32>
    %cst_182 = arith.constant 0.327591091 : f32
    %269 = vector.broadcast %cst_182 : f32 to vector<8x64xf32>
    %270 = arith.mulf %269, %268 : vector<8x64xf32>
    %cst_183 = arith.constant 1.000000e+00 : f32
    %271 = vector.broadcast %cst_183 : f32 to vector<8x64xf32>
    %272 = arith.addf %271, %270 : vector<8x64xf32>
    %cst_184 = arith.constant 1.000000e+00 : f32
    %273 = vector.broadcast %cst_184 : f32 to vector<8x64xf32>
    %274 = arith.divf %273, %272 : vector<8x64xf32>
    %cst_185 = arith.constant 1.06140542 : f32
    %275 = vector.broadcast %cst_185 : f32 to vector<8x64xf32>
    %276 = arith.mulf %275, %274 : vector<8x64xf32>
    %cst_186 = arith.constant -1.45315206 : f32
    %277 = vector.broadcast %cst_186 : f32 to vector<8x64xf32>
    %278 = arith.addf %276, %277 : vector<8x64xf32>
    %279 = arith.mulf %278, %274 : vector<8x64xf32>
    %cst_187 = arith.constant 1.42141378 : f32
    %280 = vector.broadcast %cst_187 : f32 to vector<8x64xf32>
    %281 = arith.addf %279, %280 : vector<8x64xf32>
    %282 = arith.mulf %281, %274 : vector<8x64xf32>
    %cst_188 = arith.constant -0.284496725 : f32
    %283 = vector.broadcast %cst_188 : f32 to vector<8x64xf32>
    %284 = arith.addf %282, %283 : vector<8x64xf32>
    %285 = arith.mulf %284, %274 : vector<8x64xf32>
    %cst_189 = arith.constant 0.254829586 : f32
    %286 = vector.broadcast %cst_189 : f32 to vector<8x64xf32>
    %287 = arith.addf %285, %286 : vector<8x64xf32>
    %288 = arith.mulf %287, %274 : vector<8x64xf32>
    %cst_190 = arith.constant 0.000000e+00 : f32
    %289 = vector.broadcast %cst_190 : f32 to vector<8x64xf32>
    %290 = arith.subf %289, %268 : vector<8x64xf32>
    %291 = arith.mulf %290, %268 : vector<8x64xf32>
    %292 = math.exp %291 : vector<8x64xf32>
    %293 = arith.mulf %288, %292 : vector<8x64xf32>
    %cst_191 = arith.constant 1.000000e+00 : f32
    %294 = vector.broadcast %cst_191 : f32 to vector<8x64xf32>
    %295 = arith.subf %294, %293 : vector<8x64xf32>
    %cst_192 = arith.constant 0.000000e+00 : f32
    %296 = vector.broadcast %cst_192 : f32 to vector<8x64xf32>
    %297 = arith.cmpf oge, %267, %296 : vector<8x64xf32>
    %cst_193 = arith.constant 0.000000e+00 : f32
    %298 = vector.broadcast %cst_193 : f32 to vector<8x64xf32>
    %299 = arith.subf %298, %295 : vector<8x64xf32>
    %300 = arith.select %297, %295, %299 : vector<8x64xi1>, vector<8x64xf32>
    %cst_194 = arith.constant 1.000000e+00 : f32
    %301 = vector.broadcast %cst_194 : f32 to vector<8x64xf32>
    %302 = arith.addf %301, %300 : vector<8x64xf32>
    %303 = arith.mulf %265, %302 : vector<8x64xf32>
    %c0_195 = arith.constant 0 : index
    %c0_196 = arith.constant 0 : index
    %c0_197 = arith.constant 0 : index
    %304 = vector.load %arg17[%c0_195, %c0_196, %c0_197] : memref<2x64x32xbf16, #tpu.memory_space<vmem>>, vector<1x64x32xbf16>
    %305 = vector.shape_cast %304 : vector<1x64x32xbf16> to vector<64x32xbf16>
    %306 = arith.truncf %303 : vector<8x64xf32> to vector<8x64xbf16>
    %cst_198 = arith.constant dense<0.000000e+00> : vector<8x32xf32>
    %307 = tpu.matmul %306, %305, %cst_198 {dimension_numbers = #tpu.dot_dimension_numbers<[1], [0], [0], [1], [0, 0, 1, 1], [], []>} : vector<8x64xbf16>, vector<64x32xbf16>, vector<8x32xf32> -> vector<8x32xf32>
    %c0_199 = arith.constant 0 : index
    %c0_200 = arith.constant 0 : index
    %c0_201 = arith.constant 0 : index
    %308 = vector.load %arg18[%c0_199, %c0_200, %c0_201] : memref<2x1x32xf32, #tpu.memory_space<vmem>>, vector<1x1x32xf32>
    %309 = vector.shape_cast %308 : vector<1x1x32xf32> to vector<1x32xf32>
    %310 = vector.broadcast %309 : vector<1x32xf32> to vector<8x32xf32>
    %311 = arith.addf %307, %310 : vector<8x32xf32>
    %312 = arith.addf %311, %255 : vector<8x32xf32>
    %c0_202 = arith.constant 0 : index
    %c0_203 = arith.constant 0 : index
    %c0_204 = arith.constant 0 : index
    %313 = vector.load %arg19[%c0_202, %c0_203, %c0_204] : memref<2x1x32xf32, #tpu.memory_space<vmem>>, vector<1x1x32xf32>
    %314 = vector.shape_cast %313 : vector<1x1x32xf32> to vector<1x32xf32>
    %c0_205 = arith.constant 0 : index
    %c0_206 = arith.constant 0 : index
    %c0_207 = arith.constant 0 : index
    %315 = vector.load %arg20[%c0_205, %c0_206, %c0_207] : memref<2x1x32xf32, #tpu.memory_space<vmem>>, vector<1x1x32xf32>
    %316 = vector.shape_cast %315 : vector<1x1x32xf32> to vector<1x32xf32>
    %cst_208 = arith.constant dense<0.000000e+00> : vector<8xf32>
    %317 = vector.multi_reduction <add>, %312, %cst_208 [1] : vector<8x32xf32> to vector<8xf32>
    %318 = vector.shape_cast %317 : vector<8xf32> to vector<8x1xf32>
    %cst_209 = arith.constant 3.200000e+01 : f32
    %319 = vector.broadcast %cst_209 : f32 to vector<8x1xf32>
    %320 = arith.divf %318, %319 : vector<8x1xf32>
    %321 = vector.broadcast %320 : vector<8x1xf32> to vector<8x32xf32>
    %322 = arith.subf %312, %321 : vector<8x32xf32>
    %323 = arith.mulf %322, %322 : vector<8x32xf32>
    %cst_210 = arith.constant dense<0.000000e+00> : vector<8xf32>
    %324 = vector.multi_reduction <add>, %323, %cst_210 [1] : vector<8x32xf32> to vector<8xf32>
    %325 = vector.shape_cast %324 : vector<8xf32> to vector<8x1xf32>
    %cst_211 = arith.constant 3.200000e+01 : f32
    %326 = vector.broadcast %cst_211 : f32 to vector<8x1xf32>
    %327 = arith.divf %325, %326 : vector<8x1xf32>
    %328 = vector.broadcast %320 : vector<8x1xf32> to vector<8x32xf32>
    %329 = arith.subf %312, %328 : vector<8x32xf32>
    %cst_212 = arith.constant 9.99999996E-13 : f32
    %330 = vector.broadcast %cst_212 : f32 to vector<8x1xf32>
    %331 = arith.addf %327, %330 : vector<8x1xf32>
    %332 = math.rsqrt %331 : vector<8x1xf32>
    %333 = vector.broadcast %332 : vector<8x1xf32> to vector<8x32xf32>
    %334 = arith.mulf %329, %333 : vector<8x32xf32>
    %335 = vector.broadcast %314 : vector<1x32xf32> to vector<8x32xf32>
    %336 = arith.mulf %334, %335 : vector<8x32xf32>
    %337 = vector.broadcast %316 : vector<1x32xf32> to vector<8x32xf32>
    %338 = arith.addf %336, %337 : vector<8x32xf32>
    %cst_213 = arith.constant 0.000000e+00 : f32
    %339 = vector.broadcast %cst_213 : f32 to vector<8x32xf32>
    %c1_214 = arith.constant 1 : index
    %c0_215 = arith.constant 0 : index
    %c0_216 = arith.constant 0 : index
    %c0_217 = arith.constant 0 : index
    %340 = vector.load %arg5[%c1_214, %c0_215, %c0_216, %c0_217] : memref<2x4x32x8xbf16, #tpu.memory_space<vmem>>, vector<1x1x32x8xbf16>
    %341 = vector.shape_cast %340 : vector<1x1x32x8xbf16> to vector<32x8xbf16>
    %342 = arith.truncf %338 : vector<8x32xf32> to vector<8x32xbf16>
    %cst_218 = arith.constant dense<0.000000e+00> : vector<8x8xf32>
    %343 = tpu.matmul %342, %341, %cst_218 {dimension_numbers = #tpu.dot_dimension_numbers<[1], [0], [0], [1], [0, 0, 1, 1], [], []>} : vector<8x32xbf16>, vector<32x8xbf16>, vector<8x8xf32> -> vector<8x8xf32>
    %c1_219 = arith.constant 1 : index
    %c0_220 = arith.constant 0 : index
    %c0_221 = arith.constant 0 : index
    %c0_222 = arith.constant 0 : index
    %344 = vector.load %arg6[%c1_219, %c0_220, %c0_221, %c0_222] : memref<2x4x1x8xf32, #tpu.memory_space<vmem>>, vector<1x1x1x8xf32>
    %345 = vector.shape_cast %344 : vector<1x1x1x8xf32> to vector<1x8xf32>
    %346 = vector.broadcast %345 : vector<1x8xf32> to vector<8x8xf32>
    %347 = arith.addf %343, %346 : vector<8x8xf32>
    %cst_223 = arith.constant 0.353553385 : f32
    %348 = vector.broadcast %cst_223 : f32 to vector<8x8xf32>
    %349 = arith.mulf %347, %348 : vector<8x8xf32>
    %c1_224 = arith.constant 1 : index
    %c0_225 = arith.constant 0 : index
    %c0_226 = arith.constant 0 : index
    %c0_227 = arith.constant 0 : index
    %350 = vector.load %arg7[%c1_224, %c0_225, %c0_226, %c0_227] : memref<2x4x32x8xbf16, #tpu.memory_space<vmem>>, vector<1x1x32x8xbf16>
    %351 = vector.shape_cast %350 : vector<1x1x32x8xbf16> to vector<32x8xbf16>
    %352 = arith.truncf %338 : vector<8x32xf32> to vector<8x32xbf16>
    %cst_228 = arith.constant dense<0.000000e+00> : vector<8x8xf32>
    %353 = tpu.matmul %352, %351, %cst_228 {dimension_numbers = #tpu.dot_dimension_numbers<[1], [0], [0], [1], [0, 0, 1, 1], [], []>} : vector<8x32xbf16>, vector<32x8xbf16>, vector<8x8xf32> -> vector<8x8xf32>
    %c1_229 = arith.constant 1 : index
    %c0_230 = arith.constant 0 : index
    %c0_231 = arith.constant 0 : index
    %c0_232 = arith.constant 0 : index
    %354 = vector.load %arg8[%c1_229, %c0_230, %c0_231, %c0_232] : memref<2x4x1x8xf32, #tpu.memory_space<vmem>>, vector<1x1x1x8xf32>
    %355 = vector.shape_cast %354 : vector<1x1x1x8xf32> to vector<1x8xf32>
    %356 = vector.broadcast %355 : vector<1x8xf32> to vector<8x8xf32>
    %357 = arith.addf %353, %356 : vector<8x8xf32>
    %c1_233 = arith.constant 1 : index
    %c0_234 = arith.constant 0 : index
    %c0_235 = arith.constant 0 : index
    %c0_236 = arith.constant 0 : index
    %358 = vector.load %arg9[%c1_233, %c0_234, %c0_235, %c0_236] : memref<2x4x32x8xbf16, #tpu.memory_space<vmem>>, vector<1x1x32x8xbf16>
    %359 = vector.shape_cast %358 : vector<1x1x32x8xbf16> to vector<32x8xbf16>
    %360 = arith.truncf %338 : vector<8x32xf32> to vector<8x32xbf16>
    %cst_237 = arith.constant dense<0.000000e+00> : vector<8x8xf32>
    %361 = tpu.matmul %360, %359, %cst_237 {dimension_numbers = #tpu.dot_dimension_numbers<[1], [0], [0], [1], [0, 0, 1, 1], [], []>} : vector<8x32xbf16>, vector<32x8xbf16>, vector<8x8xf32> -> vector<8x8xf32>
    %c1_238 = arith.constant 1 : index
    %c0_239 = arith.constant 0 : index
    %c0_240 = arith.constant 0 : index
    %c0_241 = arith.constant 0 : index
    %362 = vector.load %arg10[%c1_238, %c0_239, %c0_240, %c0_241] : memref<2x4x1x8xf32, #tpu.memory_space<vmem>>, vector<1x1x1x8xf32>
    %363 = vector.shape_cast %362 : vector<1x1x1x8xf32> to vector<1x8xf32>
    %364 = vector.broadcast %363 : vector<1x8xf32> to vector<8x8xf32>
    %365 = arith.addf %361, %364 : vector<8x8xf32>
    %366 = arith.truncf %349 : vector<8x8xf32> to vector<8x8xbf16>
    %367 = arith.truncf %357 : vector<8x8xf32> to vector<8x8xbf16>
    "tpu.trace_start"() <{level = 10 : i32, message = "qd,kd->qk"}> : () -> ()
    %cst_242 = arith.constant dense<0.000000e+00> : vector<8x8xf32>
    %368 = tpu.matmul %366, %367, %cst_242 {dimension_numbers = #tpu.dot_dimension_numbers<[1], [1], [0], [0], [0, 0, 1, 0], [], []>} : vector<8x8xbf16>, vector<8x8xbf16>, vector<8x8xf32> -> vector<8x8xf32>
    "tpu.trace_stop"() : () -> ()
    %369 = vector.broadcast %1 : vector<1x8xf32> to vector<8x8xf32>
    %370 = arith.addf %368, %369 : vector<8x8xf32>
    %cst_243 = arith.constant dense<0xFF800000> : vector<8xf32>
    %371 = vector.multi_reduction <maximumf>, %370, %cst_243 [1] : vector<8x8xf32> to vector<8xf32>
    %372 = vector.shape_cast %371 : vector<8xf32> to vector<8x1xf32>
    %373 = vector.broadcast %372 : vector<8x1xf32> to vector<8x8xf32>
    %374 = arith.subf %370, %373 : vector<8x8xf32>
    %375 = math.exp %374 : vector<8x8xf32>
    %cst_244 = arith.constant dense<0.000000e+00> : vector<8xf32>
    %376 = vector.multi_reduction <add>, %375, %cst_244 [1] : vector<8x8xf32> to vector<8xf32>
    %377 = vector.shape_cast %376 : vector<8xf32> to vector<8x1xf32>
    %378 = tpu.reciprocal %377 {approx = true} : vector<8x1xf32> -> vector<8x1xf32>
    %379 = vector.broadcast %378 : vector<8x1xf32> to vector<8x8xf32>
    %380 = arith.mulf %375, %379 : vector<8x8xf32>
    %381 = arith.truncf %365 : vector<8x8xf32> to vector<8x8xbf16>
    %382 = arith.truncf %380 : vector<8x8xf32> to vector<8x8xbf16>
    %cst_245 = arith.constant dense<0.000000e+00> : vector<8x8xf32>
    %383 = tpu.matmul %382, %381, %cst_245 {dimension_numbers = #tpu.dot_dimension_numbers<[1], [0], [0], [1], [0, 0, 1, 1], [], []>} : vector<8x8xbf16>, vector<8x8xbf16>, vector<8x8xf32> -> vector<8x8xf32>
    %c1_246 = arith.constant 1 : index
    %c0_247 = arith.constant 0 : index
    %c0_248 = arith.constant 0 : index
    %c0_249 = arith.constant 0 : index
    %384 = vector.load %arg11[%c1_246, %c0_247, %c0_248, %c0_249] : memref<2x4x8x32xbf16, #tpu.memory_space<vmem>>, vector<1x1x8x32xbf16>
    %385 = vector.shape_cast %384 : vector<1x1x8x32xbf16> to vector<8x32xbf16>
    %386 = arith.truncf %383 : vector<8x8xf32> to vector<8x8xbf16>
    %cst_250 = arith.constant dense<0.000000e+00> : vector<8x32xf32>
    %387 = tpu.matmul %386, %385, %cst_250 {dimension_numbers = #tpu.dot_dimension_numbers<[1], [0], [0], [1], [0, 0, 1, 1], [], []>} : vector<8x8xbf16>, vector<8x32xbf16>, vector<8x32xf32> -> vector<8x32xf32>
    %388 = arith.addf %339, %387 : vector<8x32xf32>
    %c1_251 = arith.constant 1 : index
    %c1_252 = arith.constant 1 : index
    %c0_253 = arith.constant 0 : index
    %c0_254 = arith.constant 0 : index
    %389 = vector.load %arg5[%c1_251, %c1_252, %c0_253, %c0_254] : memref<2x4x32x8xbf16, #tpu.memory_space<vmem>>, vector<1x1x32x8xbf16>
    %390 = vector.shape_cast %389 : vector<1x1x32x8xbf16> to vector<32x8xbf16>
    %391 = arith.truncf %338 : vector<8x32xf32> to vector<8x32xbf16>
    %cst_255 = arith.constant dense<0.000000e+00> : vector<8x8xf32>
    %392 = tpu.matmul %391, %390, %cst_255 {dimension_numbers = #tpu.dot_dimension_numbers<[1], [0], [0], [1], [0, 0, 1, 1], [], []>} : vector<8x32xbf16>, vector<32x8xbf16>, vector<8x8xf32> -> vector<8x8xf32>
    %c1_256 = arith.constant 1 : index
    %c1_257 = arith.constant 1 : index
    %c0_258 = arith.constant 0 : index
    %c0_259 = arith.constant 0 : index
    %393 = vector.load %arg6[%c1_256, %c1_257, %c0_258, %c0_259] : memref<2x4x1x8xf32, #tpu.memory_space<vmem>>, vector<1x1x1x8xf32>
    %394 = vector.shape_cast %393 : vector<1x1x1x8xf32> to vector<1x8xf32>
    %395 = vector.broadcast %394 : vector<1x8xf32> to vector<8x8xf32>
    %396 = arith.addf %392, %395 : vector<8x8xf32>
    %cst_260 = arith.constant 0.353553385 : f32
    %397 = vector.broadcast %cst_260 : f32 to vector<8x8xf32>
    %398 = arith.mulf %396, %397 : vector<8x8xf32>
    %c1_261 = arith.constant 1 : index
    %c1_262 = arith.constant 1 : index
    %c0_263 = arith.constant 0 : index
    %c0_264 = arith.constant 0 : index
    %399 = vector.load %arg7[%c1_261, %c1_262, %c0_263, %c0_264] : memref<2x4x32x8xbf16, #tpu.memory_space<vmem>>, vector<1x1x32x8xbf16>
    %400 = vector.shape_cast %399 : vector<1x1x32x8xbf16> to vector<32x8xbf16>
    %401 = arith.truncf %338 : vector<8x32xf32> to vector<8x32xbf16>
    %cst_265 = arith.constant dense<0.000000e+00> : vector<8x8xf32>
    %402 = tpu.matmul %401, %400, %cst_265 {dimension_numbers = #tpu.dot_dimension_numbers<[1], [0], [0], [1], [0, 0, 1, 1], [], []>} : vector<8x32xbf16>, vector<32x8xbf16>, vector<8x8xf32> -> vector<8x8xf32>
    %c1_266 = arith.constant 1 : index
    %c1_267 = arith.constant 1 : index
    %c0_268 = arith.constant 0 : index
    %c0_269 = arith.constant 0 : index
    %403 = vector.load %arg8[%c1_266, %c1_267, %c0_268, %c0_269] : memref<2x4x1x8xf32, #tpu.memory_space<vmem>>, vector<1x1x1x8xf32>
    %404 = vector.shape_cast %403 : vector<1x1x1x8xf32> to vector<1x8xf32>
    %405 = vector.broadcast %404 : vector<1x8xf32> to vector<8x8xf32>
    %406 = arith.addf %402, %405 : vector<8x8xf32>
    %c1_270 = arith.constant 1 : index
    %c1_271 = arith.constant 1 : index
    %c0_272 = arith.constant 0 : index
    %c0_273 = arith.constant 0 : index
    %407 = vector.load %arg9[%c1_270, %c1_271, %c0_272, %c0_273] : memref<2x4x32x8xbf16, #tpu.memory_space<vmem>>, vector<1x1x32x8xbf16>
    %408 = vector.shape_cast %407 : vector<1x1x32x8xbf16> to vector<32x8xbf16>
    %409 = arith.truncf %338 : vector<8x32xf32> to vector<8x32xbf16>
    %cst_274 = arith.constant dense<0.000000e+00> : vector<8x8xf32>
    %410 = tpu.matmul %409, %408, %cst_274 {dimension_numbers = #tpu.dot_dimension_numbers<[1], [0], [0], [1], [0, 0, 1, 1], [], []>} : vector<8x32xbf16>, vector<32x8xbf16>, vector<8x8xf32> -> vector<8x8xf32>
    %c1_275 = arith.constant 1 : index
    %c1_276 = arith.constant 1 : index
    %c0_277 = arith.constant 0 : index
    %c0_278 = arith.constant 0 : index
    %411 = vector.load %arg10[%c1_275, %c1_276, %c0_277, %c0_278] : memref<2x4x1x8xf32, #tpu.memory_space<vmem>>, vector<1x1x1x8xf32>
    %412 = vector.shape_cast %411 : vector<1x1x1x8xf32> to vector<1x8xf32>
    %413 = vector.broadcast %412 : vector<1x8xf32> to vector<8x8xf32>
    %414 = arith.addf %410, %413 : vector<8x8xf32>
    %415 = arith.truncf %398 : vector<8x8xf32> to vector<8x8xbf16>
    %416 = arith.truncf %406 : vector<8x8xf32> to vector<8x8xbf16>
    "tpu.trace_start"() <{level = 10 : i32, message = "qd,kd->qk"}> : () -> ()
    %cst_279 = arith.constant dense<0.000000e+00> : vector<8x8xf32>
    %417 = tpu.matmul %415, %416, %cst_279 {dimension_numbers = #tpu.dot_dimension_numbers<[1], [1], [0], [0], [0, 0, 1, 0], [], []>} : vector<8x8xbf16>, vector<8x8xbf16>, vector<8x8xf32> -> vector<8x8xf32>
    "tpu.trace_stop"() : () -> ()
    %418 = vector.broadcast %1 : vector<1x8xf32> to vector<8x8xf32>
    %419 = arith.addf %417, %418 : vector<8x8xf32>
    %cst_280 = arith.constant dense<0xFF800000> : vector<8xf32>
    %420 = vector.multi_reduction <maximumf>, %419, %cst_280 [1] : vector<8x8xf32> to vector<8xf32>
    %421 = vector.shape_cast %420 : vector<8xf32> to vector<8x1xf32>
    %422 = vector.broadcast %421 : vector<8x1xf32> to vector<8x8xf32>
    %423 = arith.subf %419, %422 : vector<8x8xf32>
    %424 = math.exp %423 : vector<8x8xf32>
    %cst_281 = arith.constant dense<0.000000e+00> : vector<8xf32>
    %425 = vector.multi_reduction <add>, %424, %cst_281 [1] : vector<8x8xf32> to vector<8xf32>
    %426 = vector.shape_cast %425 : vector<8xf32> to vector<8x1xf32>
    %427 = tpu.reciprocal %426 {approx = true} : vector<8x1xf32> -> vector<8x1xf32>
    %428 = vector.broadcast %427 : vector<8x1xf32> to vector<8x8xf32>
    %429 = arith.mulf %424, %428 : vector<8x8xf32>
    %430 = arith.truncf %414 : vector<8x8xf32> to vector<8x8xbf16>
    %431 = arith.truncf %429 : vector<8x8xf32> to vector<8x8xbf16>
    %cst_282 = arith.constant dense<0.000000e+00> : vector<8x8xf32>
    %432 = tpu.matmul %431, %430, %cst_282 {dimension_numbers = #tpu.dot_dimension_numbers<[1], [0], [0], [1], [0, 0, 1, 1], [], []>} : vector<8x8xbf16>, vector<8x8xbf16>, vector<8x8xf32> -> vector<8x8xf32>
    %c1_283 = arith.constant 1 : index
    %c1_284 = arith.constant 1 : index
    %c0_285 = arith.constant 0 : index
    %c0_286 = arith.constant 0 : index
    %433 = vector.load %arg11[%c1_283, %c1_284, %c0_285, %c0_286] : memref<2x4x8x32xbf16, #tpu.memory_space<vmem>>, vector<1x1x8x32xbf16>
    %434 = vector.shape_cast %433 : vector<1x1x8x32xbf16> to vector<8x32xbf16>
    %435 = arith.truncf %432 : vector<8x8xf32> to vector<8x8xbf16>
    %cst_287 = arith.constant dense<0.000000e+00> : vector<8x32xf32>
    %436 = tpu.matmul %435, %434, %cst_287 {dimension_numbers = #tpu.dot_dimension_numbers<[1], [0], [0], [1], [0, 0, 1, 1], [], []>} : vector<8x8xbf16>, vector<8x32xbf16>, vector<8x32xf32> -> vector<8x32xf32>
    %437 = arith.addf %388, %436 : vector<8x32xf32>
    %c1_288 = arith.constant 1 : index
    %c2_289 = arith.constant 2 : index
    %c0_290 = arith.constant 0 : index
    %c0_291 = arith.constant 0 : index
    %438 = vector.load %arg5[%c1_288, %c2_289, %c0_290, %c0_291] : memref<2x4x32x8xbf16, #tpu.memory_space<vmem>>, vector<1x1x32x8xbf16>
    %439 = vector.shape_cast %438 : vector<1x1x32x8xbf16> to vector<32x8xbf16>
    %440 = arith.truncf %338 : vector<8x32xf32> to vector<8x32xbf16>
    %cst_292 = arith.constant dense<0.000000e+00> : vector<8x8xf32>
    %441 = tpu.matmul %440, %439, %cst_292 {dimension_numbers = #tpu.dot_dimension_numbers<[1], [0], [0], [1], [0, 0, 1, 1], [], []>} : vector<8x32xbf16>, vector<32x8xbf16>, vector<8x8xf32> -> vector<8x8xf32>
    %c1_293 = arith.constant 1 : index
    %c2_294 = arith.constant 2 : index
    %c0_295 = arith.constant 0 : index
    %c0_296 = arith.constant 0 : index
    %442 = vector.load %arg6[%c1_293, %c2_294, %c0_295, %c0_296] : memref<2x4x1x8xf32, #tpu.memory_space<vmem>>, vector<1x1x1x8xf32>
    %443 = vector.shape_cast %442 : vector<1x1x1x8xf32> to vector<1x8xf32>
    %444 = vector.broadcast %443 : vector<1x8xf32> to vector<8x8xf32>
    %445 = arith.addf %441, %444 : vector<8x8xf32>
    %cst_297 = arith.constant 0.353553385 : f32
    %446 = vector.broadcast %cst_297 : f32 to vector<8x8xf32>
    %447 = arith.mulf %445, %446 : vector<8x8xf32>
    %c1_298 = arith.constant 1 : index
    %c2_299 = arith.constant 2 : index
    %c0_300 = arith.constant 0 : index
    %c0_301 = arith.constant 0 : index
    %448 = vector.load %arg7[%c1_298, %c2_299, %c0_300, %c0_301] : memref<2x4x32x8xbf16, #tpu.memory_space<vmem>>, vector<1x1x32x8xbf16>
    %449 = vector.shape_cast %448 : vector<1x1x32x8xbf16> to vector<32x8xbf16>
    %450 = arith.truncf %338 : vector<8x32xf32> to vector<8x32xbf16>
    %cst_302 = arith.constant dense<0.000000e+00> : vector<8x8xf32>
    %451 = tpu.matmul %450, %449, %cst_302 {dimension_numbers = #tpu.dot_dimension_numbers<[1], [0], [0], [1], [0, 0, 1, 1], [], []>} : vector<8x32xbf16>, vector<32x8xbf16>, vector<8x8xf32> -> vector<8x8xf32>
    %c1_303 = arith.constant 1 : index
    %c2_304 = arith.constant 2 : index
    %c0_305 = arith.constant 0 : index
    %c0_306 = arith.constant 0 : index
    %452 = vector.load %arg8[%c1_303, %c2_304, %c0_305, %c0_306] : memref<2x4x1x8xf32, #tpu.memory_space<vmem>>, vector<1x1x1x8xf32>
    %453 = vector.shape_cast %452 : vector<1x1x1x8xf32> to vector<1x8xf32>
    %454 = vector.broadcast %453 : vector<1x8xf32> to vector<8x8xf32>
    %455 = arith.addf %451, %454 : vector<8x8xf32>
    %c1_307 = arith.constant 1 : index
    %c2_308 = arith.constant 2 : index
    %c0_309 = arith.constant 0 : index
    %c0_310 = arith.constant 0 : index
    %456 = vector.load %arg9[%c1_307, %c2_308, %c0_309, %c0_310] : memref<2x4x32x8xbf16, #tpu.memory_space<vmem>>, vector<1x1x32x8xbf16>
    %457 = vector.shape_cast %456 : vector<1x1x32x8xbf16> to vector<32x8xbf16>
    %458 = arith.truncf %338 : vector<8x32xf32> to vector<8x32xbf16>
    %cst_311 = arith.constant dense<0.000000e+00> : vector<8x8xf32>
    %459 = tpu.matmul %458, %457, %cst_311 {dimension_numbers = #tpu.dot_dimension_numbers<[1], [0], [0], [1], [0, 0, 1, 1], [], []>} : vector<8x32xbf16>, vector<32x8xbf16>, vector<8x8xf32> -> vector<8x8xf32>
    %c1_312 = arith.constant 1 : index
    %c2_313 = arith.constant 2 : index
    %c0_314 = arith.constant 0 : index
    %c0_315 = arith.constant 0 : index
    %460 = vector.load %arg10[%c1_312, %c2_313, %c0_314, %c0_315] : memref<2x4x1x8xf32, #tpu.memory_space<vmem>>, vector<1x1x1x8xf32>
    %461 = vector.shape_cast %460 : vector<1x1x1x8xf32> to vector<1x8xf32>
    %462 = vector.broadcast %461 : vector<1x8xf32> to vector<8x8xf32>
    %463 = arith.addf %459, %462 : vector<8x8xf32>
    %464 = arith.truncf %447 : vector<8x8xf32> to vector<8x8xbf16>
    %465 = arith.truncf %455 : vector<8x8xf32> to vector<8x8xbf16>
    "tpu.trace_start"() <{level = 10 : i32, message = "qd,kd->qk"}> : () -> ()
    %cst_316 = arith.constant dense<0.000000e+00> : vector<8x8xf32>
    %466 = tpu.matmul %464, %465, %cst_316 {dimension_numbers = #tpu.dot_dimension_numbers<[1], [1], [0], [0], [0, 0, 1, 0], [], []>} : vector<8x8xbf16>, vector<8x8xbf16>, vector<8x8xf32> -> vector<8x8xf32>
    "tpu.trace_stop"() : () -> ()
    %467 = vector.broadcast %1 : vector<1x8xf32> to vector<8x8xf32>
    %468 = arith.addf %466, %467 : vector<8x8xf32>
    %cst_317 = arith.constant dense<0xFF800000> : vector<8xf32>
    %469 = vector.multi_reduction <maximumf>, %468, %cst_317 [1] : vector<8x8xf32> to vector<8xf32>
    %470 = vector.shape_cast %469 : vector<8xf32> to vector<8x1xf32>
    %471 = vector.broadcast %470 : vector<8x1xf32> to vector<8x8xf32>
    %472 = arith.subf %468, %471 : vector<8x8xf32>
    %473 = math.exp %472 : vector<8x8xf32>
    %cst_318 = arith.constant dense<0.000000e+00> : vector<8xf32>
    %474 = vector.multi_reduction <add>, %473, %cst_318 [1] : vector<8x8xf32> to vector<8xf32>
    %475 = vector.shape_cast %474 : vector<8xf32> to vector<8x1xf32>
    %476 = tpu.reciprocal %475 {approx = true} : vector<8x1xf32> -> vector<8x1xf32>
    %477 = vector.broadcast %476 : vector<8x1xf32> to vector<8x8xf32>
    %478 = arith.mulf %473, %477 : vector<8x8xf32>
    %479 = arith.truncf %463 : vector<8x8xf32> to vector<8x8xbf16>
    %480 = arith.truncf %478 : vector<8x8xf32> to vector<8x8xbf16>
    %cst_319 = arith.constant dense<0.000000e+00> : vector<8x8xf32>
    %481 = tpu.matmul %480, %479, %cst_319 {dimension_numbers = #tpu.dot_dimension_numbers<[1], [0], [0], [1], [0, 0, 1, 1], [], []>} : vector<8x8xbf16>, vector<8x8xbf16>, vector<8x8xf32> -> vector<8x8xf32>
    %c1_320 = arith.constant 1 : index
    %c2_321 = arith.constant 2 : index
    %c0_322 = arith.constant 0 : index
    %c0_323 = arith.constant 0 : index
    %482 = vector.load %arg11[%c1_320, %c2_321, %c0_322, %c0_323] : memref<2x4x8x32xbf16, #tpu.memory_space<vmem>>, vector<1x1x8x32xbf16>
    %483 = vector.shape_cast %482 : vector<1x1x8x32xbf16> to vector<8x32xbf16>
    %484 = arith.truncf %481 : vector<8x8xf32> to vector<8x8xbf16>
    %cst_324 = arith.constant dense<0.000000e+00> : vector<8x32xf32>
    %485 = tpu.matmul %484, %483, %cst_324 {dimension_numbers = #tpu.dot_dimension_numbers<[1], [0], [0], [1], [0, 0, 1, 1], [], []>} : vector<8x8xbf16>, vector<8x32xbf16>, vector<8x32xf32> -> vector<8x32xf32>
    %486 = arith.addf %437, %485 : vector<8x32xf32>
    %c1_325 = arith.constant 1 : index
    %c3_326 = arith.constant 3 : index
    %c0_327 = arith.constant 0 : index
    %c0_328 = arith.constant 0 : index
    %487 = vector.load %arg5[%c1_325, %c3_326, %c0_327, %c0_328] : memref<2x4x32x8xbf16, #tpu.memory_space<vmem>>, vector<1x1x32x8xbf16>
    %488 = vector.shape_cast %487 : vector<1x1x32x8xbf16> to vector<32x8xbf16>
    %489 = arith.truncf %338 : vector<8x32xf32> to vector<8x32xbf16>
    %cst_329 = arith.constant dense<0.000000e+00> : vector<8x8xf32>
    %490 = tpu.matmul %489, %488, %cst_329 {dimension_numbers = #tpu.dot_dimension_numbers<[1], [0], [0], [1], [0, 0, 1, 1], [], []>} : vector<8x32xbf16>, vector<32x8xbf16>, vector<8x8xf32> -> vector<8x8xf32>
    %c1_330 = arith.constant 1 : index
    %c3_331 = arith.constant 3 : index
    %c0_332 = arith.constant 0 : index
    %c0_333 = arith.constant 0 : index
    %491 = vector.load %arg6[%c1_330, %c3_331, %c0_332, %c0_333] : memref<2x4x1x8xf32, #tpu.memory_space<vmem>>, vector<1x1x1x8xf32>
    %492 = vector.shape_cast %491 : vector<1x1x1x8xf32> to vector<1x8xf32>
    %493 = vector.broadcast %492 : vector<1x8xf32> to vector<8x8xf32>
    %494 = arith.addf %490, %493 : vector<8x8xf32>
    %cst_334 = arith.constant 0.353553385 : f32
    %495 = vector.broadcast %cst_334 : f32 to vector<8x8xf32>
    %496 = arith.mulf %494, %495 : vector<8x8xf32>
    %c1_335 = arith.constant 1 : index
    %c3_336 = arith.constant 3 : index
    %c0_337 = arith.constant 0 : index
    %c0_338 = arith.constant 0 : index
    %497 = vector.load %arg7[%c1_335, %c3_336, %c0_337, %c0_338] : memref<2x4x32x8xbf16, #tpu.memory_space<vmem>>, vector<1x1x32x8xbf16>
    %498 = vector.shape_cast %497 : vector<1x1x32x8xbf16> to vector<32x8xbf16>
    %499 = arith.truncf %338 : vector<8x32xf32> to vector<8x32xbf16>
    %cst_339 = arith.constant dense<0.000000e+00> : vector<8x8xf32>
    %500 = tpu.matmul %499, %498, %cst_339 {dimension_numbers = #tpu.dot_dimension_numbers<[1], [0], [0], [1], [0, 0, 1, 1], [], []>} : vector<8x32xbf16>, vector<32x8xbf16>, vector<8x8xf32> -> vector<8x8xf32>
    %c1_340 = arith.constant 1 : index
    %c3_341 = arith.constant 3 : index
    %c0_342 = arith.constant 0 : index
    %c0_343 = arith.constant 0 : index
    %501 = vector.load %arg8[%c1_340, %c3_341, %c0_342, %c0_343] : memref<2x4x1x8xf32, #tpu.memory_space<vmem>>, vector<1x1x1x8xf32>
    %502 = vector.shape_cast %501 : vector<1x1x1x8xf32> to vector<1x8xf32>
    %503 = vector.broadcast %502 : vector<1x8xf32> to vector<8x8xf32>
    %504 = arith.addf %500, %503 : vector<8x8xf32>
    %c1_344 = arith.constant 1 : index
    %c3_345 = arith.constant 3 : index
    %c0_346 = arith.constant 0 : index
    %c0_347 = arith.constant 0 : index
    %505 = vector.load %arg9[%c1_344, %c3_345, %c0_346, %c0_347] : memref<2x4x32x8xbf16, #tpu.memory_space<vmem>>, vector<1x1x32x8xbf16>
    %506 = vector.shape_cast %505 : vector<1x1x32x8xbf16> to vector<32x8xbf16>
    %507 = arith.truncf %338 : vector<8x32xf32> to vector<8x32xbf16>
    %cst_348 = arith.constant dense<0.000000e+00> : vector<8x8xf32>
    %508 = tpu.matmul %507, %506, %cst_348 {dimension_numbers = #tpu.dot_dimension_numbers<[1], [0], [0], [1], [0, 0, 1, 1], [], []>} : vector<8x32xbf16>, vector<32x8xbf16>, vector<8x8xf32> -> vector<8x8xf32>
    %c1_349 = arith.constant 1 : index
    %c3_350 = arith.constant 3 : index
    %c0_351 = arith.constant 0 : index
    %c0_352 = arith.constant 0 : index
    %509 = vector.load %arg10[%c1_349, %c3_350, %c0_351, %c0_352] : memref<2x4x1x8xf32, #tpu.memory_space<vmem>>, vector<1x1x1x8xf32>
    %510 = vector.shape_cast %509 : vector<1x1x1x8xf32> to vector<1x8xf32>
    %511 = vector.broadcast %510 : vector<1x8xf32> to vector<8x8xf32>
    %512 = arith.addf %508, %511 : vector<8x8xf32>
    %513 = arith.truncf %496 : vector<8x8xf32> to vector<8x8xbf16>
    %514 = arith.truncf %504 : vector<8x8xf32> to vector<8x8xbf16>
    "tpu.trace_start"() <{level = 10 : i32, message = "qd,kd->qk"}> : () -> ()
    %cst_353 = arith.constant dense<0.000000e+00> : vector<8x8xf32>
    %515 = tpu.matmul %513, %514, %cst_353 {dimension_numbers = #tpu.dot_dimension_numbers<[1], [1], [0], [0], [0, 0, 1, 0], [], []>} : vector<8x8xbf16>, vector<8x8xbf16>, vector<8x8xf32> -> vector<8x8xf32>
    "tpu.trace_stop"() : () -> ()
    %516 = vector.broadcast %1 : vector<1x8xf32> to vector<8x8xf32>
    %517 = arith.addf %515, %516 : vector<8x8xf32>
    %cst_354 = arith.constant dense<0xFF800000> : vector<8xf32>
    %518 = vector.multi_reduction <maximumf>, %517, %cst_354 [1] : vector<8x8xf32> to vector<8xf32>
    %519 = vector.shape_cast %518 : vector<8xf32> to vector<8x1xf32>
    %520 = vector.broadcast %519 : vector<8x1xf32> to vector<8x8xf32>
    %521 = arith.subf %517, %520 : vector<8x8xf32>
    %522 = math.exp %521 : vector<8x8xf32>
    %cst_355 = arith.constant dense<0.000000e+00> : vector<8xf32>
    %523 = vector.multi_reduction <add>, %522, %cst_355 [1] : vector<8x8xf32> to vector<8xf32>
    %524 = vector.shape_cast %523 : vector<8xf32> to vector<8x1xf32>
    %525 = tpu.reciprocal %524 {approx = true} : vector<8x1xf32> -> vector<8x1xf32>
    %526 = vector.broadcast %525 : vector<8x1xf32> to vector<8x8xf32>
    %527 = arith.mulf %522, %526 : vector<8x8xf32>
    %528 = arith.truncf %512 : vector<8x8xf32> to vector<8x8xbf16>
    %529 = arith.truncf %527 : vector<8x8xf32> to vector<8x8xbf16>
    %cst_356 = arith.constant dense<0.000000e+00> : vector<8x8xf32>
    %530 = tpu.matmul %529, %528, %cst_356 {dimension_numbers = #tpu.dot_dimension_numbers<[1], [0], [0], [1], [0, 0, 1, 1], [], []>} : vector<8x8xbf16>, vector<8x8xbf16>, vector<8x8xf32> -> vector<8x8xf32>
    %c1_357 = arith.constant 1 : index
    %c3_358 = arith.constant 3 : index
    %c0_359 = arith.constant 0 : index
    %c0_360 = arith.constant 0 : index
    %531 = vector.load %arg11[%c1_357, %c3_358, %c0_359, %c0_360] : memref<2x4x8x32xbf16, #tpu.memory_space<vmem>>, vector<1x1x8x32xbf16>
    %532 = vector.shape_cast %531 : vector<1x1x8x32xbf16> to vector<8x32xbf16>
    %533 = arith.truncf %530 : vector<8x8xf32> to vector<8x8xbf16>
    %cst_361 = arith.constant dense<0.000000e+00> : vector<8x32xf32>
    %534 = tpu.matmul %533, %532, %cst_361 {dimension_numbers = #tpu.dot_dimension_numbers<[1], [0], [0], [1], [0, 0, 1, 1], [], []>} : vector<8x8xbf16>, vector<8x32xbf16>, vector<8x32xf32> -> vector<8x32xf32>
    %535 = arith.addf %486, %534 : vector<8x32xf32>
    %c1_362 = arith.constant 1 : index
    %c0_363 = arith.constant 0 : index
    %c0_364 = arith.constant 0 : index
    %536 = vector.load %arg12[%c1_362, %c0_363, %c0_364] : memref<2x1x32xf32, #tpu.memory_space<vmem>>, vector<1x1x32xf32>
    %537 = vector.shape_cast %536 : vector<1x1x32xf32> to vector<1x32xf32>
    %538 = vector.broadcast %537 : vector<1x32xf32> to vector<8x32xf32>
    %539 = arith.addf %535, %538 : vector<8x32xf32>
    %540 = arith.addf %539, %338 : vector<8x32xf32>
    %c1_365 = arith.constant 1 : index
    %c0_366 = arith.constant 0 : index
    %c0_367 = arith.constant 0 : index
    %541 = vector.load %arg13[%c1_365, %c0_366, %c0_367] : memref<2x1x32xf32, #tpu.memory_space<vmem>>, vector<1x1x32xf32>
    %542 = vector.shape_cast %541 : vector<1x1x32xf32> to vector<1x32xf32>
    %c1_368 = arith.constant 1 : index
    %c0_369 = arith.constant 0 : index
    %c0_370 = arith.constant 0 : index
    %543 = vector.load %arg14[%c1_368, %c0_369, %c0_370] : memref<2x1x32xf32, #tpu.memory_space<vmem>>, vector<1x1x32xf32>
    %544 = vector.shape_cast %543 : vector<1x1x32xf32> to vector<1x32xf32>
    %cst_371 = arith.constant dense<0.000000e+00> : vector<8xf32>
    %545 = vector.multi_reduction <add>, %540, %cst_371 [1] : vector<8x32xf32> to vector<8xf32>
    %546 = vector.shape_cast %545 : vector<8xf32> to vector<8x1xf32>
    %cst_372 = arith.constant 3.200000e+01 : f32
    %547 = vector.broadcast %cst_372 : f32 to vector<8x1xf32>
    %548 = arith.divf %546, %547 : vector<8x1xf32>
    %549 = vector.broadcast %548 : vector<8x1xf32> to vector<8x32xf32>
    %550 = arith.subf %540, %549 : vector<8x32xf32>
    %551 = arith.mulf %550, %550 : vector<8x32xf32>
    %cst_373 = arith.constant dense<0.000000e+00> : vector<8xf32>
    %552 = vector.multi_reduction <add>, %551, %cst_373 [1] : vector<8x32xf32> to vector<8xf32>
    %553 = vector.shape_cast %552 : vector<8xf32> to vector<8x1xf32>
    %cst_374 = arith.constant 3.200000e+01 : f32
    %554 = vector.broadcast %cst_374 : f32 to vector<8x1xf32>
    %555 = arith.divf %553, %554 : vector<8x1xf32>
    %556 = vector.broadcast %548 : vector<8x1xf32> to vector<8x32xf32>
    %557 = arith.subf %540, %556 : vector<8x32xf32>
    %cst_375 = arith.constant 9.99999996E-13 : f32
    %558 = vector.broadcast %cst_375 : f32 to vector<8x1xf32>
    %559 = arith.addf %555, %558 : vector<8x1xf32>
    %560 = math.rsqrt %559 : vector<8x1xf32>
    %561 = vector.broadcast %560 : vector<8x1xf32> to vector<8x32xf32>
    %562 = arith.mulf %557, %561 : vector<8x32xf32>
    %563 = vector.broadcast %542 : vector<1x32xf32> to vector<8x32xf32>
    %564 = arith.mulf %562, %563 : vector<8x32xf32>
    %565 = vector.broadcast %544 : vector<1x32xf32> to vector<8x32xf32>
    %566 = arith.addf %564, %565 : vector<8x32xf32>
    %c1_376 = arith.constant 1 : index
    %c0_377 = arith.constant 0 : index
    %c0_378 = arith.constant 0 : index
    %567 = vector.load %arg15[%c1_376, %c0_377, %c0_378] : memref<2x32x64xbf16, #tpu.memory_space<vmem>>, vector<1x32x64xbf16>
    %568 = vector.shape_cast %567 : vector<1x32x64xbf16> to vector<32x64xbf16>
    %569 = arith.truncf %566 : vector<8x32xf32> to vector<8x32xbf16>
    %cst_379 = arith.constant dense<0.000000e+00> : vector<8x64xf32>
    %570 = tpu.matmul %569, %568, %cst_379 {dimension_numbers = #tpu.dot_dimension_numbers<[1], [0], [0], [1], [0, 0, 1, 1], [], []>} : vector<8x32xbf16>, vector<32x64xbf16>, vector<8x64xf32> -> vector<8x64xf32>
    %c1_380 = arith.constant 1 : index
    %c0_381 = arith.constant 0 : index
    %c0_382 = arith.constant 0 : index
    %571 = vector.load %arg16[%c1_380, %c0_381, %c0_382] : memref<2x1x64xf32, #tpu.memory_space<vmem>>, vector<1x1x64xf32>
    %572 = vector.shape_cast %571 : vector<1x1x64xf32> to vector<1x64xf32>
    %573 = vector.broadcast %572 : vector<1x64xf32> to vector<8x64xf32>
    %574 = arith.addf %570, %573 : vector<8x64xf32>
    %cst_383 = arith.constant 5.000000e-01 : f32
    %575 = vector.broadcast %cst_383 : f32 to vector<8x64xf32>
    %576 = arith.mulf %575, %574 : vector<8x64xf32>
    %cst_384 = arith.constant 0.707106769 : f32
    %577 = vector.broadcast %cst_384 : f32 to vector<8x64xf32>
    %578 = arith.mulf %574, %577 : vector<8x64xf32>
    %579 = math.absf %578 : vector<8x64xf32>
    %cst_385 = arith.constant 0.327591091 : f32
    %580 = vector.broadcast %cst_385 : f32 to vector<8x64xf32>
    %581 = arith.mulf %580, %579 : vector<8x64xf32>
    %cst_386 = arith.constant 1.000000e+00 : f32
    %582 = vector.broadcast %cst_386 : f32 to vector<8x64xf32>
    %583 = arith.addf %582, %581 : vector<8x64xf32>
    %cst_387 = arith.constant 1.000000e+00 : f32
    %584 = vector.broadcast %cst_387 : f32 to vector<8x64xf32>
    %585 = arith.divf %584, %583 : vector<8x64xf32>
    %cst_388 = arith.constant 1.06140542 : f32
    %586 = vector.broadcast %cst_388 : f32 to vector<8x64xf32>
    %587 = arith.mulf %586, %585 : vector<8x64xf32>
    %cst_389 = arith.constant -1.45315206 : f32
    %588 = vector.broadcast %cst_389 : f32 to vector<8x64xf32>
    %589 = arith.addf %587, %588 : vector<8x64xf32>
    %590 = arith.mulf %589, %585 : vector<8x64xf32>
    %cst_390 = arith.constant 1.42141378 : f32
    %591 = vector.broadcast %cst_390 : f32 to vector<8x64xf32>
    %592 = arith.addf %590, %591 : vector<8x64xf32>
    %593 = arith.mulf %592, %585 : vector<8x64xf32>
    %cst_391 = arith.constant -0.284496725 : f32
    %594 = vector.broadcast %cst_391 : f32 to vector<8x64xf32>
    %595 = arith.addf %593, %594 : vector<8x64xf32>
    %596 = arith.mulf %595, %585 : vector<8x64xf32>
    %cst_392 = arith.constant 0.254829586 : f32
    %597 = vector.broadcast %cst_392 : f32 to vector<8x64xf32>
    %598 = arith.addf %596, %597 : vector<8x64xf32>
    %599 = arith.mulf %598, %585 : vector<8x64xf32>
    %cst_393 = arith.constant 0.000000e+00 : f32
    %600 = vector.broadcast %cst_393 : f32 to vector<8x64xf32>
    %601 = arith.subf %600, %579 : vector<8x64xf32>
    %602 = arith.mulf %601, %579 : vector<8x64xf32>
    %603 = math.exp %602 : vector<8x64xf32>
    %604 = arith.mulf %599, %603 : vector<8x64xf32>
    %cst_394 = arith.constant 1.000000e+00 : f32
    %605 = vector.broadcast %cst_394 : f32 to vector<8x64xf32>
    %606 = arith.subf %605, %604 : vector<8x64xf32>
    %cst_395 = arith.constant 0.000000e+00 : f32
    %607 = vector.broadcast %cst_395 : f32 to vector<8x64xf32>
    %608 = arith.cmpf oge, %578, %607 : vector<8x64xf32>
    %cst_396 = arith.constant 0.000000e+00 : f32
    %609 = vector.broadcast %cst_396 : f32 to vector<8x64xf32>
    %610 = arith.subf %609, %606 : vector<8x64xf32>
    %611 = arith.select %608, %606, %610 : vector<8x64xi1>, vector<8x64xf32>
    %cst_397 = arith.constant 1.000000e+00 : f32
    %612 = vector.broadcast %cst_397 : f32 to vector<8x64xf32>
    %613 = arith.addf %612, %611 : vector<8x64xf32>
    %614 = arith.mulf %576, %613 : vector<8x64xf32>
    %c1_398 = arith.constant 1 : index
    %c0_399 = arith.constant 0 : index
    %c0_400 = arith.constant 0 : index
    %615 = vector.load %arg17[%c1_398, %c0_399, %c0_400] : memref<2x64x32xbf16, #tpu.memory_space<vmem>>, vector<1x64x32xbf16>
    %616 = vector.shape_cast %615 : vector<1x64x32xbf16> to vector<64x32xbf16>
    %617 = arith.truncf %614 : vector<8x64xf32> to vector<8x64xbf16>
    %cst_401 = arith.constant dense<0.000000e+00> : vector<8x32xf32>
    %618 = tpu.matmul %617, %616, %cst_401 {dimension_numbers = #tpu.dot_dimension_numbers<[1], [0], [0], [1], [0, 0, 1, 1], [], []>} : vector<8x64xbf16>, vector<64x32xbf16>, vector<8x32xf32> -> vector<8x32xf32>
    %c1_402 = arith.constant 1 : index
    %c0_403 = arith.constant 0 : index
    %c0_404 = arith.constant 0 : index
    %619 = vector.load %arg18[%c1_402, %c0_403, %c0_404] : memref<2x1x32xf32, #tpu.memory_space<vmem>>, vector<1x1x32xf32>
    %620 = vector.shape_cast %619 : vector<1x1x32xf32> to vector<1x32xf32>
    %621 = vector.broadcast %620 : vector<1x32xf32> to vector<8x32xf32>
    %622 = arith.addf %618, %621 : vector<8x32xf32>
    %623 = arith.addf %622, %566 : vector<8x32xf32>
    %c1_405 = arith.constant 1 : index
    %c0_406 = arith.constant 0 : index
    %c0_407 = arith.constant 0 : index
    %624 = vector.load %arg19[%c1_405, %c0_406, %c0_407] : memref<2x1x32xf32, #tpu.memory_space<vmem>>, vector<1x1x32xf32>
    %625 = vector.shape_cast %624 : vector<1x1x32xf32> to vector<1x32xf32>
    %c1_408 = arith.constant 1 : index
    %c0_409 = arith.constant 0 : index
    %c0_410 = arith.constant 0 : index
    %626 = vector.load %arg20[%c1_408, %c0_409, %c0_410] : memref<2x1x32xf32, #tpu.memory_space<vmem>>, vector<1x1x32xf32>
    %627 = vector.shape_cast %626 : vector<1x1x32xf32> to vector<1x32xf32>
    %cst_411 = arith.constant dense<0.000000e+00> : vector<8xf32>
    %628 = vector.multi_reduction <add>, %623, %cst_411 [1] : vector<8x32xf32> to vector<8xf32>
    %629 = vector.shape_cast %628 : vector<8xf32> to vector<8x1xf32>
    %cst_412 = arith.constant 3.200000e+01 : f32
    %630 = vector.broadcast %cst_412 : f32 to vector<8x1xf32>
    %631 = arith.divf %629, %630 : vector<8x1xf32>
    %632 = vector.broadcast %631 : vector<8x1xf32> to vector<8x32xf32>
    %633 = arith.subf %623, %632 : vector<8x32xf32>
    %634 = arith.mulf %633, %633 : vector<8x32xf32>
    %cst_413 = arith.constant dense<0.000000e+00> : vector<8xf32>
    %635 = vector.multi_reduction <add>, %634, %cst_413 [1] : vector<8x32xf32> to vector<8xf32>
    %636 = vector.shape_cast %635 : vector<8xf32> to vector<8x1xf32>
    %cst_414 = arith.constant 3.200000e+01 : f32
    %637 = vector.broadcast %cst_414 : f32 to vector<8x1xf32>
    %638 = arith.divf %636, %637 : vector<8x1xf32>
    %639 = vector.broadcast %631 : vector<8x1xf32> to vector<8x32xf32>
    %640 = arith.subf %623, %639 : vector<8x32xf32>
    %cst_415 = arith.constant 9.99999996E-13 : f32
    %641 = vector.broadcast %cst_415 : f32 to vector<8x1xf32>
    %642 = arith.addf %638, %641 : vector<8x1xf32>
    %643 = math.rsqrt %642 : vector<8x1xf32>
    %644 = vector.broadcast %643 : vector<8x1xf32> to vector<8x32xf32>
    %645 = arith.mulf %640, %644 : vector<8x32xf32>
    %646 = vector.broadcast %625 : vector<1x32xf32> to vector<8x32xf32>
    %647 = arith.mulf %645, %646 : vector<8x32xf32>
    %648 = vector.broadcast %627 : vector<1x32xf32> to vector<8x32xf32>
    %649 = arith.addf %647, %648 : vector<8x32xf32>
    %650 = vector.extract_strided_slice %649 {offsets = [0, 0], sizes = [1, 32], strides = [1, 1]} : vector<8x32xf32> to vector<1x32xf32>
    %c0_416 = arith.constant 0 : index
    %c0_417 = arith.constant 0 : index
    %651 = vector.load %arg21[%c0_416, %c0_417] : memref<32x32xbf16, #tpu.memory_space<vmem>>, vector<32x32xbf16>
    %652 = arith.truncf %650 : vector<1x32xf32> to vector<1x32xbf16>
    %cst_418 = arith.constant dense<0.000000e+00> : vector<1x32xf32>
    %653 = tpu.matmul %652, %651, %cst_418 {dimension_numbers = #tpu.dot_dimension_numbers<[1], [0], [0], [1], [0, 0, 1, 1], [], []>} : vector<1x32xbf16>, vector<32x32xbf16>, vector<1x32xf32> -> vector<1x32xf32>
    %c0_419 = arith.constant 0 : index
    %c0_420 = arith.constant 0 : index
    %654 = vector.load %arg22[%c0_419, %c0_420] : memref<1x32xf32, #tpu.memory_space<vmem>>, vector<1x32xf32>
    %655 = arith.addf %653, %654 : vector<1x32xf32>
    %656 = math.tanh %655 : vector<1x32xf32>
    %c0_421 = arith.constant 0 : index
    %c0_422 = arith.constant 0 : index
    %657 = vector.load %arg23[%c0_421, %c0_422] : memref<32x128xbf16, #tpu.memory_space<vmem>>, vector<32x128xbf16>
    %658 = arith.truncf %656 : vector<1x32xf32> to vector<1x32xbf16>
    %cst_423 = arith.constant dense<0.000000e+00> : vector<1x128xf32>
    %659 = tpu.matmul %658, %657, %cst_423 {dimension_numbers = #tpu.dot_dimension_numbers<[1], [0], [0], [1], [0, 0, 1, 1], [], []>} : vector<1x32xbf16>, vector<32x128xbf16>, vector<1x128xf32> -> vector<1x128xf32>
    %c0_424 = arith.constant 0 : index
    %c0_425 = arith.constant 0 : index
    %660 = vector.load %arg24[%c0_424, %c0_425] : memref<1x128xf32, #tpu.memory_space<vmem>>, vector<1x128xf32>
    %661 = arith.addf %659, %660 : vector<1x128xf32>
    %c0_426 = arith.constant 0 : index
    %c0_427 = arith.constant 0 : index
    %c0_428 = arith.constant 0 : index
    %662 = vector.load %arg25[%c0_426, %c0_427, %c0_428] : memref<1x1x128xf32, #tpu.memory_space<vmem>>, vector<1x1x128xf32>
    %663 = vector.shape_cast %662 : vector<1x1x128xf32> to vector<1x128xf32>
    %664 = vector.shape_cast %661 : vector<1x128xf32> to vector<1x1x128xf32>
    tpu.vector_store %arg25[%c0_426, %c0_427, %c0_428], %664 {strides = array<i32>} : memref<1x1x128xf32, #tpu.memory_space<vmem>>, vector<1x1x128xf32>,
    return
  }
  func.func @transform_0(%arg0: i32) -> (i32, i32, i32) {
    %c0_i32 = arith.constant 0 : i32
    %c0_i32_0 = arith.constant 0 : i32
    %c0_i32_1 = arith.constant 0 : i32
    return %arg0, %c0_i32, %c0_i32_0 : i32, i32, i32
  }
  func.func @transform_1(%arg0: i32) -> (i32, i32, i32) {
    %c0_i32 = arith.constant 0 : i32
    %c0_i32_0 = arith.constant 0 : i32
    %c0_i32_1 = arith.constant 0 : i32
    return %arg0, %c0_i32, %c0_i32_0 : i32, i32, i32
  }
  func.func @transform_2(%arg0: i32) -> (i32, i32) {
    %c0_i32 = arith.constant 0 : i32
    %c0_i32_0 = arith.constant 0 : i32
    %c0_i32_1 = arith.constant 0 : i32
    return %c0_i32, %c0_i32_0 : i32, i32
  }
  func.func @transform_3(%arg0: i32) -> (i32, i32) {
    %c0_i32 = arith.constant 0 : i32
    %c0_i32_0 = arith.constant 0 : i32
    %c0_i32_1 = arith.constant 0 : i32
    return %c0_i32, %c0_i32_0 : i32, i32
  }
  func.func @transform_4(%arg0: i32) -> (i32, i32, i32, i32) {
    %c0_i32 = arith.constant 0 : i32
    %c0_i32_0 = arith.constant 0 : i32
    %c0_i32_1 = arith.constant 0 : i32
    %c0_i32_2 = arith.constant 0 : i32
    %c0_i32_3 = arith.constant 0 : i32
    return %c0_i32, %c0_i32_0, %c0_i32_1, %c0_i32_2 : i32, i32, i32, i32
  }
  func.func @transform_5(%arg0: i32) -> (i32, i32, i32, i32) {
    %c0_i32 = arith.constant 0 : i32
    %c0_i32_0 = arith.constant 0 : i32
    %c0_i32_1 = arith.constant 0 : i32
    %c0_i32_2 = arith.constant 0 : i32
    %c0_i32_3 = arith.constant 0 : i32
    return %c0_i32, %c0_i32_0, %c0_i32_1, %c0_i32_2 : i32, i32, i32, i32
  }
  func.func @transform_6(%arg0: i32) -> (i32, i32, i32, i32) {
    %c0_i32 = arith.constant 0 : i32
    %c0_i32_0 = arith.constant 0 : i32
    %c0_i32_1 = arith.constant 0 : i32
    %c0_i32_2 = arith.constant 0 : i32
    %c0_i32_3 = arith.constant 0 : i32
    return %c0_i32, %c0_i32_0, %c0_i32_1, %c0_i32_2 : i32, i32, i32, i32
  }
  func.func @transform_7(%arg0: i32) -> (i32, i32, i32, i32) {
    %c0_i32 = arith.constant 0 : i32
    %c0_i32_0 = arith.constant 0 : i32
    %c0_i32_1 = arith.constant 0 : i32
    %c0_i32_2 = arith.constant 0 : i32
    %c0_i32_3 = arith.constant 0 : i32
    return %c0_i32, %c0_i32_0, %c0_i32_1, %c0_i32_2 : i32, i32, i32, i32
  }
  func.func @transform_8(%arg0: i32) -> (i32, i32, i32, i32) {
    %c0_i32 = arith.constant 0 : i32
    %c0_i32_0 = arith.constant 0 : i32
    %c0_i32_1 = arith.constant 0 : i32
    %c0_i32_2 = arith.constant 0 : i32
    %c0_i32_3 = arith.constant 0 : i32
    return %c0_i32, %c0_i32_0, %c0_i32_1, %c0_i32_2 : i32, i32, i32, i32
  }
  func.func @transform_9(%arg0: i32) -> (i32, i32, i32, i32) {
    %c0_i32 = arith.constant 0 : i32
    %c0_i32_0 = arith.constant 0 : i32
    %c0_i32_1 = arith.constant 0 : i32
    %c0_i32_2 = arith.constant 0 : i32
    %c0_i32_3 = arith.constant 0 : i32
    return %c0_i32, %c0_i32_0, %c0_i32_1, %c0_i32_2 : i32, i32, i32, i32
  }
  func.func @transform_10(%arg0: i32) -> (i32, i32, i32, i32) {
    %c0_i32 = arith.constant 0 : i32
    %c0_i32_0 = arith.constant 0 : i32
    %c0_i32_1 = arith.constant 0 : i32
    %c0_i32_2 = arith.constant 0 : i32
    %c0_i32_3 = arith.constant 0 : i32
    return %c0_i32, %c0_i32_0, %c0_i32_1, %c0_i32_2 : i32, i32, i32, i32
  }
  func.func @transform_11(%arg0: i32) -> (i32, i32, i32) {
    %c0_i32 = arith.constant 0 : i32
    %c0_i32_0 = arith.constant 0 : i32
    %c0_i32_1 = arith.constant 0 : i32
    %c0_i32_2 = arith.constant 0 : i32
    return %c0_i32, %c0_i32_0, %c0_i32_1 : i32, i32, i32
  }
  func.func @transform_12(%arg0: i32) -> (i32, i32, i32) {
    %c0_i32 = arith.constant 0 : i32
    %c0_i32_0 = arith.constant 0 : i32
    %c0_i32_1 = arith.constant 0 : i32
    %c0_i32_2 = arith.constant 0 : i32
    return %c0_i32, %c0_i32_0, %c0_i32_1 : i32, i32, i32
  }
  func.func @transform_13(%arg0: i32) -> (i32, i32, i32) {
    %c0_i32 = arith.constant 0 : i32
    %c0_i32_0 = arith.constant 0 : i32
    %c0_i32_1 = arith.constant 0 : i32
    %c0_i32_2 = arith.constant 0 : i32
    return %c0_i32, %c0_i32_0, %c0_i32_1 : i32, i32, i32
  }
  func.func @transform_14(%arg0: i32) -> (i32, i32, i32) {
    %c0_i32 = arith.constant 0 : i32
    %c0_i32_0 = arith.constant 0 : i32
    %c0_i32_1 = arith.constant 0 : i32
    %c0_i32_2 = arith.constant 0 : i32
    return %c0_i32, %c0_i32_0, %c0_i32_1 : i32, i32, i32
  }
  func.func @transform_15(%arg0: i32) -> (i32, i32, i32) {
    %c0_i32 = arith.constant 0 : i32
    %c0_i32_0 = arith.constant 0 : i32
    %c0_i32_1 = arith.constant 0 : i32
    %c0_i32_2 = arith.constant 0 : i32
    return %c0_i32, %c0_i32_0, %c0_i32_1 : i32, i32, i32
  }
  func.func @transform_16(%arg0: i32) -> (i32, i32, i32) {
    %c0_i32 = arith.constant 0 : i32
    %c0_i32_0 = arith.constant 0 : i32
    %c0_i32_1 = arith.constant 0 : i32
    %c0_i32_2 = arith.constant 0 : i32
    return %c0_i32, %c0_i32_0, %c0_i32_1 : i32, i32, i32
  }
  func.func @transform_17(%arg0: i32) -> (i32, i32, i32) {
    %c0_i32 = arith.constant 0 : i32
    %c0_i32_0 = arith.constant 0 : i32
    %c0_i32_1 = arith.constant 0 : i32
    %c0_i32_2 = arith.constant 0 : i32
    return %c0_i32, %c0_i32_0, %c0_i32_1 : i32, i32, i32
  }
  func.func @transform_18(%arg0: i32) -> (i32, i32, i32) {
    %c0_i32 = arith.constant 0 : i32
    %c0_i32_0 = arith.constant 0 : i32
    %c0_i32_1 = arith.constant 0 : i32
    %c0_i32_2 = arith.constant 0 : i32
    return %c0_i32, %c0_i32_0, %c0_i32_1 : i32, i32, i32
  }
  func.func @transform_19(%arg0: i32) -> (i32, i32, i32) {
    %c0_i32 = arith.constant 0 : i32
    %c0_i32_0 = arith.constant 0 : i32
    %c0_i32_1 = arith.constant 0 : i32
    %c0_i32_2 = arith.constant 0 : i32
    return %c0_i32, %c0_i32_0, %c0_i32_1 : i32, i32, i32
  }
  func.func @transform_20(%arg0: i32) -> (i32, i32) {
    %c0_i32 = arith.constant 0 : i32
    %c0_i32_0 = arith.constant 0 : i32
    %c0_i32_1 = arith.constant 0 : i32
    return %c0_i32, %c0_i32_0 : i32, i32
  }
  func.func @transform_21(%arg0: i32) -> (i32, i32) {
    %c0_i32 = arith.constant 0 : i32
    %c0_i32_0 = arith.constant 0 : i32
    %c0_i32_1 = arith.constant 0 : i32
    return %c0_i32, %c0_i32_0 : i32, i32
  }
  func.func @transform_22(%arg0: i32) -> (i32, i32) {
    %c0_i32 = arith.constant 0 : i32
    %c0_i32_0 = arith.constant 0 : i32
    %c0_i32_1 = arith.constant 0 : i32
    return %c0_i32, %c0_i32_0 : i32, i32
  }
  func.func @transform_23(%arg0: i32) -> (i32, i32) {
    %c0_i32 = arith.constant 0 : i32
    %c0_i32_0 = arith.constant 0 : i32
    %c0_i32_1 = arith.constant 0 : i32
    return %c0_i32, %c0_i32_0 : i32, i32
  }
  func.func @transform_24(%arg0: i32) -> (i32, i32, i32) {
    %c0_i32 = arith.constant 0 : i32
    %c0_i32_0 = arith.constant 0 : i32
    %c0_i32_1 = arith.constant 0 : i32
    return %arg0, %c0_i32, %c0_i32_0 : i32, i32, i32
  }
}

</mosaic_0001>

<llo_original>
// kernel: custom_bert_forward.1
$region0: #{custom_bert_forward.1}
  #allocation0 [shape = 'u32[]', space=smem, size = 0x4, offset = 0x4, fixed_abs, tag = 'smem constant byte address 0x4 - core index']
  #allocation1 [shape = 'u32[144,128]{1,0:T(1,128)}', space=vmem, size = 0x12000, scoped, tag = 'internal scratch']
  %s0 = inlined_call_operand.vmem [shape: f32[2,8,32], index: 0, kind: input, shape index: {}]
  %s1 = inlined_call_operand.vmem [shape: f32[2,1,8], index: 1, kind: input, shape index: {}]
  %s2 = inlined_call_operand.vmem [shape: f32[1,32], index: 2, kind: input, shape index: {}]
  %s3 = inlined_call_operand.vmem [shape: f32[1,32], index: 3, kind: input, shape index: {}]
  %s4 = inlined_call_operand.vmem [shape: bf16[2,4,32,8], index: 4, kind: input, shape index: {}]
  %s5 = inlined_call_operand.vmem [shape: f32[2,4,1,8], index: 5, kind: input, shape index: {}]
  %s6 = inlined_call_operand.vmem [shape: bf16[2,4,32,8], index: 6, kind: input, shape index: {}]
  %s7 = inlined_call_operand.vmem [shape: f32[2,4,1,8], index: 7, kind: input, shape index: {}]
  %s8 = inlined_call_operand.vmem [shape: bf16[2,4,32,8], index: 8, kind: input, shape index: {}]
  %s9 = inlined_call_operand.vmem [shape: f32[2,4,1,8], index: 9, kind: input, shape index: {}]
  %s10 = inlined_call_operand.vmem [shape: bf16[2,4,8,32], index: 10, kind: input, shape index: {}]
  %s11 = inlined_call_operand.vmem [shape: f32[2,1,32], index: 11, kind: input, shape index: {}]
  %s12 = inlined_call_operand.vmem [shape: f32[2,1,32], index: 12, kind: input, shape index: {}]
  %s13 = inlined_call_operand.vmem [shape: f32[2,1,32], index: 13, kind: input, shape index: {}]
  %s14 = inlined_call_operand.vmem [shape: bf16[2,32,64], index: 14, kind: input, shape index: {}]
  %s15 = inlined_call_operand.vmem [shape: f32[2,1,64], index: 15, kind: input, shape index: {}]
  %s16 = inlined_call_operand.vmem [shape: bf16[2,64,32], index: 16, kind: input, shape index: {}]
  %s17 = inlined_call_operand.vmem [shape: f32[2,1,32], index: 17, kind: input, shape index: {}]
  %s18 = inlined_call_operand.vmem [shape: f32[2,1,32], index: 18, kind: input, shape index: {}]
  %s19 = inlined_call_operand.vmem [shape: f32[2,1,32], index: 19, kind: input, shape index: {}]
  %s20 = inlined_call_operand.vmem [shape: bf16[32,32], index: 20, kind: input, shape index: {}]
  %s21 = inlined_call_operand.vmem [shape: f32[1,32], index: 21, kind: input, shape index: {}]
  %s22 = inlined_call_operand.vmem [shape: bf16[32,128], index: 22, kind: input, shape index: {}]
  %s23 = inlined_call_operand.vmem [shape: f32[1,128], index: 23, kind: input, shape index: {}]
  %s24 = inlined_call_operand.hbm [shape: f32[2,1,128], index: 24, kind: output, shape index: {}]
  %s25 = sld [smem:[#allocation0]]
  $region129: #{custom_bert_forward.1} parent=0
    _
  %s27 = ssub.s32 1, %s25
  %s28 = scalar_select 0, %s27, %s25
  $region1: #{custom_bert_forward.1} parent=0
    #allocation2 [shape = 'u8[1024]{0}', space=vmem, size = 0x400, scoped, tag = 'output window, operand 0']
    #allocation3 [shape = 's32[2]{0}', space=sflag, size = 0x8, scoped, tag = 'scoped memory for custom_bert_forward.1']
    %29 = vsyncpa [#allocation3], 0
    %s30 = scalar_lea.sflag [#allocation3], 1
    %31 = vsyncpa %s30, 0
    loop: start=0, step=1, limit=4
    $region2: #{custom_bert_forward.1} parent=1 // loop_pre_header
      _
    $region3: #{custom_bert_forward.1} parent=1 // loop_header
      %s33 = sphi 0, %s37
      %p34 = scmp.ge.s32.totalorder %s33, 4
      %s43 = sphi 0, %s45
      %s46 = sphi 0, %s43
      %s47 = sphi 0, %s46
      %s63 = sphi 0, %s47
      %s69 = sphi 0, %s71
      %s72 = sphi 0, %s69
      %s73 = sphi 0, %s72
      %s89 = sphi 0, %s73
      %s93 = sphi 0, %s93
      %s95 = sphi 0, %s93
      %s96 = sphi 0, %s95
      %s110 = sphi 0, %s96
      %s114 = sphi 0, %s114
      %s116 = sphi 0, %s114
      %s117 = sphi 0, %s116
      %s131 = sphi 0, %s117
      %s135 = sphi 0, %s135
      %s137 = sphi 0, %s135
      %s138 = sphi 0, %s137
      %s152 = sphi 0, %s138
      %s156 = sphi 0, %s156
      %s158 = sphi 0, %s156
      %s159 = sphi 0, %s158
      %s173 = sphi 0, %s159
      %s177 = sphi 0, %s177
      %s179 = sphi 0, %s177
      %s180 = sphi 0, %s179
      %s194 = sphi 0, %s180
      %s198 = sphi 0, %s198
      %s200 = sphi 0, %s198
      %s201 = sphi 0, %s200
      %s215 = sphi 0, %s201
      %s219 = sphi 0, %s219
      %s221 = sphi 0, %s219
      %s222 = sphi 0, %s221
      %s236 = sphi 0, %s222
      %s240 = sphi 0, %s240
      %s242 = sphi 0, %s240
      %s243 = sphi 0, %s242
      %s257 = sphi 0, %s243
      %s261 = sphi 0, %s261
      %s263 = sphi 0, %s261
      %s264 = sphi 0, %s263
      %s278 = sphi 0, %s264
      %s282 = sphi 0, %s282
      %s284 = sphi 0, %s282
      %s285 = sphi 0, %s284
      %s299 = sphi 0, %s285
      %s303 = sphi 0, %s303
      %s305 = sphi 0, %s303
      %s306 = sphi 0, %s305
      %s320 = sphi 0, %s306
      %s324 = sphi 0, %s324
      %s326 = sphi 0, %s324
      %s327 = sphi 0, %s326
      %s341 = sphi 0, %s327
      %s345 = sphi 0, %s345
      %s347 = sphi 0, %s345
      %s348 = sphi 0, %s347
      %s362 = sphi 0, %s348
      %s366 = sphi 0, %s366
      %s368 = sphi 0, %s366
      %s369 = sphi 0, %s368
      %s383 = sphi 0, %s369
      %s387 = sphi 0, %s387
      %s389 = sphi 0, %s387
      %s390 = sphi 0, %s389
      %s404 = sphi 0, %s390
      %s408 = sphi 0, %s408
      %s410 = sphi 0, %s408
      %s411 = sphi 0, %s410
      %s425 = sphi 0, %s411
      %s429 = sphi 0, %s429
      %s431 = sphi 0, %s429
      %s432 = sphi 0, %s431
      %s446 = sphi 0, %s432
      %s450 = sphi 0, %s450
      %s452 = sphi 0, %s450
      %s453 = sphi 0, %s452
      %s467 = sphi 0, %s453
      %s471 = sphi 0, %s471
      %s473 = sphi 0, %s471
      %s474 = sphi 0, %s473
      %s488 = sphi 0, %s474
      %s492 = sphi 0, %s492
      %s494 = sphi 0, %s492
      %s495 = sphi 0, %s494
      %s509 = sphi 0, %s495
      %s513 = sphi 0, %s513
      %s515 = sphi 0, %s513
      %s516 = sphi 0, %s515
      %s530 = sphi 0, %s516
      %s534 = sphi 0, %s534
      %s536 = sphi 0, %s534
      %s537 = sphi 0, %s536
      %s551 = sphi 0, %s537
      %s557 = sphi 0, %s559
      %s560 = sphi 0, %s557
      %s561 = sphi 0, %s560
      %s577 = sphi 0, %s561
    $region4: #{custom_bert_forward.1} parent=1 // loop_header_branch
      %36 = sbr.rel (%p34) target = $region8
    $region5: #{custom_bert_forward.1} parent=1 // loop_body
      %s38 = ssub.s32 %s33, 1
      %s39 = ssub.s32 %s33, 2
      %s40 = sadd.s32 %s33, 1
      %s41 = ssub.s32 %s33, %s40
      %p42 = scmp.eq.s32.totalorder %s41, 0
      %s44 = sadd.s32 %s43, 1
      %s45 = scalar_select %p42, %s43, %s44
      %p48 = pneg %p42
      %p49 = scmp.eq.s32.totalorder %s33, 1
      %p50 = por %p48, %p49
      %p51 = scmp.ne.s32.totalorder %s43, %s46
      %p52 = scmp.eq.s32.totalorder %s33, 0
      %p53 = por %p51, %p52
      %p54 = scmp.ne.s32.totalorder %s43, %s46
      %p55 = scmp.eq.s32.totalorder %s38, 1
      %p56 = por %p54, %p55
      %p57 = scmp.ne.s32.totalorder %s46, %s47
      %p58 = scmp.eq.s32.totalorder %s38, 0
      %p59 = por %p57, %p58
      %p60 = scmp.ne.s32.totalorder %s46, %s47
      %p61 = scmp.eq.s32.totalorder %s39, 1
      %p62 = por %p60, %p61
      %p64 = scmp.ne.s32.totalorder %s47, %s63
      %p65 = scmp.eq.s32.totalorder %s39, 0
      %p66 = por %p64, %p65
      %s67 = ssub.s32 %s33, %s40
      %p68 = scmp.eq.s32.totalorder %s67, 0
      %s70 = sadd.s32 %s69, 1
      %s71 = scalar_select %p68, %s69, %s70
      %p74 = pneg %p68
      %p75 = scmp.eq.s32.totalorder %s33, 1
      %p76 = por %p74, %p75
      %p77 = scmp.ne.s32.totalorder %s69, %s72
      %p78 = scmp.eq.s32.totalorder %s33, 0
      %p79 = por %p77, %p78
      %p80 = scmp.ne.s32.totalorder %s69, %s72
      %p81 = scmp.eq.s32.totalorder %s38, 1
      %p82 = por %p80, %p81
      %p83 = scmp.ne.s32.totalorder %s72, %s73
      %p84 = scmp.eq.s32.totalorder %s38, 0
      %p85 = por %p83, %p84
      %p86 = scmp.ne.s32.totalorder %s72, %s73
      %p87 = scmp.eq.s32.totalorder %s39, 1
      %p88 = por %p86, %p87
      %p90 = scmp.ne.s32.totalorder %s73, %s89
      %p91 = scmp.eq.s32.totalorder %s39, 0
      %p92 = por %p90, %p91
      %s94 = sadd.s32 %s93, 1
      %p97 = scmp.eq.s32.totalorder %s33, 1
      %p98 = scmp.ne.s32.totalorder %s93, %s95
      %p99 = scmp.eq.s32.totalorder %s33, 0
      %p100 = por %p98, %p99
      %p101 = scmp.ne.s32.totalorder %s93, %s95
      %p102 = scmp.eq.s32.totalorder %s38, 1
      %p103 = por %p101, %p102
      %p104 = scmp.ne.s32.totalorder %s95, %s96
      %p105 = scmp.eq.s32.totalorder %s38, 0
      %p106 = por %p104, %p105
      %p107 = scmp.ne.s32.totalorder %s95, %s96
      %p108 = scmp.eq.s32.totalorder %s39, 1
      %p109 = por %p107, %p108
      %p111 = scmp.ne.s32.totalorder %s96, %s110
      %p112 = scmp.eq.s32.totalorder %s39, 0
      %p113 = por %p111, %p112
      %s115 = sadd.s32 %s114, 1
      %p118 = scmp.eq.s32.totalorder %s33, 1
      %p119 = scmp.ne.s32.totalorder %s114, %s116
      %p120 = scmp.eq.s32.totalorder %s33, 0
      %p121 = por %p119, %p120
      %p122 = scmp.ne.s32.totalorder %s114, %s116
      %p123 = scmp.eq.s32.totalorder %s38, 1
      %p124 = por %p122, %p123
      %p125 = scmp.ne.s32.totalorder %s116, %s117
      %p126 = scmp.eq.s32.totalorder %s38, 0
      %p127 = por %p125, %p126
      %p128 = scmp.ne.s32.totalorder %s116, %s117
      %p129 = scmp.eq.s32.totalorder %s39, 1
      %p130 = por %p128, %p129
      %p132 = scmp.ne.s32.totalorder %s117, %s131
      %p133 = scmp.eq.s32.totalorder %s39, 0
      %p134 = por %p132, %p133
      %s136 = sadd.s32 %s135, 1
      %p139 = scmp.eq.s32.totalorder %s33, 1
      %p140 = scmp.ne.s32.totalorder %s135, %s137
      %p141 = scmp.eq.s32.totalorder %s33, 0
      %p142 = por %p140, %p141
      %p143 = scmp.ne.s32.totalorder %s135, %s137
      %p144 = scmp.eq.s32.totalorder %s38, 1
      %p145 = por %p143, %p144
      %p146 = scmp.ne.s32.totalorder %s137, %s138
      %p147 = scmp.eq.s32.totalorder %s38, 0
      %p148 = por %p146, %p147
      %p149 = scmp.ne.s32.totalorder %s137, %s138
      %p150 = scmp.eq.s32.totalorder %s39, 1
      %p151 = por %p149, %p150
      %p153 = scmp.ne.s32.totalorder %s138, %s152
      %p154 = scmp.eq.s32.totalorder %s39, 0
      %p155 = por %p153, %p154
      %s157 = sadd.s32 %s156, 1
      %p160 = scmp.eq.s32.totalorder %s33, 1
      %p161 = scmp.ne.s32.totalorder %s156, %s158
      %p162 = scmp.eq.s32.totalorder %s33, 0
      %p163 = por %p161, %p162
      %p164 = scmp.ne.s32.totalorder %s156, %s158
      %p165 = scmp.eq.s32.totalorder %s38, 1
      %p166 = por %p164, %p165
      %p167 = scmp.ne.s32.totalorder %s158, %s159
      %p168 = scmp.eq.s32.totalorder %s38, 0
      %p169 = por %p167, %p168
      %p170 = scmp.ne.s32.totalorder %s158, %s159
      %p171 = scmp.eq.s32.totalorder %s39, 1
      %p172 = por %p170, %p171
      %p174 = scmp.ne.s32.totalorder %s159, %s173
      %p175 = scmp.eq.s32.totalorder %s39, 0
      %p176 = por %p174, %p175
      %s178 = sadd.s32 %s177, 1
      %p181 = scmp.eq.s32.totalorder %s33, 1
      %p182 = scmp.ne.s32.totalorder %s177, %s179
      %p183 = scmp.eq.s32.totalorder %s33, 0
      %p184 = por %p182, %p183
      %p185 = scmp.ne.s32.totalorder %s177, %s179
      %p186 = scmp.eq.s32.totalorder %s38, 1
      %p187 = por %p185, %p186
      %p188 = scmp.ne.s32.totalorder %s179, %s180
      %p189 = scmp.eq.s32.totalorder %s38, 0
      %p190 = por %p188, %p189
      %p191 = scmp.ne.s32.totalorder %s179, %s180
      %p192 = scmp.eq.s32.totalorder %s39, 1
      %p193 = por %p191, %p192
      %p195 = scmp.ne.s32.totalorder %s180, %s194
      %p196 = scmp.eq.s32.totalorder %s39, 0
      %p197 = por %p195, %p196
      %s199 = sadd.s32 %s198, 1
      %p202 = scmp.eq.s32.totalorder %s33, 1
      %p203 = scmp.ne.s32.totalorder %s198, %s200
      %p204 = scmp.eq.s32.totalorder %s33, 0
      %p205 = por %p203, %p204
      %p206 = scmp.ne.s32.totalorder %s198, %s200
      %p207 = scmp.eq.s32.totalorder %s38, 1
      %p208 = por %p206, %p207
      %p209 = scmp.ne.s32.totalorder %s200, %s201
      %p210 = scmp.eq.s32.totalorder %s38, 0
      %p211 = por %p209, %p210
      %p212 = scmp.ne.s32.totalorder %s200, %s201
      %p213 = scmp.eq.s32.totalorder %s39, 1
      %p214 = por %p212, %p213
      %p216 = scmp.ne.s32.totalorder %s201, %s215
      %p217 = scmp.eq.s32.totalorder %s39, 0
      %p218 = por %p216, %p217
      %s220 = sadd.s32 %s219, 1
      %p223 = scmp.eq.s32.totalorder %s33, 1
      %p224 = scmp.ne.s32.totalorder %s219, %s221
      %p225 = scmp.eq.s32.totalorder %s33, 0
      %p226 = por %p224, %p225
      %p227 = scmp.ne.s32.totalorder %s219, %s221
      %p228 = scmp.eq.s32.totalorder %s38, 1
      %p229 = por %p227, %p228
      %p230 = scmp.ne.s32.totalorder %s221, %s222
      %p231 = scmp.eq.s32.totalorder %s38, 0
      %p232 = por %p230, %p231
      %p233 = scmp.ne.s32.totalorder %s221, %s222
      %p234 = scmp.eq.s32.totalorder %s39, 1
      %p235 = por %p233, %p234
      %p237 = scmp.ne.s32.totalorder %s222, %s236
      %p238 = scmp.eq.s32.totalorder %s39, 0
      %p239 = por %p237, %p238
      %s241 = sadd.s32 %s240, 1
      %p244 = scmp.eq.s32.totalorder %s33, 1
      %p245 = scmp.ne.s32.totalorder %s240, %s242
      %p246 = scmp.eq.s32.totalorder %s33, 0
      %p247 = por %p245, %p246
      %p248 = scmp.ne.s32.totalorder %s240, %s242
      %p249 = scmp.eq.s32.totalorder %s38, 1
      %p250 = por %p248, %p249
      %p251 = scmp.ne.s32.totalorder %s242, %s243
      %p252 = scmp.eq.s32.totalorder %s38, 0
      %p253 = por %p251, %p252
      %p254 = scmp.ne.s32.totalorder %s242, %s243
      %p255 = scmp.eq.s32.totalorder %s39, 1
      %p256 = por %p254, %p255
      %p258 = scmp.ne.s32.totalorder %s243, %s257
      %p259 = scmp.eq.s32.totalorder %s39, 0
      %p260 = por %p258, %p259
      %s262 = sadd.s32 %s261, 1
      %p265 = scmp.eq.s32.totalorder %s33, 1
      %p266 = scmp.ne.s32.totalorder %s261, %s263
      %p267 = scmp.eq.s32.totalorder %s33, 0
      %p268 = por %p266, %p267
      %p269 = scmp.ne.s32.totalorder %s261, %s263
      %p270 = scmp.eq.s32.totalorder %s38, 1
      %p271 = por %p269, %p270
      %p272 = scmp.ne.s32.totalorder %s263, %s264
      %p273 = scmp.eq.s32.totalorder %s38, 0
      %p274 = por %p272, %p273
      %p275 = scmp.ne.s32.totalorder %s263, %s264
      %p276 = scmp.eq.s32.totalorder %s39, 1
      %p277 = por %p275, %p276
      %p279 = scmp.ne.s32.totalorder %s264, %s278
      %p280 = scmp.eq.s32.totalorder %s39, 0
      %p281 = por %p279, %p280
      %s283 = sadd.s32 %s282, 1
      %p286 = scmp.eq.s32.totalorder %s33, 1
      %p287 = scmp.ne.s32.totalorder %s282, %s284
      %p288 = scmp.eq.s32.totalorder %s33, 0
      %p289 = por %p287, %p288
      %p290 = scmp.ne.s32.totalorder %s282, %s284
      %p291 = scmp.eq.s32.totalorder %s38, 1
      %p292 = por %p290, %p291
      %p293 = scmp.ne.s32.totalorder %s284, %s285
      %p294 = scmp.eq.s32.totalorder %s38, 0
      %p295 = por %p293, %p294
      %p296 = scmp.ne.s32.totalorder %s284, %s285
      %p297 = scmp.eq.s32.totalorder %s39, 1
      %p298 = por %p296, %p297
      %p300 = scmp.ne.s32.totalorder %s285, %s299
      %p301 = scmp.eq.s32.totalorder %s39, 0
      %p302 = por %p300, %p301
      %s304 = sadd.s32 %s303, 1
      %p307 = scmp.eq.s32.totalorder %s33, 1
      %p308 = scmp.ne.s32.totalorder %s303, %s305
      %p309 = scmp.eq.s32.totalorder %s33, 0
      %p310 = por %p308, %p309
      %p311 = scmp.ne.s32.totalorder %s303, %s305
      %p312 = scmp.eq.s32.totalorder %s38, 1
      %p313 = por %p311, %p312
      %p314 = scmp.ne.s32.totalorder %s305, %s306
      %p315 = scmp.eq.s32.totalorder %s38, 0
      %p316 = por %p314, %p315
      %p317 = scmp.ne.s32.totalorder %s305, %s306
      %p318 = scmp.eq.s32.totalorder %s39, 1
      %p319 = por %p317, %p318
      %p321 = scmp.ne.s32.totalorder %s306, %s320
      %p322 = scmp.eq.s32.totalorder %s39, 0
      %p323 = por %p321, %p322
      %s325 = sadd.s32 %s324, 1
      %p328 = scmp.eq.s32.totalorder %s33, 1
      %p329 = scmp.ne.s32.totalorder %s324, %s326
      %p330 = scmp.eq.s32.totalorder %s33, 0
      %p331 = por %p329, %p330
      %p332 = scmp.ne.s32.totalorder %s324, %s326
      %p333 = scmp.eq.s32.totalorder %s38, 1
      %p334 = por %p332, %p333
      %p335 = scmp.ne.s32.totalorder %s326, %s327
      %p336 = scmp.eq.s32.totalorder %s38, 0
      %p337 = por %p335, %p336
      %p338 = scmp.ne.s32.totalorder %s326, %s327
      %p339 = scmp.eq.s32.totalorder %s39, 1
      %p340 = por %p338, %p339
      %p342 = scmp.ne.s32.totalorder %s327, %s341
      %p343 = scmp.eq.s32.totalorder %s39, 0
      %p344 = por %p342, %p343
      %s346 = sadd.s32 %s345, 1
      %p349 = scmp.eq.s32.totalorder %s33, 1
      %p350 = scmp.ne.s32.totalorder %s345, %s347
      %p351 = scmp.eq.s32.totalorder %s33, 0
      %p352 = por %p350, %p351
      %p353 = scmp.ne.s32.totalorder %s345, %s347
      %p354 = scmp.eq.s32.totalorder %s38, 1
      %p355 = por %p353, %p354
      %p356 = scmp.ne.s32.totalorder %s347, %s348
      %p357 = scmp.eq.s32.totalorder %s38, 0
      %p358 = por %p356, %p357
      %p359 = scmp.ne.s32.totalorder %s347, %s348
      %p360 = scmp.eq.s32.totalorder %s39, 1
      %p361 = por %p359, %p360
      %p363 = scmp.ne.s32.totalorder %s348, %s362
      %p364 = scmp.eq.s32.totalorder %s39, 0
      %p365 = por %p363, %p364
      %s367 = sadd.s32 %s366, 1
      %p370 = scmp.eq.s32.totalorder %s33, 1
      %p371 = scmp.ne.s32.totalorder %s366, %s368
      %p372 = scmp.eq.s32.totalorder %s33, 0
      %p373 = por %p371, %p372
      %p374 = scmp.ne.s32.totalorder %s366, %s368
      %p375 = scmp.eq.s32.totalorder %s38, 1
      %p376 = por %p374, %p375
      %p377 = scmp.ne.s32.totalorder %s368, %s369
      %p378 = scmp.eq.s32.totalorder %s38, 0
      %p379 = por %p377, %p378
      %p380 = scmp.ne.s32.totalorder %s368, %s369
      %p381 = scmp.eq.s32.totalorder %s39, 1
      %p382 = por %p380, %p381
      %p384 = scmp.ne.s32.totalorder %s369, %s383
      %p385 = scmp.eq.s32.totalorder %s39, 0
      %p386 = por %p384, %p385
      %s388 = sadd.s32 %s387, 1
      %p391 = scmp.eq.s32.totalorder %s33, 1
      %p392 = scmp.ne.s32.totalorder %s387, %s389
      %p393 = scmp.eq.s32.totalorder %s33, 0
      %p394 = por %p392, %p393
      %p395 = scmp.ne.s32.totalorder %s387, %s389
      %p396 = scmp.eq.s32.totalorder %s38, 1
      %p397 = por %p395, %p396
      %p398 = scmp.ne.s32.totalorder %s389, %s390
      %p399 = scmp.eq.s32.totalorder %s38, 0
      %p400 = por %p398, %p399
      %p401 = scmp.ne.s32.totalorder %s389, %s390
      %p402 = scmp.eq.s32.totalorder %s39, 1
      %p403 = por %p401, %p402
      %p405 = scmp.ne.s32.totalorder %s390, %s404
      %p406 = scmp.eq.s32.totalorder %s39, 0
      %p407 = por %p405, %p406
      %s409 = sadd.s32 %s408, 1
      %p412 = scmp.eq.s32.totalorder %s33, 1
      %p413 = scmp.ne.s32.totalorder %s408, %s410
      %p414 = scmp.eq.s32.totalorder %s33, 0
      %p415 = por %p413, %p414
      %p416 = scmp.ne.s32.totalorder %s408, %s410
      %p417 = scmp.eq.s32.totalorder %s38, 1
      %p418 = por %p416, %p417
      %p419 = scmp.ne.s32.totalorder %s410, %s411
      %p420 = scmp.eq.s32.totalorder %s38, 0
      %p421 = por %p419, %p420
      %p422 = scmp.ne.s32.totalorder %s410, %s411
      %p423 = scmp.eq.s32.totalorder %s39, 1
      %p424 = por %p422, %p423
      %p426 = scmp.ne.s32.totalorder %s411, %s425
      %p427 = scmp.eq.s32.totalorder %s39, 0
      %p428 = por %p426, %p427
      %s430 = sadd.s32 %s429, 1
      %p433 = scmp.eq.s32.totalorder %s33, 1
      %p434 = scmp.ne.s32.totalorder %s429, %s431
      %p435 = scmp.eq.s32.totalorder %s33, 0
      %p436 = por %p434, %p435
      %p437 = scmp.ne.s32.totalorder %s429, %s431
      %p438 = scmp.eq.s32.totalorder %s38, 1
      %p439 = por %p437, %p438
      %p440 = scmp.ne.s32.totalorder %s431, %s432
      %p441 = scmp.eq.s32.totalorder %s38, 0
      %p442 = por %p440, %p441
      %p443 = scmp.ne.s32.totalorder %s431, %s432
      %p444 = scmp.eq.s32.totalorder %s39, 1
      %p445 = por %p443, %p444
      %p447 = scmp.ne.s32.totalorder %s432, %s446
      %p448 = scmp.eq.s32.totalorder %s39, 0
      %p449 = por %p447, %p448
      %s451 = sadd.s32 %s450, 1
      %p454 = scmp.eq.s32.totalorder %s33, 1
      %p455 = scmp.ne.s32.totalorder %s450, %s452
      %p456 = scmp.eq.s32.totalorder %s33, 0
      %p457 = por %p455, %p456
      %p458 = scmp.ne.s32.totalorder %s450, %s452
      %p459 = scmp.eq.s32.totalorder %s38, 1
      %p460 = por %p458, %p459
      %p461 = scmp.ne.s32.totalorder %s452, %s453
      %p462 = scmp.eq.s32.totalorder %s38, 0
      %p463 = por %p461, %p462
      %p464 = scmp.ne.s32.totalorder %s452, %s453
      %p465 = scmp.eq.s32.totalorder %s39, 1
      %p466 = por %p464, %p465
      %p468 = scmp.ne.s32.totalorder %s453, %s467
      %p469 = scmp.eq.s32.totalorder %s39, 0
      %p470 = por %p468, %p469
      %s472 = sadd.s32 %s471, 1
      %p475 = scmp.eq.s32.totalorder %s33, 1
      %p476 = scmp.ne.s32.totalorder %s471, %s473
      %p477 = scmp.eq.s32.totalorder %s33, 0
      %p478 = por %p476, %p477
      %p479 = scmp.ne.s32.totalorder %s471, %s473
      %p480 = scmp.eq.s32.totalorder %s38, 1
      %p481 = por %p479, %p480
      %p482 = scmp.ne.s32.totalorder %s473, %s474
      %p483 = scmp.eq.s32.totalorder %s38, 0
      %p484 = por %p482, %p483
      %p485 = scmp.ne.s32.totalorder %s473, %s474
      %p486 = scmp.eq.s32.totalorder %s39, 1
      %p487 = por %p485, %p486
      %p489 = scmp.ne.s32.totalorder %s474, %s488
      %p490 = scmp.eq.s32.totalorder %s39, 0
      %p491 = por %p489, %p490
      %s493 = sadd.s32 %s492, 1
      %p496 = scmp.eq.s32.totalorder %s33, 1
      %p497 = scmp.ne.s32.totalorder %s492, %s494
      %p498 = scmp.eq.s32.totalorder %s33, 0
      %p499 = por %p497, %p498
      %p500 = scmp.ne.s32.totalorder %s492, %s494
      %p501 = scmp.eq.s32.totalorder %s38, 1
      %p502 = por %p500, %p501
      %p503 = scmp.ne.s32.totalorder %s494, %s495
      %p504 = scmp.eq.s32.totalorder %s38, 0
      %p505 = por %p503, %p504
      %p506 = scmp.ne.s32.totalorder %s494, %s495
      %p507 = scmp.eq.s32.totalorder %s39, 1
      %p508 = por %p506, %p507
      %p510 = scmp.ne.s32.totalorder %s495, %s509
      %p511 = scmp.eq.s32.totalorder %s39, 0
      %p512 = por %p510, %p511
      %s514 = sadd.s32 %s513, 1
      %p517 = scmp.eq.s32.totalorder %s33, 1
      %p518 = scmp.ne.s32.totalorder %s513, %s515
      %p519 = scmp.eq.s32.totalorder %s33, 0
      %p520 = por %p518, %p519
      %p521 = scmp.ne.s32.totalorder %s513, %s515
      %p522 = scmp.eq.s32.totalorder %s38, 1
      %p523 = por %p521, %p522
      %p524 = scmp.ne.s32.totalorder %s515, %s516
      %p525 = scmp.eq.s32.totalorder %s38, 0
      %p526 = por %p524, %p525
      %p527 = scmp.ne.s32.totalorder %s515, %s516
      %p528 = scmp.eq.s32.totalorder %s39, 1
      %p529 = por %p527, %p528
      %p531 = scmp.ne.s32.totalorder %s516, %s530
      %p532 = scmp.eq.s32.totalorder %s39, 0
      %p533 = por %p531, %p532
      %s535 = sadd.s32 %s534, 1
      %p538 = scmp.eq.s32.totalorder %s33, 1
      %p539 = scmp.ne.s32.totalorder %s534, %s536
      %p540 = scmp.eq.s32.totalorder %s33, 0
      %p541 = por %p539, %p540
      %p542 = scmp.ne.s32.totalorder %s534, %s536
      %p543 = scmp.eq.s32.totalorder %s38, 1
      %p544 = por %p542, %p543
      %p545 = scmp.ne.s32.totalorder %s536, %s537
      %p546 = scmp.eq.s32.totalorder %s38, 0
      %p547 = por %p545, %p546
      %p548 = scmp.ne.s32.totalorder %s536, %s537
      %p549 = scmp.eq.s32.totalorder %s39, 1
      %p550 = por %p548, %p549
      %p552 = scmp.ne.s32.totalorder %s537, %s551
      %p553 = scmp.eq.s32.totalorder %s39, 0
      %p554 = por %p552, %p553
      %s555 = ssub.s32 %s33, %s40
      %p556 = scmp.eq.s32.totalorder %s555, 0
      %s558 = sadd.s32 %s557, 1
      %s559 = scalar_select %p556, %s557, %s558
      %p562 = pneg %p556
      %p563 = scmp.eq.s32.totalorder %s33, 1
      %p564 = por %p562, %p563
      %p565 = scmp.ne.s32.totalorder %s557, %s560
      %p566 = scmp.eq.s32.totalorder %s33, 0
      %p567 = por %p565, %p566
      %p568 = scmp.ne.s32.totalorder %s557, %s560
      %p569 = scmp.eq.s32.totalorder %s38, 1
      %p570 = por %p568, %p569
      %p571 = scmp.ne.s32.totalorder %s560, %s561
      %p572 = scmp.eq.s32.totalorder %s38, 0
      %p573 = por %p571, %p572
      %p574 = scmp.ne.s32.totalorder %s560, %s561
      %p575 = scmp.eq.s32.totalorder %s39, 1
      %p576 = por %p574, %p575
      %p578 = scmp.ne.s32.totalorder %s561, %s577
      %p579 = scmp.eq.s32.totalorder %s39, 0
      %p580 = por %p578, %p579
      %p581 = scmp.le.s32.totalorder 1, %s33
      %p582 = scmp.lt.s32.totalorder %s33, 3
      %p583 = pnand %p581, %p582
      %p584 = pneg %p583
      // Predicated region
      $region9: #{custom_bert_forward.1} parent=5 // pred_check
        _
      $region10: #{custom_bert_forward.1} parent=5 // pred_check_branch
        %586 = sbr.rel (%p583) target = $region12
      $region11: #{custom_bert_forward.1} parent=5 // pred_region
        %s587 = ssub.s32 %s33, 1
        // Predicated region
        $region13: #{custom_bert_forward.1} parent=11 // pred_check
          %p588 = pneg %p106
        $region14: #{custom_bert_forward.1} parent=11 // pred_check_branch
          %590 = sbr.rel (%p588) target = $region16
        $region15: #{custom_bert_forward.1} parent=11 // pred_region
          _
        $region16: #{custom_bert_forward.1} parent=11 // pred_fallthru
          _
        // Predicated region
        $region17: #{custom_bert_forward.1} parent=11 // pred_check
          %p591 = pneg %p127
        $region18: #{custom_bert_forward.1} parent=11 // pred_check_branch
          %593 = sbr.rel (%p591) target = $region20
        $region19: #{custom_bert_forward.1} parent=11 // pred_region
          _
        $region20: #{custom_bert_forward.1} parent=11 // pred_fallthru
          _
        // Predicated region
        $region21: #{custom_bert_forward.1} parent=11 // pred_check
          %p594 = pneg %p148
        $region22: #{custom_bert_forward.1} parent=11 // pred_check_branch
          %596 = sbr.rel (%p594) target = $region24
        $region23: #{custom_bert_forward.1} parent=11 // pred_region
          _
        $region24: #{custom_bert_forward.1} parent=11 // pred_fallthru
          _
        // Predicated region
        $region25: #{custom_bert_forward.1} parent=11 // pred_check
          %p597 = pneg %p169
        $region26: #{custom_bert_forward.1} parent=11 // pred_check_branch
          %599 = sbr.rel (%p597) target = $region28
        $region27: #{custom_bert_forward.1} parent=11 // pred_region
          _
        $region28: #{custom_bert_forward.1} parent=11 // pred_fallthru
          _
        // Predicated region
        $region29: #{custom_bert_forward.1} parent=11 // pred_check
          %p600 = pneg %p190
        $region30: #{custom_bert_forward.1} parent=11 // pred_check_branch
          %602 = sbr.rel (%p600) target = $region32
        $region31: #{custom_bert_forward.1} parent=11 // pred_region
          _
        $region32: #{custom_bert_forward.1} parent=11 // pred_fallthru
          _
        // Predicated region
        $region33: #{custom_bert_forward.1} parent=11 // pred_check
          %p603 = pneg %p211
        $region34: #{custom_bert_forward.1} parent=11 // pred_check_branch
          %605 = sbr.rel (%p603) target = $region36
        $region35: #{custom_bert_forward.1} parent=11 // pred_region
          _
        $region36: #{custom_bert_forward.1} parent=11 // pred_fallthru
          _
        // Predicated region
        $region37: #{custom_bert_forward.1} parent=11 // pred_check
          %p606 = pneg %p232
        $region38: #{custom_bert_forward.1} parent=11 // pred_check_branch
          %608 = sbr.rel (%p606) target = $region40
        $region39: #{custom_bert_forward.1} parent=11 // pred_region
          _
        $region40: #{custom_bert_forward.1} parent=11 // pred_fallthru
          _
        // Predicated region
        $region41: #{custom_bert_forward.1} parent=11 // pred_check
          %p609 = pneg %p253
        $region42: #{custom_bert_forward.1} parent=11 // pred_check_branch
          %611 = sbr.rel (%p609) target = $region44
        $region43: #{custom_bert_forward.1} parent=11 // pred_region
          _
        $region44: #{custom_bert_forward.1} parent=11 // pred_fallthru
          _
        // Predicated region
        $region45: #{custom_bert_forward.1} parent=11 // pred_check
          %p612 = pneg %p274
        $region46: #{custom_bert_forward.1} parent=11 // pred_check_branch
          %614 = sbr.rel (%p612) target = $region48
        $region47: #{custom_bert_forward.1} parent=11 // pred_region
          _
        $region48: #{custom_bert_forward.1} parent=11 // pred_fallthru
          _
        // Predicated region
        $region49: #{custom_bert_forward.1} parent=11 // pred_check
          %p615 = pneg %p295
        $region50: #{custom_bert_forward.1} parent=11 // pred_check_branch
          %617 = sbr.rel (%p615) target = $region52
        $region51: #{custom_bert_forward.1} parent=11 // pred_region
          _
        $region52: #{custom_bert_forward.1} parent=11 // pred_fallthru
          _
        // Predicated region
        $region53: #{custom_bert_forward.1} parent=11 // pred_check
          %p618 = pneg %p316
        $region54: #{custom_bert_forward.1} parent=11 // pred_check_branch
          %620 = sbr.rel (%p618) target = $region56
        $region55: #{custom_bert_forward.1} parent=11 // pred_region
          _
        $region56: #{custom_bert_forward.1} parent=11 // pred_fallthru
          _
        // Predicated region
        $region57: #{custom_bert_forward.1} parent=11 // pred_check
          %p621 = pneg %p337
        $region58: #{custom_bert_forward.1} parent=11 // pred_check_branch
          %623 = sbr.rel (%p621) target = $region60
        $region59: #{custom_bert_forward.1} parent=11 // pred_region
          _
        $region60: #{custom_bert_forward.1} parent=11 // pred_fallthru
          _
        // Predicated region
        $region61: #{custom_bert_forward.1} parent=11 // pred_check
          %p624 = pneg %p358
        $region62: #{custom_bert_forward.1} parent=11 // pred_check_branch
          %626 = sbr.rel (%p624) target = $region64
        $region63: #{custom_bert_forward.1} parent=11 // pred_region
          _
        $region64: #{custom_bert_forward.1} parent=11 // pred_fallthru
          _
        // Predicated region
        $region65: #{custom_bert_forward.1} parent=11 // pred_check
          %p627 = pneg %p379
        $region66: #{custom_bert_forward.1} parent=11 // pred_check_branch
          %629 = sbr.rel (%p627) target = $region68
        $region67: #{custom_bert_forward.1} parent=11 // pred_region
          _
        $region68: #{custom_bert_forward.1} parent=11 // pred_fallthru
          _
        // Predicated region
        $region69: #{custom_bert_forward.1} parent=11 // pred_check
          %p630 = pneg %p400
        $region70: #{custom_bert_forward.1} parent=11 // pred_check_branch
          %632 = sbr.rel (%p630) target = $region72
        $region71: #{custom_bert_forward.1} parent=11 // pred_region
          _
        $region72: #{custom_bert_forward.1} parent=11 // pred_fallthru
          _
        // Predicated region
        $region73: #{custom_bert_forward.1} parent=11 // pred_check
          %p633 = pneg %p421
        $region74: #{custom_bert_forward.1} parent=11 // pred_check_branch
          %635 = sbr.rel (%p633) target = $region76
        $region75: #{custom_bert_forward.1} parent=11 // pred_region
          _
        $region76: #{custom_bert_forward.1} parent=11 // pred_fallthru
          _
        // Predicated region
        $region77: #{custom_bert_forward.1} parent=11 // pred_check
          %p636 = pneg %p442
        $region78: #{custom_bert_forward.1} parent=11 // pred_check_branch
          %638 = sbr.rel (%p636) target = $region80
        $region79: #{custom_bert_forward.1} parent=11 // pred_region
          _
        $region80: #{custom_bert_forward.1} parent=11 // pred_fallthru
          _
        // Predicated region
        $region81: #{custom_bert_forward.1} parent=11 // pred_check
          %p639 = pneg %p463
        $region82: #{custom_bert_forward.1} parent=11 // pred_check_branch
          %641 = sbr.rel (%p639) target = $region84
        $region83: #{custom_bert_forward.1} parent=11 // pred_region
          _
        $region84: #{custom_bert_forward.1} parent=11 // pred_fallthru
          _
        // Predicated region
        $region85: #{custom_bert_forward.1} parent=11 // pred_check
          %p642 = pneg %p484
        $region86: #{custom_bert_forward.1} parent=11 // pred_check_branch
          %644 = sbr.rel (%p642) target = $region88
        $region87: #{custom_bert_forward.1} parent=11 // pred_region
          _
        $region88: #{custom_bert_forward.1} parent=11 // pred_fallthru
          _
        // Predicated region
        $region89: #{custom_bert_forward.1} parent=11 // pred_check
          %p645 = pneg %p505
        $region90: #{custom_bert_forward.1} parent=11 // pred_check_branch
          %647 = sbr.rel (%p645) target = $region92
        $region91: #{custom_bert_forward.1} parent=11 // pred_region
          _
        $region92: #{custom_bert_forward.1} parent=11 // pred_fallthru
          _
        // Predicated region
        $region93: #{custom_bert_forward.1} parent=11 // pred_check
          %p648 = pneg %p526
        $region94: #{custom_bert_forward.1} parent=11 // pred_check_branch
          %650 = sbr.rel (%p648) target = $region96
        $region95: #{custom_bert_forward.1} parent=11 // pred_region
          _
        $region96: #{custom_bert_forward.1} parent=11 // pred_fallthru
          _
        // Predicated region
        $region97: #{custom_bert_forward.1} parent=11 // pred_check
          %p651 = pneg %p547
        $region98: #{custom_bert_forward.1} parent=11 // pred_check_branch
          %653 = sbr.rel (%p651) target = $region100
        $region99: #{custom_bert_forward.1} parent=11 // pred_region
          _
        $region100: #{custom_bert_forward.1} parent=11 // pred_fallthru
          _
      $region12: #{custom_bert_forward.1} parent=5 // pred_fallthru
        _
      %p654 = scmp.lt.s32.totalorder %s33, 2
      // Predicated region
      $region101: #{custom_bert_forward.1} parent=5 // pred_check
        %p655 = pneg %p654
      $region102: #{custom_bert_forward.1} parent=5 // pred_check_branch
        %657 = sbr.rel (%p655) target = $region104
      $region103: #{custom_bert_forward.1} parent=5 // pred_region
        // Predicated region
        $region105: #{custom_bert_forward.1} parent=103 // pred_check
          %p658 = pneg %p53
        $region106: #{custom_bert_forward.1} parent=103 // pred_check_branch
          %660 = sbr.rel (%p658) target = $region108
        $region107: #{custom_bert_forward.1} parent=103 // pred_region
          %p661 = scmp.lt.s32.totalorder %s33, 1
          %s662 = scalar_select %p661, %s33, 1
          %s663 = smul.addr %s662, 8
          %s664 = scalar_lea.vmem %s0, %s663
        $region108: #{custom_bert_forward.1} parent=103 // pred_fallthru
          _
        // Predicated region
        $region109: #{custom_bert_forward.1} parent=103 // pred_check
          %p665 = pneg %p79
        $region110: #{custom_bert_forward.1} parent=103 // pred_check_branch
          %667 = sbr.rel (%p665) target = $region112
        $region111: #{custom_bert_forward.1} parent=103 // pred_region
          %p668 = scmp.lt.s32.totalorder %s33, 1
          %s669 = scalar_select %p668, %s33, 1
          %s670 = scalar_lea.vmem %s1, %s669
        $region112: #{custom_bert_forward.1} parent=103 // pred_fallthru
          _
      $region104: #{custom_bert_forward.1} parent=5 // pred_fallthru
        _
      %p671 = scmp.le.s32.totalorder 1, %s33
      %p672 = scmp.lt.s32.totalorder %s33, 3
      %p673 = pnand %p671, %p672
      %p674 = pneg %p673
      // Predicated region
      $region113: #{custom_bert_forward.1} parent=5 // pred_check
        _
      $region114: #{custom_bert_forward.1} parent=5 // pred_check_branch
        %676 = sbr.rel (%p673) target = $region116
      $region115: #{custom_bert_forward.1} parent=5 // pred_region
        %s677 = ssub.s32 %s33, 1
        %p678 = scmp.lt.s32.totalorder %s38, 1
        %s679 = scalar_select %p678, %s38, 1
        %s680 = smul.addr %s679, 8
        %s681 = scalar_lea.vmem %s0, %s680
        %p682 = pneg %p59
        %p683 = pneg %p56
        %p684 = scmp.lt.s32.totalorder %s38, 1
        %s685 = scalar_select %p684, %s38, 1
        %s686 = scalar_lea.vmem %s1, %s685
        %p687 = pneg %p85
        %p688 = pneg %p82
        %p689 = pneg %p106
        %p690 = pneg %p103
        %p691 = pneg %p127
        %p692 = pneg %p124
        %p693 = pneg %p148
        %p694 = pneg %p145
        %p695 = pneg %p169
        %p696 = pneg %p166
        %p697 = pneg %p190
        %p698 = pneg %p187
        %p699 = pneg %p211
        %p700 = pneg %p208
        %p701 = pneg %p232
        %p702 = pneg %p229
        %p703 = pneg %p253
        %p704 = pneg %p250
        %p705 = pneg %p274
        %p706 = pneg %p271
        %p707 = pneg %p295
        %p708 = pneg %p292
        %p709 = pneg %p316
        %p710 = pneg %p313
        %p711 = pneg %p337
        %p712 = pneg %p334
        %p713 = pneg %p358
        %p714 = pneg %p355
        %p715 = pneg %p379
        %p716 = pneg %p376
        %p717 = pneg %p400
        %p718 = pneg %p397
        %p719 = pneg %p421
        %p720 = pneg %p418
        %p721 = pneg %p442
        %p722 = pneg %p439
        %p723 = pneg %p463
        %p724 = pneg %p460
        %p725 = pneg %p484
        %p726 = pneg %p481
        %p727 = pneg %p505
        %p728 = pneg %p502
        %p729 = pneg %p526
        %p730 = pneg %p523
        %p731 = pneg %p547
        %p732 = pneg %p544
        %p733 = pneg %p573
        %p734 = pneg %p570
        %s735 = sand.u32 %s560, 1
        %s736 = scalar_lea.sflag [#allocation3], %s735
        %s737 = sand.u32 %s560, 1
        %s738 = scalar_lea.vmem [#allocation2], %s737
        %p739 = scmp.lt.s32.totalorder %s38, 1
        %s740 = scalar_select %p739, %s38, 1
        %s741 = smul.addr %s740, 8
        %s742 = scalar_lea.vmem %s0, %s741
        %p743 = scmp.lt.s32.totalorder %s38, 1
        %s744 = scalar_select %p743, %s38, 1
        %s745 = scalar_lea.vmem %s1, %s744
        %v747 = vld [vmem:[%s745] sm:$0x1]
        %v748 = vld [vmem:[%s742] sm:$0xff]
        %v749 = vld [vmem:[%s2] sm:$0x1]
        %v750 = vld [vmem:[%s3] sm:$0x1]
        %vm751 = vcmask 261120
        %v752 = vsel %vm751, %v748, 0.0
        %753 = vadd.xlane.f32.xlu0 %v752
        %v754 = vpop.xlane.xlu0 %753
        %v755 = vrcp.pop 32.0
        %v756 = vmul.f32 %v754, %v755
        %v757 = vsub.f32 %v748, %v756
        %v758 = vmul.f32 %v757, %v757
        %v759 = vsel %vm751, %v758, 0.0
        %760 = vadd.xlane.f32.xlu0 %v759
        %v761 = vpop.xlane.xlu0 %760
        %v762 = vmul.f32 %v761, %v755
        %v763 = vadd.f32 %v762, 1e-12
        %v764 = vrsqrt.pop %v763
        %v765 = vmul.f32 %v757, %v764
        %v767 = vlaneseq
        %v768 = vshrl.u32 %v767, 7
        %v769 = vsub.s32 0, %v768
        %v770 = vrot.slane %v749, %v769
        %v772 = vmul.f32 %v765, %v770
        %v774 = vlaneseq
        %v775 = vshrl.u32 %v774, 7
        %v776 = vsub.s32 0, %v775
        %v777 = vrot.slane %v750, %v776
        %v779 = vadd.f32 %v772, %v777
        %v780 = vld [vmem:[%s4] sm:$0xf]
        %v781 = vld [vmem:[%s4 + $0x4] sm:$0xf]
        %v782 = vld [vmem:[%s4 + $0x8] sm:$0xf]
        %v783 = vld [vmem:[%s4 + $0xc] sm:$0xf]
        %v784 = vpack.c.bf16 %v779, %v779
        %v785 = vld [vmem:[%s5] sm:$0x1]
        %v787 = vlaneseq
        %v788 = vshrl.u32 %v787, 7
        %v789 = vsub.s32 0, %v788
        %v790 = vrot.slane %v785, %v789
        %v796 = vunpack.c.l.b16 %v780
        %v797 = vunpack.c.l.b16 %v781
        %v798 = vunpack.c.l.b16 %v782
        %v799 = vunpack.c.l.b16 %v783
        %v800 = vpack.c.b16 %v797, %v796
        %v801 = vpack.c.b16 %v799, %v798
        %v805 = vsel %vm751, %v784, 0
        %807 = vmatprep.subr.bf16.mxu0 0
        %808 = vmatpush1.bf16.msra.mxu0 %v800
        %809 = vmatprep.subr.bf16.mxu0 0
        %810 = vmatpush1.bf16.msra.mxu0 %v801
        %811 = vmatprep.subr.bf16.mxu0 0
        %812 = vmatpush1.bf16.msra.mxu0 0
        %813 = vmatprep.subr.bf16.mxu0 0
        %814 = vmatpush1.bf16.msra.mxu0 0
        %815 = vmatprep.subr.bf16.mxu0 0
        %816 = vmatpush1.bf16.msra.mxu0 0
        %817 = vmatprep.subr.bf16.mxu0 0
        %818 = vmatpush1.bf16.msra.mxu0 0
        %819 = vmatprep.subr.bf16.mxu0 0
        %820 = vmatpush1.bf16.msra.mxu0 0
        %821 = vmatprep.subr.bf16.mxu0 0
        %822 = vmatpush1.bf16.msra.mxu0 0
        %823 = vmatprep.subr.bf16.mxu0 0
        %824 = vmatpush1.bf16.msra.mxu0 0
        %825 = vmatprep.subr.bf16.mxu0 0
        %826 = vmatpush1.bf16.msra.mxu0 0
        %827 = vmatprep.subr.bf16.mxu0 0
        %828 = vmatpush1.bf16.msra.mxu0 0
        %829 = vmatprep.subr.bf16.mxu0 0
        %830 = vmatpush1.bf16.msra.mxu0 0
        %831 = vmatprep.subr.bf16.mxu0 0
        %832 = vmatpush1.bf16.msra.mxu0 0
        %833 = vmatprep.subr.bf16.mxu0 0
        %834 = vmatpush1.bf16.msra.mxu0 0
        %835 = vmatprep.subr.bf16.mxu0 0
        %836 = vmatpush1.bf16.msra.mxu0 0
        %837 = vmatprep.subr.bf16.mxu0 0
        %838 = vmatpush1.bf16.msra.mxu0 0
        %839 = vmatprep.mubr.bf16.mxu0 0
        %840 = vmatmul.mubr.bf16.gmra.mrb[0].mxu0 %v805
        %v841 = vpop.f32.mrb[0].mxu0
        %v842 = vadd.f32 %v790, %v841
        %v843 = vpop.f32.mrb[0].mxu0
        %v844 = vpop.f32.mrb[0].mxu0
        %v845 = vpop.f32.mrb[0].mxu0
        %846 = vdwg.mxu0
        %v847 = vmul.f32 %v842, 0.35355338
        %v848 = vld [vmem:[%s6] sm:$0xf]
        %v849 = vld [vmem:[%s6 + $0x4] sm:$0xf]
        %v850 = vld [vmem:[%s6 + $0x8] sm:$0xf]
        %v851 = vld [vmem:[%s6 + $0xc] sm:$0xf]
        %v852 = vld [vmem:[%s7] sm:$0x1]
        %v854 = vlaneseq
        %v855 = vshrl.u32 %v854, 7
        %v856 = vsub.s32 0, %v855
        %v857 = vrot.slane %v852, %v856
        %v863 = vunpack.c.l.b16 %v848
        %v864 = vunpack.c.l.b16 %v849
        %v865 = vunpack.c.l.b16 %v850
        %v866 = vunpack.c.l.b16 %v851
        %v867 = vpack.c.b16 %v864, %v863
        %v868 = vpack.c.b16 %v866, %v865
        %871 = vmatprep.subr.bf16.mxu0 0
        %872 = vmatpush1.bf16.msra.mxu0 %v867
        %873 = vmatprep.subr.bf16.mxu0 0
        %874 = vmatpush1.bf16.msra.mxu0 %v868
        %875 = vmatprep.subr.bf16.mxu0 0
        %876 = vmatpush1.bf16.msra.mxu0 0
        %877 = vmatprep.subr.bf16.mxu0 0
        %878 = vmatpush1.bf16.msra.mxu0 0
        %879 = vmatprep.subr.bf16.mxu0 0
        %880 = vmatpush1.bf16.msra.mxu0 0
        %881 = vmatprep.subr.bf16.mxu0 0
        %882 = vmatpush1.bf16.msra.mxu0 0
        %883 = vmatprep.subr.bf16.mxu0 0
        %884 = vmatpush1.bf16.msra.mxu0 0
        %885 = vmatprep.subr.bf16.mxu0 0
        %886 = vmatpush1.bf16.msra.mxu0 0
        %887 = vmatprep.subr.bf16.mxu0 0
        %888 = vmatpush1.bf16.msra.mxu0 0
        %889 = vmatprep.subr.bf16.mxu0 0
        %890 = vmatpush1.bf16.msra.mxu0 0
        %891 = vmatprep.subr.bf16.mxu0 0
        %892 = vmatpush1.bf16.msra.mxu0 0
        %893 = vmatprep.subr.bf16.mxu0 0
        %894 = vmatpush1.bf16.msra.mxu0 0
        %895 = vmatprep.subr.bf16.mxu0 0
        %896 = vmatpush1.bf16.msra.mxu0 0
        %897 = vmatprep.subr.bf16.mxu0 0
        %898 = vmatpush1.bf16.msra.mxu0 0
        %899 = vmatprep.subr.bf16.mxu0 0
        %900 = vmatpush1.bf16.msra.mxu0 0
        %901 = vmatprep.subr.bf16.mxu0 0
        %902 = vmatpush1.bf16.msra.mxu0 0
        %903 = vmatprep.mubr.bf16.mxu0 0
        %904 = vmatmul.mubr.bf16.gmra.mrb[0].mxu0 %v805
        %v905 = vpop.f32.mrb[0].mxu0
        %v906 = vadd.f32 %v857, %v905
        %v907 = vpop.f32.mrb[0].mxu0
        %v908 = vpop.f32.mrb[0].mxu0
        %v909 = vpop.f32.mrb[0].mxu0
        %910 = vdwg.mxu0
        %v911 = vld [vmem:[%s8] sm:$0xf]
        %v912 = vld [vmem:[%s8 + $0x4] sm:$0xf]
        %v913 = vld [vmem:[%s8 + $0x8] sm:$0xf]
        %v914 = vld [vmem:[%s8 + $0xc] sm:$0xf]
        %v915 = vld [vmem:[%s9] sm:$0x1]
        %v917 = vlaneseq
        %v918 = vshrl.u32 %v917, 7
        %v919 = vsub.s32 0, %v918
        %v920 = vrot.slane %v915, %v919
        %v926 = vunpack.c.l.b16 %v911
        %v927 = vunpack.c.l.b16 %v912
        %v928 = vunpack.c.l.b16 %v913
        %v929 = vunpack.c.l.b16 %v914
        %v930 = vpack.c.b16 %v927, %v926
        %v931 = vpack.c.b16 %v929, %v928
        %934 = vmatprep.subr.bf16.mxu0 0
        %935 = vmatpush1.bf16.msra.mxu0 %v930
        %936 = vmatprep.subr.bf16.mxu0 0
        %937 = vmatpush1.bf16.msra.mxu0 %v931
        %938 = vmatprep.subr.bf16.mxu0 0
        %939 = vmatpush1.bf16.msra.mxu0 0
        %940 = vmatprep.subr.bf16.mxu0 0
        %941 = vmatpush1.bf16.msra.mxu0 0
        %942 = vmatprep.subr.bf16.mxu0 0
        %943 = vmatpush1.bf16.msra.mxu0 0
        %944 = vmatprep.subr.bf16.mxu0 0
        %945 = vmatpush1.bf16.msra.mxu0 0
        %946 = vmatprep.subr.bf16.mxu0 0
        %947 = vmatpush1.bf16.msra.mxu0 0
        %948 = vmatprep.subr.bf16.mxu0 0
        %949 = vmatpush1.bf16.msra.mxu0 0
        %950 = vmatprep.subr.bf16.mxu0 0
        %951 = vmatpush1.bf16.msra.mxu0 0
        %952 = vmatprep.subr.bf16.mxu0 0
        %953 = vmatpush1.bf16.msra.mxu0 0
        %954 = vmatprep.subr.bf16.mxu0 0
        %955 = vmatpush1.bf16.msra.mxu0 0
        %956 = vmatprep.subr.bf16.mxu0 0
        %957 = vmatpush1.bf16.msra.mxu0 0
        %958 = vmatprep.subr.bf16.mxu0 0
        %959 = vmatpush1.bf16.msra.mxu0 0
        %960 = vmatprep.subr.bf16.mxu0 0
        %961 = vmatpush1.bf16.msra.mxu0 0
        %962 = vmatprep.subr.bf16.mxu0 0
        %963 = vmatpush1.bf16.msra.mxu0 0
        %964 = vmatprep.subr.bf16.mxu0 0
        %965 = vmatpush1.bf16.msra.mxu0 0
        %966 = vmatprep.mubr.bf16.mxu0 0
        %967 = vmatmul.mubr.bf16.gmra.mrb[0].mxu0 %v805
        %v968 = vpop.f32.mrb[0].mxu0
        %v969 = vadd.f32 %v920, %v968
        %v970 = vpop.f32.mrb[0].mxu0
        %v971 = vpop.f32.mrb[0].mxu0
        %v972 = vpop.f32.mrb[0].mxu0
        %973 = vdwg.mxu0
        %v974 = vpack.c.bf16 %v847, %v847
        %v975 = vpack.c.bf16 %v906, %v906
        %v977 = vlaneseq
        %v978 = vshrl.u32 %v977, 7
        %v979 = vsub.s32 0, %v978
        %v980 = vrot.slane %v747, %v979
        %vm982 = vcmask 64512
        %v984 = vsel %vm982, %v974, 0
        %v987 = vsel %vm982, %v975, 0
        %989 = vmatprep.subr.bf16.mxu0 0
        %990 = vmatpush1.bf16.xpose.msra.mxu0 %v987
        %991 = vmatprep.subr.bf16.mxu0 0
        %992 = vmatpush1.bf16.xpose.msra.mxu0 0
        %993 = vmatprep.subr.bf16.mxu0 0
        %994 = vmatpush1.bf16.xpose.msra.mxu0 0
        %995 = vmatprep.subr.bf16.mxu0 0
        %996 = vmatpush1.bf16.xpose.msra.mxu0 0
        %997 = vmatprep.subr.bf16.mxu0 0
        %998 = vmatpush1.bf16.xpose.msra.mxu0 0
        %999 = vmatprep.subr.bf16.mxu0 0
        %1000 = vmatpush1.bf16.xpose.msra.mxu0 0
        %1001 = vmatprep.subr.bf16.mxu0 0
        %1002 = vmatpush1.bf16.xpose.msra.mxu0 0
        %1003 = vmatprep.subr.bf16.mxu0 0
        %1004 = vmatpush1.bf16.xpose.msra.mxu0 0
        %1005 = vmatprep.subr.bf16.mxu0 0
        %1006 = vmatpush1.bf16.xpose.msra.mxu0 0
        %1007 = vmatprep.subr.bf16.mxu0 0
        %1008 = vmatpush1.bf16.xpose.msra.mxu0 0
        %1009 = vmatprep.subr.bf16.mxu0 0
        %1010 = vmatpush1.bf16.xpose.msra.mxu0 0
        %1011 = vmatprep.subr.bf16.mxu0 0
        %1012 = vmatpush1.bf16.xpose.msra.mxu0 0
        %1013 = vmatprep.subr.bf16.mxu0 0
        %1014 = vmatpush1.bf16.xpose.msra.mxu0 0
        %1015 = vmatprep.subr.bf16.mxu0 0
        %1016 = vmatpush1.bf16.xpose.msra.mxu0 0
        %1017 = vmatprep.subr.bf16.mxu0 0
        %1018 = vmatpush1.bf16.xpose.msra.mxu0 0
        %1019 = vmatprep.subr.bf16.mxu0 0
        %1020 = vmatpush1.bf16.xpose.msra.mxu0 0
        %1021 = vmatprep.mubr.bf16.mxu0 0
        %1022 = vmatmul.mubr.bf16.gmra.mrb[0].mxu0 %v984
        %v1023 = vpop.f32.mrb[0].mxu0
        %v1024 = vadd.f32 %v980, %v1023
        %v1025 = vpop.f32.mrb[0].mxu0
        %v1026 = vpop.f32.mrb[0].mxu0
        %v1027 = vpop.f32.mrb[0].mxu0
        %1028 = vdwg.mxu0
        %v1029 = vsel %vm982, %v1024, -inf
        %1030 = vmax.xlane.f32.xlu0 %v1029
        %v1031 = vpop.xlane.xlu0 %1030
        %v1032 = vsub.f32 %v1024, %v1031
        %v1033 = vmul.f32 %v1032, 1.442695
        %v1034 = vpow.pop %v1033
        %v1035 = vsel %vm982, %v1034, 0.0
        %1036 = vadd.xlane.f32.xlu0 %v1035
        %v1037 = vpop.xlane.xlu0 %1036
        %v1038 = vrcp.pop %v1037
        %v1039 = vmul.f32 %v1034, %v1038
        %v1040 = vpack.c.bf16 %v969, %v969
        %v1041 = vpack.c.bf16 %v1039, %v1039
        %v1043 = vsel %vm982, %v1041, 0
        %vm1045 = vcmask 1043456
        %v1047 = vsel %vm1045, %v1040, 0
        %1049 = vmatprep.subr.bf16.mxu0 0
        %1050 = vmatpush1.bf16.msra.mxu0 %v1047
        %1051 = vmatprep.subr.bf16.mxu0 0
        %1052 = vmatpush1.bf16.msra.mxu0 0
        %1053 = vmatprep.subr.bf16.mxu0 0
        %1054 = vmatpush1.bf16.msra.mxu0 0
        %1055 = vmatprep.subr.bf16.mxu0 0
        %1056 = vmatpush1.bf16.msra.mxu0 0
        %1057 = vmatprep.subr.bf16.mxu0 0
        %1058 = vmatpush1.bf16.msra.mxu0 0
        %1059 = vmatprep.subr.bf16.mxu0 0
        %1060 = vmatpush1.bf16.msra.mxu0 0
        %1061 = vmatprep.subr.bf16.mxu0 0
        %1062 = vmatpush1.bf16.msra.mxu0 0
        %1063 = vmatprep.subr.bf16.mxu0 0
        %1064 = vmatpush1.bf16.msra.mxu0 0
        %1065 = vmatprep.subr.bf16.mxu0 0
        %1066 = vmatpush1.bf16.msra.mxu0 0
        %1067 = vmatprep.subr.bf16.mxu0 0
        %1068 = vmatpush1.bf16.msra.mxu0 0
        %1069 = vmatprep.subr.bf16.mxu0 0
        %1070 = vmatpush1.bf16.msra.mxu0 0
        %1071 = vmatprep.subr.bf16.mxu0 0
        %1072 = vmatpush1.bf16.msra.mxu0 0
        %1073 = vmatprep.subr.bf16.mxu0 0
        %1074 = vmatpush1.bf16.msra.mxu0 0
        %1075 = vmatprep.subr.bf16.mxu0 0
        %1076 = vmatpush1.bf16.msra.mxu0 0
        %1077 = vmatprep.subr.bf16.mxu0 0
        %1078 = vmatpush1.bf16.msra.mxu0 0
        %1079 = vmatprep.subr.bf16.mxu0 0
        %1080 = vmatpush1.bf16.msra.mxu0 0
        %1081 = vmatprep.mubr.bf16.mxu0 0
        %1082 = vmatmul.mubr.bf16.gmra.mrb[0].mxu0 %v1043
        %v1083 = vpop.f32.mrb[0].mxu0
        %v1084 = vadd.f32 0.0, %v1083
        %v1085 = vpop.f32.mrb[0].mxu0
        %v1086 = vpop.f32.mrb[0].mxu0
        %v1087 = vpop.f32.mrb[0].mxu0
        %1088 = vdwg.mxu0
        %v1089 = vld [vmem:[%s10] sm:$0xf]
        %v1090 = vpack.c.bf16 %v1084, %v1084
        %s1091 = scalar_lea.vmem %s4, 16
        %v1092 = vld [vmem:[%s1091] sm:$0xf]
        %v1093 = vld [vmem:[%s1091 + $0x4] sm:$0xf]
        %v1094 = vld [vmem:[%s1091 + $0x8] sm:$0xf]
        %v1095 = vld [vmem:[%s1091 + $0xc] sm:$0xf]
        %s1096 = scalar_lea.vmem %s5, 1
        %v1097 = vld [vmem:[%s1096] sm:$0x1]
        %v1099 = vlaneseq
        %v1100 = vshrl.u32 %v1099, 7
        %v1101 = vsub.s32 0, %v1100
        %v1102 = vrot.slane %v1097, %v1101
        %v1108 = vunpack.c.l.b16 %v1092
        %v1109 = vunpack.c.l.b16 %v1093
        %v1110 = vunpack.c.l.b16 %v1094
        %v1111 = vunpack.c.l.b16 %v1095
        %v1112 = vpack.c.b16 %v1109, %v1108
        %v1113 = vpack.c.b16 %v1111, %v1110
        %1116 = vmatprep.subr.bf16.mxu0 0
        %1117 = vmatpush1.bf16.msra.mxu0 %v1112
        %1118 = vmatprep.subr.bf16.mxu0 0
        %1119 = vmatpush1.bf16.msra.mxu0 %v1113
        %1120 = vmatprep.subr.bf16.mxu0 0
        %1121 = vmatpush1.bf16.msra.mxu0 0
        %1122 = vmatprep.subr.bf16.mxu0 0
        %1123 = vmatpush1.bf16.msra.mxu0 0
        %1124 = vmatprep.subr.bf16.mxu0 0
        %1125 = vmatpush1.bf16.msra.mxu0 0
        %1126 = vmatprep.subr.bf16.mxu0 0
        %1127 = vmatpush1.bf16.msra.mxu0 0
        %1128 = vmatprep.subr.bf16.mxu0 0
        %1129 = vmatpush1.bf16.msra.mxu0 0
        %1130 = vmatprep.subr.bf16.mxu0 0
        %1131 = vmatpush1.bf16.msra.mxu0 0
        %1132 = vmatprep.subr.bf16.mxu0 0
        %1133 = vmatpush1.bf16.msra.mxu0 0
        %1134 = vmatprep.subr.bf16.mxu0 0
        %1135 = vmatpush1.bf16.msra.mxu0 0
        %1136 = vmatprep.subr.bf16.mxu0 0
        %1137 = vmatpush1.bf16.msra.mxu0 0
        %1138 = vmatprep.subr.bf16.mxu0 0
        %1139 = vmatpush1.bf16.msra.mxu0 0
        %1140 = vmatprep.subr.bf16.mxu0 0
        %1141 = vmatpush1.bf16.msra.mxu0 0
        %1142 = vmatprep.subr.bf16.mxu0 0
        %1143 = vmatpush1.bf16.msra.mxu0 0
        %1144 = vmatprep.subr.bf16.mxu0 0
        %1145 = vmatpush1.bf16.msra.mxu0 0
        %1146 = vmatprep.subr.bf16.mxu0 0
        %1147 = vmatpush1.bf16.msra.mxu0 0
        %1148 = vmatprep.mubr.bf16.mxu0 0
        %1149 = vmatmul.mubr.bf16.gmra.mrb[0].mxu0 %v805
        %v1150 = vpop.f32.mrb[0].mxu0
        %v1151 = vadd.f32 %v1102, %v1150
        %v1152 = vpop.f32.mrb[0].mxu0
        %v1153 = vpop.f32.mrb[0].mxu0
        %v1154 = vpop.f32.mrb[0].mxu0
        %1155 = vdwg.mxu0
        %v1156 = vmul.f32 %v1151, 0.35355338
        %s1157 = scalar_lea.vmem %s6, 16
        %v1158 = vld [vmem:[%s1157] sm:$0xf]
        %v1159 = vld [vmem:[%s1157 + $0x4] sm:$0xf]
        %v1160 = vld [vmem:[%s1157 + $0x8] sm:$0xf]
        %v1161 = vld [vmem:[%s1157 + $0xc] sm:$0xf]
        %s1162 = scalar_lea.vmem %s7, 1
        %v1163 = vld [vmem:[%s1162] sm:$0x1]
        %v1165 = vlaneseq
        %v1166 = vshrl.u32 %v1165, 7
        %v1167 = vsub.s32 0, %v1166
        %v1168 = vrot.slane %v1163, %v1167
        %v1174 = vunpack.c.l.b16 %v1158
        %v1175 = vunpack.c.l.b16 %v1159
        %v1176 = vunpack.c.l.b16 %v1160
        %v1177 = vunpack.c.l.b16 %v1161
        %v1178 = vpack.c.b16 %v1175, %v1174
        %v1179 = vpack.c.b16 %v1177, %v1176
        %1182 = vmatprep.subr.bf16.mxu0 0
        %1183 = vmatpush1.bf16.msra.mxu0 %v1178
        %1184 = vmatprep.subr.bf16.mxu0 0
        %1185 = vmatpush1.bf16.msra.mxu0 %v1179
        %1186 = vmatprep.subr.bf16.mxu0 0
        %1187 = vmatpush1.bf16.msra.mxu0 0
        %1188 = vmatprep.subr.bf16.mxu0 0
        %1189 = vmatpush1.bf16.msra.mxu0 0
        %1190 = vmatprep.subr.bf16.mxu0 0
        %1191 = vmatpush1.bf16.msra.mxu0 0
        %1192 = vmatprep.subr.bf16.mxu0 0
        %1193 = vmatpush1.bf16.msra.mxu0 0
        %1194 = vmatprep.subr.bf16.mxu0 0
        %1195 = vmatpush1.bf16.msra.mxu0 0
        %1196 = vmatprep.subr.bf16.mxu0 0
        %1197 = vmatpush1.bf16.msra.mxu0 0
        %1198 = vmatprep.subr.bf16.mxu0 0
        %1199 = vmatpush1.bf16.msra.mxu0 0
        %1200 = vmatprep.subr.bf16.mxu0 0
        %1201 = vmatpush1.bf16.msra.mxu0 0
        %1202 = vmatprep.subr.bf16.mxu0 0
        %1203 = vmatpush1.bf16.msra.mxu0 0
        %1204 = vmatprep.subr.bf16.mxu0 0
        %1205 = vmatpush1.bf16.msra.mxu0 0
        %1206 = vmatprep.subr.bf16.mxu0 0
        %1207 = vmatpush1.bf16.msra.mxu0 0
        %1208 = vmatprep.subr.bf16.mxu0 0
        %1209 = vmatpush1.bf16.msra.mxu0 0
        %1210 = vmatprep.subr.bf16.mxu0 0
        %1211 = vmatpush1.bf16.msra.mxu0 0
        %1212 = vmatprep.subr.bf16.mxu0 0
        %1213 = vmatpush1.bf16.msra.mxu0 0
        %1214 = vmatprep.mubr.bf16.mxu0 0
        %1215 = vmatmul.mubr.bf16.gmra.mrb[0].mxu0 %v805
        %v1216 = vpop.f32.mrb[0].mxu0
        %v1217 = vadd.f32 %v1168, %v1216
        %v1218 = vpop.f32.mrb[0].mxu0
        %v1219 = vpop.f32.mrb[0].mxu0
        %v1220 = vpop.f32.mrb[0].mxu0
        %1221 = vdwg.mxu0
        %s1222 = scalar_lea.vmem %s8, 16
        %v1223 = vld [vmem:[%s1222] sm:$0xf]
        %v1224 = vld [vmem:[%s1222 + $0x4] sm:$0xf]
        %v1225 = vld [vmem:[%s1222 + $0x8] sm:$0xf]
        %v1226 = vld [vmem:[%s1222 + $0xc] sm:$0xf]
        %s1227 = scalar_lea.vmem %s9, 1
        %v1228 = vld [vmem:[%s1227] sm:$0x1]
        %v1230 = vlaneseq
        %v1231 = vshrl.u32 %v1230, 7
        %v1232 = vsub.s32 0, %v1231
        %v1233 = vrot.slane %v1228, %v1232
        %v1239 = vunpack.c.l.b16 %v1223
        %v1240 = vunpack.c.l.b16 %v1224
        %v1241 = vunpack.c.l.b16 %v1225
        %v1242 = vunpack.c.l.b16 %v1226
        %v1243 = vpack.c.b16 %v1240, %v1239
        %v1244 = vpack.c.b16 %v1242, %v1241
        %1247 = vmatprep.subr.bf16.mxu0 0
        %1248 = vmatpush1.bf16.msra.mxu0 %v1243
        %1249 = vmatprep.subr.bf16.mxu0 0
        %1250 = vmatpush1.bf16.msra.mxu0 %v1244
        %1251 = vmatprep.subr.bf16.mxu0 0
        %1252 = vmatpush1.bf16.msra.mxu0 0
        %1253 = vmatprep.subr.bf16.mxu0 0
        %1254 = vmatpush1.bf16.msra.mxu0 0
        %1255 = vmatprep.subr.bf16.mxu0 0
        %1256 = vmatpush1.bf16.msra.mxu0 0
        %1257 = vmatprep.subr.bf16.mxu0 0
        %1258 = vmatpush1.bf16.msra.mxu0 0
        %1259 = vmatprep.subr.bf16.mxu0 0
        %1260 = vmatpush1.bf16.msra.mxu0 0
        %1261 = vmatprep.subr.bf16.mxu0 0
        %1262 = vmatpush1.bf16.msra.mxu0 0
        %1263 = vmatprep.subr.bf16.mxu0 0
        %1264 = vmatpush1.bf16.msra.mxu0 0
        %1265 = vmatprep.subr.bf16.mxu0 0
        %1266 = vmatpush1.bf16.msra.mxu0 0
        %1267 = vmatprep.subr.bf16.mxu0 0
        %1268 = vmatpush1.bf16.msra.mxu0 0
        %1269 = vmatprep.subr.bf16.mxu0 0
        %1270 = vmatpush1.bf16.msra.mxu0 0
        %1271 = vmatprep.subr.bf16.mxu0 0
        %1272 = vmatpush1.bf16.msra.mxu0 0
        %1273 = vmatprep.subr.bf16.mxu0 0
        %1274 = vmatpush1.bf16.msra.mxu0 0
        %1275 = vmatprep.subr.bf16.mxu0 0
        %1276 = vmatpush1.bf16.msra.mxu0 0
        %1277 = vmatprep.subr.bf16.mxu0 0
        %1278 = vmatpush1.bf16.msra.mxu0 0
        %1279 = vmatprep.mubr.bf16.mxu0 0
        %1280 = vmatmul.mubr.bf16.gmra.mrb[0].mxu0 %v805
        %v1281 = vpop.f32.mrb[0].mxu0
        %v1282 = vadd.f32 %v1233, %v1281
        %v1283 = vpop.f32.mrb[0].mxu0
        %v1284 = vpop.f32.mrb[0].mxu0
        %v1285 = vpop.f32.mrb[0].mxu0
        %1286 = vdwg.mxu0
        %v1287 = vpack.c.bf16 %v1156, %v1156
        %v1288 = vpack.c.bf16 %v1217, %v1217
        %v1290 = vsel %vm982, %v1287, 0
        %v1293 = vsel %vm982, %v1288, 0
        %1295 = vmatprep.subr.bf16.mxu0 0
        %1296 = vmatpush1.bf16.xpose.msra.mxu0 %v1293
        %1297 = vmatprep.subr.bf16.mxu0 0
        %1298 = vmatpush1.bf16.xpose.msra.mxu0 0
        %1299 = vmatprep.subr.bf16.mxu0 0
        %1300 = vmatpush1.bf16.xpose.msra.mxu0 0
        %1301 = vmatprep.subr.bf16.mxu0 0
        %1302 = vmatpush1.bf16.xpose.msra.mxu0 0
        %1303 = vmatprep.subr.bf16.mxu0 0
        %1304 = vmatpush1.bf16.xpose.msra.mxu0 0
        %1305 = vmatprep.subr.bf16.mxu0 0
        %1306 = vmatpush1.bf16.xpose.msra.mxu0 0
        %1307 = vmatprep.subr.bf16.mxu0 0
        %1308 = vmatpush1.bf16.xpose.msra.mxu0 0
        %1309 = vmatprep.subr.bf16.mxu0 0
        %1310 = vmatpush1.bf16.xpose.msra.mxu0 0
        %1311 = vmatprep.subr.bf16.mxu0 0
        %1312 = vmatpush1.bf16.xpose.msra.mxu0 0
        %1313 = vmatprep.subr.bf16.mxu0 0
        %1314 = vmatpush1.bf16.xpose.msra.mxu0 0
        %1315 = vmatprep.subr.bf16.mxu0 0
        %1316 = vmatpush1.bf16.xpose.msra.mxu0 0
        %1317 = vmatprep.subr.bf16.mxu0 0
        %1318 = vmatpush1.bf16.xpose.msra.mxu0 0
        %1319 = vmatprep.subr.bf16.mxu0 0
        %1320 = vmatpush1.bf16.xpose.msra.mxu0 0
        %1321 = vmatprep.subr.bf16.mxu0 0
        %1322 = vmatpush1.bf16.xpose.msra.mxu0 0
        %1323 = vmatprep.subr.bf16.mxu0 0
        %1324 = vmatpush1.bf16.xpose.msra.mxu0 0
        %1325 = vmatprep.subr.bf16.mxu0 0
        %1326 = vmatpush1.bf16.xpose.msra.mxu0 0
        %1327 = vmatprep.mubr.bf16.mxu0 0
        %1328 = vmatmul.mubr.bf16.gmra.mrb[0].mxu0 %v1290
        %v1329 = vpop.f32.mrb[0].mxu0
        %v1330 = vadd.f32 %v980, %v1329
        %v1331 = vpop.f32.mrb[0].mxu0
        %v1332 = vpop.f32.mrb[0].mxu0
        %v1333 = vpop.f32.mrb[0].mxu0
        %1334 = vdwg.mxu0
        %v1335 = vsel %vm982, %v1330, -inf
        %1336 = vmax.xlane.f32.xlu0 %v1335
        %v1337 = vpop.xlane.xlu0 %1336
        %v1338 = vsub.f32 %v1330, %v1337
        %v1339 = vmul.f32 %v1338, 1.442695
        %v1340 = vpow.pop %v1339
        %v1341 = vsel %vm982, %v1340, 0.0
        %1342 = vadd.xlane.f32.xlu0 %v1341
        %v1343 = vpop.xlane.xlu0 %1342
        %v1344 = vrcp.pop %v1343
        %v1345 = vmul.f32 %v1340, %v1344
        %v1346 = vpack.c.bf16 %v1282, %v1282
        %v1347 = vpack.c.bf16 %v1345, %v1345
        %v1349 = vsel %vm982, %v1347, 0
        %v1352 = vsel %vm1045, %v1346, 0
        %1354 = vmatprep.subr.bf16.mxu0 0
        %1355 = vmatpush1.bf16.msra.mxu0 %v1352
        %1356 = vmatprep.subr.bf16.mxu0 0
        %1357 = vmatpush1.bf16.msra.mxu0 0
        %1358 = vmatprep.subr.bf16.mxu0 0
        %1359 = vmatpush1.bf16.msra.mxu0 0
        %1360 = vmatprep.subr.bf16.mxu0 0
        %1361 = vmatpush1.bf16.msra.mxu0 0
        %1362 = vmatprep.subr.bf16.mxu0 0
        %1363 = vmatpush1.bf16.msra.mxu0 0
        %1364 = vmatprep.subr.bf16.mxu0 0
        %1365 = vmatpush1.bf16.msra.mxu0 0
        %1366 = vmatprep.subr.bf16.mxu0 0
        %1367 = vmatpush1.bf16.msra.mxu0 0
        %1368 = vmatprep.subr.bf16.mxu0 0
        %1369 = vmatpush1.bf16.msra.mxu0 0
        %1370 = vmatprep.subr.bf16.mxu0 0
        %1371 = vmatpush1.bf16.msra.mxu0 0
        %1372 = vmatprep.subr.bf16.mxu0 0
        %1373 = vmatpush1.bf16.msra.mxu0 0
        %1374 = vmatprep.subr.bf16.mxu0 0
        %1375 = vmatpush1.bf16.msra.mxu0 0
        %1376 = vmatprep.subr.bf16.mxu0 0
        %1377 = vmatpush1.bf16.msra.mxu0 0
        %1378 = vmatprep.subr.bf16.mxu0 0
        %1379 = vmatpush1.bf16.msra.mxu0 0
        %1380 = vmatprep.subr.bf16.mxu0 0
        %1381 = vmatpush1.bf16.msra.mxu0 0
        %1382 = vmatprep.subr.bf16.mxu0 0
        %1383 = vmatpush1.bf16.msra.mxu0 0
        %1384 = vmatprep.subr.bf16.mxu0 0
        %1385 = vmatpush1.bf16.msra.mxu0 0
        %1386 = vmatprep.mubr.bf16.mxu0 0
        %1387 = vmatmul.mubr.bf16.gmra.mrb[0].mxu0 %v1349
        %v1388 = vpop.f32.mrb[0].mxu0
        %v1389 = vadd.f32 0.0, %v1388
        %v1390 = vpop.f32.mrb[0].mxu0
        %v1391 = vpop.f32.mrb[0].mxu0
        %v1392 = vpop.f32.mrb[0].mxu0
        %1393 = vdwg.mxu0
        %s1394 = scalar_lea.vmem %s10, 4
        %v1395 = vld [vmem:[%s1394] sm:$0xf]
        %v1396 = vpack.c.bf16 %v1389, %v1389
        %v1398 = vsel %vm982, %v1396, 0
        %v1401 = vsel %vm1045, %v1395, 0
        %1403 = vmatprep.subr.bf16.mxu0 0
        %1404 = vmatpush1.bf16.msra.mxu0 %v1401
        %1405 = vmatprep.subr.bf16.mxu0 0
        %1406 = vmatpush1.bf16.msra.mxu0 0
        %1407 = vmatprep.subr.bf16.mxu0 0
        %1408 = vmatpush1.bf16.msra.mxu0 0
        %1409 = vmatprep.subr.bf16.mxu0 0
        %1410 = vmatpush1.bf16.msra.mxu0 0
        %1411 = vmatprep.subr.bf16.mxu0 0
        %1412 = vmatpush1.bf16.msra.mxu0 0
        %1413 = vmatprep.subr.bf16.mxu0 0
        %1414 = vmatpush1.bf16.msra.mxu0 0
        %1415 = vmatprep.subr.bf16.mxu0 0
        %1416 = vmatpush1.bf16.msra.mxu0 0
        %1417 = vmatprep.subr.bf16.mxu0 0
        %1418 = vmatpush1.bf16.msra.mxu0 0
        %1419 = vmatprep.subr.bf16.mxu0 0
        %1420 = vmatpush1.bf16.msra.mxu0 0
        %1421 = vmatprep.subr.bf16.mxu0 0
        %1422 = vmatpush1.bf16.msra.mxu0 0
        %1423 = vmatprep.subr.bf16.mxu0 0
        %1424 = vmatpush1.bf16.msra.mxu0 0
        %1425 = vmatprep.subr.bf16.mxu0 0
        %1426 = vmatpush1.bf16.msra.mxu0 0
        %1427 = vmatprep.subr.bf16.mxu0 0
        %1428 = vmatpush1.bf16.msra.mxu0 0
        %1429 = vmatprep.subr.bf16.mxu0 0
        %1430 = vmatpush1.bf16.msra.mxu0 0
        %1431 = vmatprep.subr.bf16.mxu0 0
        %1432 = vmatpush1.bf16.msra.mxu0 0
        %1433 = vmatprep.subr.bf16.mxu0 0
        %1434 = vmatpush1.bf16.msra.mxu0 0
        %1435 = vmatprep.mubr.bf16.mxu0 0
        %1436 = vmatmul.mubr.bf16.gmra.mrb[0].mxu0 %v1398
        %v1437 = vpop.f32.mrb[0].mxu0
        %v1438 = vadd.f32 0.0, %v1437
        %v1439 = vpop.f32.mrb[0].mxu0
        %v1440 = vpop.f32.mrb[0].mxu0
        %v1441 = vpop.f32.mrb[0].mxu0
        %1442 = vdwg.mxu0
        %v1444 = vsel %vm982, %v1090, 0
        %v1447 = vsel %vm1045, %v1089, 0
        %1449 = vmatprep.subr.bf16.mxu0 0
        %1450 = vmatpush1.bf16.msra.mxu0 %v1447
        %1451 = vmatprep.subr.bf16.mxu0 0
        %1452 = vmatpush1.bf16.msra.mxu0 0
        %1453 = vmatprep.subr.bf16.mxu0 0
        %1454 = vmatpush1.bf16.msra.mxu0 0
        %1455 = vmatprep.subr.bf16.mxu0 0
        %1456 = vmatpush1.bf16.msra.mxu0 0
        %1457 = vmatprep.subr.bf16.mxu0 0
        %1458 = vmatpush1.bf16.msra.mxu0 0
        %1459 = vmatprep.subr.bf16.mxu0 0
        %1460 = vmatpush1.bf16.msra.mxu0 0
        %1461 = vmatprep.subr.bf16.mxu0 0
        %1462 = vmatpush1.bf16.msra.mxu0 0
        %1463 = vmatprep.subr.bf16.mxu0 0
        %1464 = vmatpush1.bf16.msra.mxu0 0
        %1465 = vmatprep.subr.bf16.mxu0 0
        %1466 = vmatpush1.bf16.msra.mxu0 0
        %1467 = vmatprep.subr.bf16.mxu0 0
        %1468 = vmatpush1.bf16.msra.mxu0 0
        %1469 = vmatprep.subr.bf16.mxu0 0
        %1470 = vmatpush1.bf16.msra.mxu0 0
        %1471 = vmatprep.subr.bf16.mxu0 0
        %1472 = vmatpush1.bf16.msra.mxu0 0
        %1473 = vmatprep.subr.bf16.mxu0 0
        %1474 = vmatpush1.bf16.msra.mxu0 0
        %1475 = vmatprep.subr.bf16.mxu0 0
        %1476 = vmatpush1.bf16.msra.mxu0 0
        %1477 = vmatprep.subr.bf16.mxu0 0
        %1478 = vmatpush1.bf16.msra.mxu0 0
        %1479 = vmatprep.subr.bf16.mxu0 0
        %1480 = vmatpush1.bf16.msra.mxu0 0
        %1481 = vmatprep.mubr.bf16.mxu0 0
        %1482 = vmatmul.mubr.bf16.gmra.mrb[0].mxu0 %v1444
        %v1483 = vpop.f32.mrb[0].mxu0
        %v1484 = vadd.f32 %v1438, %v1483
        %v1485 = vpop.f32.mrb[0].mxu0
        %v1486 = vpop.f32.mrb[0].mxu0
        %v1487 = vpop.f32.mrb[0].mxu0
        %1488 = vdwg.mxu0
        %s1489 = scalar_lea.vmem %s4, 32
        %v1490 = vld [vmem:[%s1489] sm:$0xf]
        %v1491 = vld [vmem:[%s1489 + $0x4] sm:$0xf]
        %v1492 = vld [vmem:[%s1489 + $0x8] sm:$0xf]
        %v1493 = vld [vmem:[%s1489 + $0xc] sm:$0xf]
        %s1494 = scalar_lea.vmem %s5, 2
        %v1495 = vld [vmem:[%s1494] sm:$0x1]
        %v1497 = vlaneseq
        %v1498 = vshrl.u32 %v1497, 7
        %v1499 = vsub.s32 0, %v1498
        %v1500 = vrot.slane %v1495, %v1499
        %v1506 = vunpack.c.l.b16 %v1490
        %v1507 = vunpack.c.l.b16 %v1491
        %v1508 = vunpack.c.l.b16 %v1492
        %v1509 = vunpack.c.l.b16 %v1493
        %v1510 = vpack.c.b16 %v1507, %v1506
        %v1511 = vpack.c.b16 %v1509, %v1508
        %1514 = vmatprep.subr.bf16.mxu0 0
        %1515 = vmatpush1.bf16.msra.mxu0 %v1510
        %1516 = vmatprep.subr.bf16.mxu0 0
        %1517 = vmatpush1.bf16.msra.mxu0 %v1511
        %1518 = vmatprep.subr.bf16.mxu0 0
        %1519 = vmatpush1.bf16.msra.mxu0 0
        %1520 = vmatprep.subr.bf16.mxu0 0
        %1521 = vmatpush1.bf16.msra.mxu0 0
        %1522 = vmatprep.subr.bf16.mxu0 0
        %1523 = vmatpush1.bf16.msra.mxu0 0
        %1524 = vmatprep.subr.bf16.mxu0 0
        %1525 = vmatpush1.bf16.msra.mxu0 0
        %1526 = vmatprep.subr.bf16.mxu0 0
        %1527 = vmatpush1.bf16.msra.mxu0 0
        %1528 = vmatprep.subr.bf16.mxu0 0
        %1529 = vmatpush1.bf16.msra.mxu0 0
        %1530 = vmatprep.subr.bf16.mxu0 0
        %1531 = vmatpush1.bf16.msra.mxu0 0
        %1532 = vmatprep.subr.bf16.mxu0 0
        %1533 = vmatpush1.bf16.msra.mxu0 0
        %1534 = vmatprep.subr.bf16.mxu0 0
        %1535 = vmatpush1.bf16.msra.mxu0 0
        %1536 = vmatprep.subr.bf16.mxu0 0
        %1537 = vmatpush1.bf16.msra.mxu0 0
        %1538 = vmatprep.subr.bf16.mxu0 0
        %1539 = vmatpush1.bf16.msra.mxu0 0
        %1540 = vmatprep.subr.bf16.mxu0 0
        %1541 = vmatpush1.bf16.msra.mxu0 0
        %1542 = vmatprep.subr.bf16.mxu0 0
        %1543 = vmatpush1.bf16.msra.mxu0 0
        %1544 = vmatprep.subr.bf16.mxu0 0
        %1545 = vmatpush1.bf16.msra.mxu0 0
        %1546 = vmatprep.mubr.bf16.mxu0 0
        %1547 = vmatmul.mubr.bf16.gmra.mrb[0].mxu0 %v805
        %v1548 = vpop.f32.mrb[0].mxu0
        %v1549 = vadd.f32 %v1500, %v1548
        %v1550 = vpop.f32.mrb[0].mxu0
        %v1551 = vpop.f32.mrb[0].mxu0
        %v1552 = vpop.f32.mrb[0].mxu0
        %1553 = vdwg.mxu0
        %v1554 = vmul.f32 %v1549, 0.35355338
        %s1555 = scalar_lea.vmem %s6, 32
        %v1556 = vld [vmem:[%s1555] sm:$0xf]
        %v1557 = vld [vmem:[%s1555 + $0x4] sm:$0xf]
        %v1558 = vld [vmem:[%s1555 + $0x8] sm:$0xf]
        %v1559 = vld [vmem:[%s1555 + $0xc] sm:$0xf]
        %s1560 = scalar_lea.vmem %s7, 2
        %v1561 = vld [vmem:[%s1560] sm:$0x1]
        %v1563 = vlaneseq
        %v1564 = vshrl.u32 %v1563, 7
        %v1565 = vsub.s32 0, %v1564
        %v1566 = vrot.slane %v1561, %v1565
        %v1572 = vunpack.c.l.b16 %v1556
        %v1573 = vunpack.c.l.b16 %v1557
        %v1574 = vunpack.c.l.b16 %v1558
        %v1575 = vunpack.c.l.b16 %v1559
        %v1576 = vpack.c.b16 %v1573, %v1572
        %v1577 = vpack.c.b16 %v1575, %v1574
        %1580 = vmatprep.subr.bf16.mxu0 0
        %1581 = vmatpush1.bf16.msra.mxu0 %v1576
        %1582 = vmatprep.subr.bf16.mxu0 0
        %1583 = vmatpush1.bf16.msra.mxu0 %v1577
        %1584 = vmatprep.subr.bf16.mxu0 0
        %1585 = vmatpush1.bf16.msra.mxu0 0
        %1586 = vmatprep.subr.bf16.mxu0 0
        %1587 = vmatpush1.bf16.msra.mxu0 0
        %1588 = vmatprep.subr.bf16.mxu0 0
        %1589 = vmatpush1.bf16.msra.mxu0 0
        %1590 = vmatprep.subr.bf16.mxu0 0
        %1591 = vmatpush1.bf16.msra.mxu0 0
        %1592 = vmatprep.subr.bf16.mxu0 0
        %1593 = vmatpush1.bf16.msra.mxu0 0
        %1594 = vmatprep.subr.bf16.mxu0 0
        %1595 = vmatpush1.bf16.msra.mxu0 0
        %1596 = vmatprep.subr.bf16.mxu0 0
        %1597 = vmatpush1.bf16.msra.mxu0 0
        %1598 = vmatprep.subr.bf16.mxu0 0
        %1599 = vmatpush1.bf16.msra.mxu0 0
        %1600 = vmatprep.subr.bf16.mxu0 0
        %1601 = vmatpush1.bf16.msra.mxu0 0
        %1602 = vmatprep.subr.bf16.mxu0 0
        %1603 = vmatpush1.bf16.msra.mxu0 0
        %1604 = vmatprep.subr.bf16.mxu0 0
        %1605 = vmatpush1.bf16.msra.mxu0 0
        %1606 = vmatprep.subr.bf16.mxu0 0
        %1607 = vmatpush1.bf16.msra.mxu0 0
        %1608 = vmatprep.subr.bf16.mxu0 0
        %1609 = vmatpush1.bf16.msra.mxu0 0
        %1610 = vmatprep.subr.bf16.mxu0 0
        %1611 = vmatpush1.bf16.msra.mxu0 0
        %1612 = vmatprep.mubr.bf16.mxu0 0
        %1613 = vmatmul.mubr.bf16.gmra.mrb[0].mxu0 %v805
        %v1614 = vpop.f32.mrb[0].mxu0
        %v1615 = vadd.f32 %v1566, %v1614
        %v1616 = vpop.f32.mrb[0].mxu0
        %v1617 = vpop.f32.mrb[0].mxu0
        %v1618 = vpop.f32.mrb[0].mxu0
        %1619 = vdwg.mxu0
        %s1620 = scalar_lea.vmem %s8, 32
        %v1621 = vld [vmem:[%s1620] sm:$0xf]
        %v1622 = vld [vmem:[%s1620 + $0x4] sm:$0xf]
        %v1623 = vld [vmem:[%s1620 + $0x8] sm:$0xf]
        %v1624 = vld [vmem:[%s1620 + $0xc] sm:$0xf]
        %s1625 = scalar_lea.vmem %s9, 2
        %v1626 = vld [vmem:[%s1625] sm:$0x1]
        %v1628 = vlaneseq
        %v1629 = vshrl.u32 %v1628, 7
        %v1630 = vsub.s32 0, %v1629
        %v1631 = vrot.slane %v1626, %v1630
        %v1637 = vunpack.c.l.b16 %v1621
        %v1638 = vunpack.c.l.b16 %v1622
        %v1639 = vunpack.c.l.b16 %v1623
        %v1640 = vunpack.c.l.b16 %v1624
        %v1641 = vpack.c.b16 %v1638, %v1637
        %v1642 = vpack.c.b16 %v1640, %v1639
        %1645 = vmatprep.subr.bf16.mxu0 0
        %1646 = vmatpush1.bf16.msra.mxu0 %v1641
        %1647 = vmatprep.subr.bf16.mxu0 0
        %1648 = vmatpush1.bf16.msra.mxu0 %v1642
        %1649 = vmatprep.subr.bf16.mxu0 0
        %1650 = vmatpush1.bf16.msra.mxu0 0
        %1651 = vmatprep.subr.bf16.mxu0 0
        %1652 = vmatpush1.bf16.msra.mxu0 0
        %1653 = vmatprep.subr.bf16.mxu0 0
        %1654 = vmatpush1.bf16.msra.mxu0 0
        %1655 = vmatprep.subr.bf16.mxu0 0
        %1656 = vmatpush1.bf16.msra.mxu0 0
        %1657 = vmatprep.subr.bf16.mxu0 0
        %1658 = vmatpush1.bf16.msra.mxu0 0
        %1659 = vmatprep.subr.bf16.mxu0 0
        %1660 = vmatpush1.bf16.msra.mxu0 0
        %1661 = vmatprep.subr.bf16.mxu0 0
        %1662 = vmatpush1.bf16.msra.mxu0 0
        %1663 = vmatprep.subr.bf16.mxu0 0
        %1664 = vmatpush1.bf16.msra.mxu0 0
        %1665 = vmatprep.subr.bf16.mxu0 0
        %1666 = vmatpush1.bf16.msra.mxu0 0
        %1667 = vmatprep.subr.bf16.mxu0 0
        %1668 = vmatpush1.bf16.msra.mxu0 0
        %1669 = vmatprep.subr.bf16.mxu0 0
        %1670 = vmatpush1.bf16.msra.mxu0 0
        %1671 = vmatprep.subr.bf16.mxu0 0
        %1672 = vmatpush1.bf16.msra.mxu0 0
        %1673 = vmatprep.subr.bf16.mxu0 0
        %1674 = vmatpush1.bf16.msra.mxu0 0
        %1675 = vmatprep.subr.bf16.mxu0 0
        %1676 = vmatpush1.bf16.msra.mxu0 0
        %1677 = vmatprep.mubr.bf16.mxu0 0
        %1678 = vmatmul.mubr.bf16.gmra.mrb[0].mxu0 %v805
        %v1679 = vpop.f32.mrb[0].mxu0
        %v1680 = vadd.f32 %v1631, %v1679
        %v1681 = vpop.f32.mrb[0].mxu0
        %v1682 = vpop.f32.mrb[0].mxu0
        %v1683 = vpop.f32.mrb[0].mxu0
        %1684 = vdwg.mxu0
        %v1685 = vpack.c.bf16 %v1554, %v1554
        %v1686 = vpack.c.bf16 %v1615, %v1615
        %v1688 = vsel %vm982, %v1685, 0
        %v1691 = vsel %vm982, %v1686, 0
        %1693 = vmatprep.subr.bf16.mxu0 0
        %1694 = vmatpush1.bf16.xpose.msra.mxu0 %v1691
        %1695 = vmatprep.subr.bf16.mxu0 0
        %1696 = vmatpush1.bf16.xpose.msra.mxu0 0
        %1697 = vmatprep.subr.bf16.mxu0 0
        %1698 = vmatpush1.bf16.xpose.msra.mxu0 0
        %1699 = vmatprep.subr.bf16.mxu0 0
        %1700 = vmatpush1.bf16.xpose.msra.mxu0 0
        %1701 = vmatprep.subr.bf16.mxu0 0
        %1702 = vmatpush1.bf16.xpose.msra.mxu0 0
        %1703 = vmatprep.subr.bf16.mxu0 0
        %1704 = vmatpush1.bf16.xpose.msra.mxu0 0
        %1705 = vmatprep.subr.bf16.mxu0 0
        %1706 = vmatpush1.bf16.xpose.msra.mxu0 0
        %1707 = vmatprep.subr.bf16.mxu0 0
        %1708 = vmatpush1.bf16.xpose.msra.mxu0 0
        %1709 = vmatprep.subr.bf16.mxu0 0
        %1710 = vmatpush1.bf16.xpose.msra.mxu0 0
        %1711 = vmatprep.subr.bf16.mxu0 0
        %1712 = vmatpush1.bf16.xpose.msra.mxu0 0
        %1713 = vmatprep.subr.bf16.mxu0 0
        %1714 = vmatpush1.bf16.xpose.msra.mxu0 0
        %1715 = vmatprep.subr.bf16.mxu0 0
        %1716 = vmatpush1.bf16.xpose.msra.mxu0 0
        %1717 = vmatprep.subr.bf16.mxu0 0
        %1718 = vmatpush1.bf16.xpose.msra.mxu0 0
        %1719 = vmatprep.subr.bf16.mxu0 0
        %1720 = vmatpush1.bf16.xpose.msra.mxu0 0
        %1721 = vmatprep.subr.bf16.mxu0 0
        %1722 = vmatpush1.bf16.xpose.msra.mxu0 0
        %1723 = vmatprep.subr.bf16.mxu0 0
        %1724 = vmatpush1.bf16.xpose.msra.mxu0 0
        %1725 = vmatprep.mubr.bf16.mxu0 0
        %1726 = vmatmul.mubr.bf16.gmra.mrb[0].mxu0 %v1688
        %v1727 = vpop.f32.mrb[0].mxu0
        %v1728 = vadd.f32 %v980, %v1727
        %v1729 = vpop.f32.mrb[0].mxu0
        %v1730 = vpop.f32.mrb[0].mxu0
        %v1731 = vpop.f32.mrb[0].mxu0
        %1732 = vdwg.mxu0
        %v1733 = vsel %vm982, %v1728, -inf
        %1734 = vmax.xlane.f32.xlu0 %v1733
        %v1735 = vpop.xlane.xlu0 %1734
        %v1736 = vsub.f32 %v1728, %v1735
        %v1737 = vmul.f32 %v1736, 1.442695
        %v1738 = vpow.pop %v1737
        %v1739 = vsel %vm982, %v1738, 0.0
        %1740 = vadd.xlane.f32.xlu0 %v1739
        %v1741 = vpop.xlane.xlu0 %1740
        %v1742 = vrcp.pop %v1741
        %v1743 = vmul.f32 %v1738, %v1742
        %v1744 = vpack.c.bf16 %v1680, %v1680
        %v1745 = vpack.c.bf16 %v1743, %v1743
        %v1747 = vsel %vm982, %v1745, 0
        %v1750 = vsel %vm1045, %v1744, 0
        %1752 = vmatprep.subr.bf16.mxu0 0
        %1753 = vmatpush1.bf16.msra.mxu0 %v1750
        %1754 = vmatprep.subr.bf16.mxu0 0
        %1755 = vmatpush1.bf16.msra.mxu0 0
        %1756 = vmatprep.subr.bf16.mxu0 0
        %1757 = vmatpush1.bf16.msra.mxu0 0
        %1758 = vmatprep.subr.bf16.mxu0 0
        %1759 = vmatpush1.bf16.msra.mxu0 0
        %1760 = vmatprep.subr.bf16.mxu0 0
        %1761 = vmatpush1.bf16.msra.mxu0 0
        %1762 = vmatprep.subr.bf16.mxu0 0
        %1763 = vmatpush1.bf16.msra.mxu0 0
        %1764 = vmatprep.subr.bf16.mxu0 0
        %1765 = vmatpush1.bf16.msra.mxu0 0
        %1766 = vmatprep.subr.bf16.mxu0 0
        %1767 = vmatpush1.bf16.msra.mxu0 0
        %1768 = vmatprep.subr.bf16.mxu0 0
        %1769 = vmatpush1.bf16.msra.mxu0 0
        %1770 = vmatprep.subr.bf16.mxu0 0
        %1771 = vmatpush1.bf16.msra.mxu0 0
        %1772 = vmatprep.subr.bf16.mxu0 0
        %1773 = vmatpush1.bf16.msra.mxu0 0
        %1774 = vmatprep.subr.bf16.mxu0 0
        %1775 = vmatpush1.bf16.msra.mxu0 0
        %1776 = vmatprep.subr.bf16.mxu0 0
        %1777 = vmatpush1.bf16.msra.mxu0 0
        %1778 = vmatprep.subr.bf16.mxu0 0
        %1779 = vmatpush1.bf16.msra.mxu0 0
        %1780 = vmatprep.subr.bf16.mxu0 0
        %1781 = vmatpush1.bf16.msra.mxu0 0
        %1782 = vmatprep.subr.bf16.mxu0 0
        %1783 = vmatpush1.bf16.msra.mxu0 0
        %1784 = vmatprep.mubr.bf16.mxu0 0
        %1785 = vmatmul.mubr.bf16.gmra.mrb[0].mxu0 %v1747
        %v1786 = vpop.f32.mrb[0].mxu0
        %v1787 = vadd.f32 0.0, %v1786
        %v1788 = vpop.f32.mrb[0].mxu0
        %v1789 = vpop.f32.mrb[0].mxu0
        %v1790 = vpop.f32.mrb[0].mxu0
        %1791 = vdwg.mxu0
        %s1792 = scalar_lea.vmem %s10, 8
        %v1793 = vld [vmem:[%s1792] sm:$0xf]
        %v1794 = vpack.c.bf16 %v1787, %v1787
        %v1796 = vsel %vm982, %v1794, 0
        %v1799 = vsel %vm1045, %v1793, 0
        %1801 = vmatprep.subr.bf16.mxu0 0
        %1802 = vmatpush1.bf16.msra.mxu0 %v1799
        %1803 = vmatprep.subr.bf16.mxu0 0
        %1804 = vmatpush1.bf16.msra.mxu0 0
        %1805 = vmatprep.subr.bf16.mxu0 0
        %1806 = vmatpush1.bf16.msra.mxu0 0
        %1807 = vmatprep.subr.bf16.mxu0 0
        %1808 = vmatpush1.bf16.msra.mxu0 0
        %1809 = vmatprep.subr.bf16.mxu0 0
        %1810 = vmatpush1.bf16.msra.mxu0 0
        %1811 = vmatprep.subr.bf16.mxu0 0
        %1812 = vmatpush1.bf16.msra.mxu0 0
        %1813 = vmatprep.subr.bf16.mxu0 0
        %1814 = vmatpush1.bf16.msra.mxu0 0
        %1815 = vmatprep.subr.bf16.mxu0 0
        %1816 = vmatpush1.bf16.msra.mxu0 0
        %1817 = vmatprep.subr.bf16.mxu0 0
        %1818 = vmatpush1.bf16.msra.mxu0 0
        %1819 = vmatprep.subr.bf16.mxu0 0
        %1820 = vmatpush1.bf16.msra.mxu0 0
        %1821 = vmatprep.subr.bf16.mxu0 0
        %1822 = vmatpush1.bf16.msra.mxu0 0
        %1823 = vmatprep.subr.bf16.mxu0 0
        %1824 = vmatpush1.bf16.msra.mxu0 0
        %1825 = vmatprep.subr.bf16.mxu0 0
        %1826 = vmatpush1.bf16.msra.mxu0 0
        %1827 = vmatprep.subr.bf16.mxu0 0
        %1828 = vmatpush1.bf16.msra.mxu0 0
        %1829 = vmatprep.subr.bf16.mxu0 0
        %1830 = vmatpush1.bf16.msra.mxu0 0
        %1831 = vmatprep.subr.bf16.mxu0 0
        %1832 = vmatpush1.bf16.msra.mxu0 0
        %1833 = vmatprep.mubr.bf16.mxu0 0
        %1834 = vmatmul.mubr.bf16.gmra.mrb[0].mxu0 %v1796
        %v1835 = vpop.f32.mrb[0].mxu0
        %v1836 = vadd.f32 0.0, %v1835
        %v1837 = vpop.f32.mrb[0].mxu0
        %v1838 = vpop.f32.mrb[0].mxu0
        %v1839 = vpop.f32.mrb[0].mxu0
        %1840 = vdwg.mxu0
        %v1841 = vadd.f32 %v1484, %v1836
        %s1842 = scalar_lea.vmem %s4, 48
        %v1843 = vld [vmem:[%s1842] sm:$0xf]
        %v1844 = vld [vmem:[%s1842 + $0x4] sm:$0xf]
        %v1845 = vld [vmem:[%s1842 + $0x8] sm:$0xf]
        %v1846 = vld [vmem:[%s1842 + $0xc] sm:$0xf]
        %s1847 = scalar_lea.vmem %s5, 3
        %v1848 = vld [vmem:[%s1847] sm:$0x1]
        %v1850 = vlaneseq
        %v1851 = vshrl.u32 %v1850, 7
        %v1852 = vsub.s32 0, %v1851
        %v1853 = vrot.slane %v1848, %v1852
        %v1859 = vunpack.c.l.b16 %v1843
        %v1860 = vunpack.c.l.b16 %v1844
        %v1861 = vunpack.c.l.b16 %v1845
        %v1862 = vunpack.c.l.b16 %v1846
        %v1863 = vpack.c.b16 %v1860, %v1859
        %v1864 = vpack.c.b16 %v1862, %v1861
        %1867 = vmatprep.subr.bf16.mxu0 0
        %1868 = vmatpush1.bf16.msra.mxu0 %v1863
        %1869 = vmatprep.subr.bf16.mxu0 0
        %1870 = vmatpush1.bf16.msra.mxu0 %v1864
        %1871 = vmatprep.subr.bf16.mxu0 0
        %1872 = vmatpush1.bf16.msra.mxu0 0
        %1873 = vmatprep.subr.bf16.mxu0 0
        %1874 = vmatpush1.bf16.msra.mxu0 0
        %1875 = vmatprep.subr.bf16.mxu0 0
        %1876 = vmatpush1.bf16.msra.mxu0 0
        %1877 = vmatprep.subr.bf16.mxu0 0
        %1878 = vmatpush1.bf16.msra.mxu0 0
        %1879 = vmatprep.subr.bf16.mxu0 0
        %1880 = vmatpush1.bf16.msra.mxu0 0
        %1881 = vmatprep.subr.bf16.mxu0 0
        %1882 = vmatpush1.bf16.msra.mxu0 0
        %1883 = vmatprep.subr.bf16.mxu0 0
        %1884 = vmatpush1.bf16.msra.mxu0 0
        %1885 = vmatprep.subr.bf16.mxu0 0
        %1886 = vmatpush1.bf16.msra.mxu0 0
        %1887 = vmatprep.subr.bf16.mxu0 0
        %1888 = vmatpush1.bf16.msra.mxu0 0
        %1889 = vmatprep.subr.bf16.mxu0 0
        %1890 = vmatpush1.bf16.msra.mxu0 0
        %1891 = vmatprep.subr.bf16.mxu0 0
        %1892 = vmatpush1.bf16.msra.mxu0 0
        %1893 = vmatprep.subr.bf16.mxu0 0
        %1894 = vmatpush1.bf16.msra.mxu0 0
        %1895 = vmatprep.subr.bf16.mxu0 0
        %1896 = vmatpush1.bf16.msra.mxu0 0
        %1897 = vmatprep.subr.bf16.mxu0 0
        %1898 = vmatpush1.bf16.msra.mxu0 0
        %1899 = vmatprep.mubr.bf16.mxu0 0
        %1900 = vmatmul.mubr.bf16.gmra.mrb[0].mxu0 %v805
        %v1901 = vpop.f32.mrb[0].mxu0
        %v1902 = vadd.f32 %v1853, %v1901
        %v1903 = vpop.f32.mrb[0].mxu0
        %v1904 = vpop.f32.mrb[0].mxu0
        %v1905 = vpop.f32.mrb[0].mxu0
        %1906 = vdwg.mxu0
        %v1907 = vmul.f32 %v1902, 0.35355338
        %s1908 = scalar_lea.vmem %s6, 48
        %v1909 = vld [vmem:[%s1908] sm:$0xf]
        %v1910 = vld [vmem:[%s1908 + $0x4] sm:$0xf]
        %v1911 = vld [vmem:[%s1908 + $0x8] sm:$0xf]
        %v1912 = vld [vmem:[%s1908 + $0xc] sm:$0xf]
        %s1913 = scalar_lea.vmem %s7, 3
        %v1914 = vld [vmem:[%s1913] sm:$0x1]
        %v1916 = vlaneseq
        %v1917 = vshrl.u32 %v1916, 7
        %v1918 = vsub.s32 0, %v1917
        %v1919 = vrot.slane %v1914, %v1918
        %v1925 = vunpack.c.l.b16 %v1909
        %v1926 = vunpack.c.l.b16 %v1910
        %v1927 = vunpack.c.l.b16 %v1911
        %v1928 = vunpack.c.l.b16 %v1912
        %v1929 = vpack.c.b16 %v1926, %v1925
        %v1930 = vpack.c.b16 %v1928, %v1927
        %1933 = vmatprep.subr.bf16.mxu0 0
        %1934 = vmatpush1.bf16.msra.mxu0 %v1929
        %1935 = vmatprep.subr.bf16.mxu0 0
        %1936 = vmatpush1.bf16.msra.mxu0 %v1930
        %1937 = vmatprep.subr.bf16.mxu0 0
        %1938 = vmatpush1.bf16.msra.mxu0 0
        %1939 = vmatprep.subr.bf16.mxu0 0
        %1940 = vmatpush1.bf16.msra.mxu0 0
        %1941 = vmatprep.subr.bf16.mxu0 0
        %1942 = vmatpush1.bf16.msra.mxu0 0
        %1943 = vmatprep.subr.bf16.mxu0 0
        %1944 = vmatpush1.bf16.msra.mxu0 0
        %1945 = vmatprep.subr.bf16.mxu0 0
        %1946 = vmatpush1.bf16.msra.mxu0 0
        %1947 = vmatprep.subr.bf16.mxu0 0
        %1948 = vmatpush1.bf16.msra.mxu0 0
        %1949 = vmatprep.subr.bf16.mxu0 0
        %1950 = vmatpush1.bf16.msra.mxu0 0
        %1951 = vmatprep.subr.bf16.mxu0 0
        %1952 = vmatpush1.bf16.msra.mxu0 0
        %1953 = vmatprep.subr.bf16.mxu0 0
        %1954 = vmatpush1.bf16.msra.mxu0 0
        %1955 = vmatprep.subr.bf16.mxu0 0
        %1956 = vmatpush1.bf16.msra.mxu0 0
        %1957 = vmatprep.subr.bf16.mxu0 0
        %1958 = vmatpush1.bf16.msra.mxu0 0
        %1959 = vmatprep.subr.bf16.mxu0 0
        %1960 = vmatpush1.bf16.msra.mxu0 0
        %1961 = vmatprep.subr.bf16.mxu0 0
        %1962 = vmatpush1.bf16.msra.mxu0 0
        %1963 = vmatprep.subr.bf16.mxu0 0
        %1964 = vmatpush1.bf16.msra.mxu0 0
        %1965 = vmatprep.mubr.bf16.mxu0 0
        %1966 = vmatmul.mubr.bf16.gmra.mrb[0].mxu0 %v805
        %v1967 = vpop.f32.mrb[0].mxu0
        %v1968 = vadd.f32 %v1919, %v1967
        %v1969 = vpop.f32.mrb[0].mxu0
        %v1970 = vpop.f32.mrb[0].mxu0
        %v1971 = vpop.f32.mrb[0].mxu0
        %1972 = vdwg.mxu0
        %s1973 = scalar_lea.vmem %s8, 48
        %v1974 = vld [vmem:[%s1973] sm:$0xf]
        %v1975 = vld [vmem:[%s1973 + $0x4] sm:$0xf]
        %v1976 = vld [vmem:[%s1973 + $0x8] sm:$0xf]
        %v1977 = vld [vmem:[%s1973 + $0xc] sm:$0xf]
        %s1978 = scalar_lea.vmem %s9, 3
        %v1979 = vld [vmem:[%s1978] sm:$0x1]
        %v1981 = vlaneseq
        %v1982 = vshrl.u32 %v1981, 7
        %v1983 = vsub.s32 0, %v1982
        %v1984 = vrot.slane %v1979, %v1983
        %v1990 = vunpack.c.l.b16 %v1974
        %v1991 = vunpack.c.l.b16 %v1975
        %v1992 = vunpack.c.l.b16 %v1976
        %v1993 = vunpack.c.l.b16 %v1977
        %v1994 = vpack.c.b16 %v1991, %v1990
        %v1995 = vpack.c.b16 %v1993, %v1992
        %1998 = vmatprep.subr.bf16.mxu0 0
        %1999 = vmatpush1.bf16.msra.mxu0 %v1994
        %2000 = vmatprep.subr.bf16.mxu0 0
        %2001 = vmatpush1.bf16.msra.mxu0 %v1995
        %2002 = vmatprep.subr.bf16.mxu0 0
        %2003 = vmatpush1.bf16.msra.mxu0 0
        %2004 = vmatprep.subr.bf16.mxu0 0
        %2005 = vmatpush1.bf16.msra.mxu0 0
        %2006 = vmatprep.subr.bf16.mxu0 0
        %2007 = vmatpush1.bf16.msra.mxu0 0
        %2008 = vmatprep.subr.bf16.mxu0 0
        %2009 = vmatpush1.bf16.msra.mxu0 0
        %2010 = vmatprep.subr.bf16.mxu0 0
        %2011 = vmatpush1.bf16.msra.mxu0 0
        %2012 = vmatprep.subr.bf16.mxu0 0
        %2013 = vmatpush1.bf16.msra.mxu0 0
        %2014 = vmatprep.subr.bf16.mxu0 0
        %2015 = vmatpush1.bf16.msra.mxu0 0
        %2016 = vmatprep.subr.bf16.mxu0 0
        %2017 = vmatpush1.bf16.msra.mxu0 0
        %2018 = vmatprep.subr.bf16.mxu0 0
        %2019 = vmatpush1.bf16.msra.mxu0 0
        %2020 = vmatprep.subr.bf16.mxu0 0
        %2021 = vmatpush1.bf16.msra.mxu0 0
        %2022 = vmatprep.subr.bf16.mxu0 0
        %2023 = vmatpush1.bf16.msra.mxu0 0
        %2024 = vmatprep.subr.bf16.mxu0 0
        %2025 = vmatpush1.bf16.msra.mxu0 0
        %2026 = vmatprep.subr.bf16.mxu0 0
        %2027 = vmatpush1.bf16.msra.mxu0 0
        %2028 = vmatprep.subr.bf16.mxu0 0
        %2029 = vmatpush1.bf16.msra.mxu0 0
        %2030 = vmatprep.mubr.bf16.mxu0 0
        %2031 = vmatmul.mubr.bf16.gmra.mrb[0].mxu0 %v805
        %v2032 = vpop.f32.mrb[0].mxu0
        %v2033 = vadd.f32 %v1984, %v2032
        %v2034 = vpop.f32.mrb[0].mxu0
        %v2035 = vpop.f32.mrb[0].mxu0
        %v2036 = vpop.f32.mrb[0].mxu0
        %2037 = vdwg.mxu0
        %v2038 = vpack.c.bf16 %v1907, %v1907
        %v2039 = vpack.c.bf16 %v1968, %v1968
        %v2041 = vsel %vm982, %v2038, 0
        %v2044 = vsel %vm982, %v2039, 0
        %2046 = vmatprep.subr.bf16.mxu0 0
        %2047 = vmatpush1.bf16.xpose.msra.mxu0 %v2044
        %2048 = vmatprep.subr.bf16.mxu0 0
        %2049 = vmatpush1.bf16.xpose.msra.mxu0 0
        %2050 = vmatprep.subr.bf16.mxu0 0
        %2051 = vmatpush1.bf16.xpose.msra.mxu0 0
        %2052 = vmatprep.subr.bf16.mxu0 0
        %2053 = vmatpush1.bf16.xpose.msra.mxu0 0
        %2054 = vmatprep.subr.bf16.mxu0 0
        %2055 = vmatpush1.bf16.xpose.msra.mxu0 0
        %2056 = vmatprep.subr.bf16.mxu0 0
        %2057 = vmatpush1.bf16.xpose.msra.mxu0 0
        %2058 = vmatprep.subr.bf16.mxu0 0
        %2059 = vmatpush1.bf16.xpose.msra.mxu0 0
        %2060 = vmatprep.subr.bf16.mxu0 0
        %2061 = vmatpush1.bf16.xpose.msra.mxu0 0
        %2062 = vmatprep.subr.bf16.mxu0 0
        %2063 = vmatpush1.bf16.xpose.msra.mxu0 0
        %2064 = vmatprep.subr.bf16.mxu0 0
        %2065 = vmatpush1.bf16.xpose.msra.mxu0 0
        %2066 = vmatprep.subr.bf16.mxu0 0
        %2067 = vmatpush1.bf16.xpose.msra.mxu0 0
        %2068 = vmatprep.subr.bf16.mxu0 0
        %2069 = vmatpush1.bf16.xpose.msra.mxu0 0
        %2070 = vmatprep.subr.bf16.mxu0 0
        %2071 = vmatpush1.bf16.xpose.msra.mxu0 0
        %2072 = vmatprep.subr.bf16.mxu0 0
        %2073 = vmatpush1.bf16.xpose.msra.mxu0 0
        %2074 = vmatprep.subr.bf16.mxu0 0
        %2075 = vmatpush1.bf16.xpose.msra.mxu0 0
        %2076 = vmatprep.subr.bf16.mxu0 0
        %2077 = vmatpush1.bf16.xpose.msra.mxu0 0
        %2078 = vmatprep.mubr.bf16.mxu0 0
        %2079 = vmatmul.mubr.bf16.gmra.mrb[0].mxu0 %v2041
        %v2080 = vpop.f32.mrb[0].mxu0
        %v2081 = vadd.f32 %v980, %v2080
        %v2082 = vpop.f32.mrb[0].mxu0
        %v2083 = vpop.f32.mrb[0].mxu0
        %v2084 = vpop.f32.mrb[0].mxu0
        %2085 = vdwg.mxu0
        %v2086 = vsel %vm982, %v2081, -inf
        %2087 = vmax.xlane.f32.xlu0 %v2086
        %v2088 = vpop.xlane.xlu0 %2087
        %v2089 = vsub.f32 %v2081, %v2088
        %v2090 = vmul.f32 %v2089, 1.442695
        %v2091 = vpow.pop %v2090
        %v2092 = vsel %vm982, %v2091, 0.0
        %2093 = vadd.xlane.f32.xlu0 %v2092
        %v2094 = vpop.xlane.xlu0 %2093
        %v2095 = vrcp.pop %v2094
        %v2096 = vmul.f32 %v2091, %v2095
        %v2097 = vpack.c.bf16 %v2033, %v2033
        %v2098 = vpack.c.bf16 %v2096, %v2096
        %v2100 = vsel %vm982, %v2098, 0
        %v2103 = vsel %vm1045, %v2097, 0
        %2105 = vmatprep.subr.bf16.mxu0 0
        %2106 = vmatpush1.bf16.msra.mxu0 %v2103
        %2107 = vmatprep.subr.bf16.mxu0 0
        %2108 = vmatpush1.bf16.msra.mxu0 0
        %2109 = vmatprep.subr.bf16.mxu0 0
        %2110 = vmatpush1.bf16.msra.mxu0 0
        %2111 = vmatprep.subr.bf16.mxu0 0
        %2112 = vmatpush1.bf16.msra.mxu0 0
        %2113 = vmatprep.subr.bf16.mxu0 0
        %2114 = vmatpush1.bf16.msra.mxu0 0
        %2115 = vmatprep.subr.bf16.mxu0 0
        %2116 = vmatpush1.bf16.msra.mxu0 0
        %2117 = vmatprep.subr.bf16.mxu0 0
        %2118 = vmatpush1.bf16.msra.mxu0 0
        %2119 = vmatprep.subr.bf16.mxu0 0
        %2120 = vmatpush1.bf16.msra.mxu0 0
        %2121 = vmatprep.subr.bf16.mxu0 0
        %2122 = vmatpush1.bf16.msra.mxu0 0
        %2123 = vmatprep.subr.bf16.mxu0 0
        %2124 = vmatpush1.bf16.msra.mxu0 0
        %2125 = vmatprep.subr.bf16.mxu0 0
        %2126 = vmatpush1.bf16.msra.mxu0 0
        %2127 = vmatprep.subr.bf16.mxu0 0
        %2128 = vmatpush1.bf16.msra.mxu0 0
        %2129 = vmatprep.subr.bf16.mxu0 0
        %2130 = vmatpush1.bf16.msra.mxu0 0
        %2131 = vmatprep.subr.bf16.mxu0 0
        %2132 = vmatpush1.bf16.msra.mxu0 0
        %2133 = vmatprep.subr.bf16.mxu0 0
        %2134 = vmatpush1.bf16.msra.mxu0 0
        %2135 = vmatprep.subr.bf16.mxu0 0
        %2136 = vmatpush1.bf16.msra.mxu0 0
        %2137 = vmatprep.mubr.bf16.mxu0 0
        %2138 = vmatmul.mubr.bf16.gmra.mrb[0].mxu0 %v2100
        %v2139 = vpop.f32.mrb[0].mxu0
        %v2140 = vadd.f32 0.0, %v2139
        %v2141 = vpop.f32.mrb[0].mxu0
        %v2142 = vpop.f32.mrb[0].mxu0
        %v2143 = vpop.f32.mrb[0].mxu0
        %2144 = vdwg.mxu0
        %s2145 = scalar_lea.vmem %s10, 12
        %v2146 = vld [vmem:[%s2145] sm:$0xf]
        %v2147 = vpack.c.bf16 %v2140, %v2140
        %v2149 = vsel %vm982, %v2147, 0
        %v2152 = vsel %vm1045, %v2146, 0
        %2154 = vmatprep.subr.bf16.mxu0 0
        %2155 = vmatpush1.bf16.msra.mxu0 %v2152
        %2156 = vmatprep.subr.bf16.mxu0 0
        %2157 = vmatpush1.bf16.msra.mxu0 0
        %2158 = vmatprep.subr.bf16.mxu0 0
        %2159 = vmatpush1.bf16.msra.mxu0 0
        %2160 = vmatprep.subr.bf16.mxu0 0
        %2161 = vmatpush1.bf16.msra.mxu0 0
        %2162 = vmatprep.subr.bf16.mxu0 0
        %2163 = vmatpush1.bf16.msra.mxu0 0
        %2164 = vmatprep.subr.bf16.mxu0 0
        %2165 = vmatpush1.bf16.msra.mxu0 0
        %2166 = vmatprep.subr.bf16.mxu0 0
        %2167 = vmatpush1.bf16.msra.mxu0 0
        %2168 = vmatprep.subr.bf16.mxu0 0
        %2169 = vmatpush1.bf16.msra.mxu0 0
        %2170 = vmatprep.subr.bf16.mxu0 0
        %2171 = vmatpush1.bf16.msra.mxu0 0
        %2172 = vmatprep.subr.bf16.mxu0 0
        %2173 = vmatpush1.bf16.msra.mxu0 0
        %2174 = vmatprep.subr.bf16.mxu0 0
        %2175 = vmatpush1.bf16.msra.mxu0 0
        %2176 = vmatprep.subr.bf16.mxu0 0
        %2177 = vmatpush1.bf16.msra.mxu0 0
        %2178 = vmatprep.subr.bf16.mxu0 0
        %2179 = vmatpush1.bf16.msra.mxu0 0
        %2180 = vmatprep.subr.bf16.mxu0 0
        %2181 = vmatpush1.bf16.msra.mxu0 0
        %2182 = vmatprep.subr.bf16.mxu0 0
        %2183 = vmatpush1.bf16.msra.mxu0 0
        %2184 = vmatprep.subr.bf16.mxu0 0
        %2185 = vmatpush1.bf16.msra.mxu0 0
        %2186 = vmatprep.mubr.bf16.mxu0 0
        %2187 = vmatmul.mubr.bf16.gmra.mrb[0].mxu0 %v2149
        %v2188 = vpop.f32.mrb[0].mxu0
        %v2189 = vadd.f32 0.0, %v2188
        %v2190 = vpop.f32.mrb[0].mxu0
        %v2191 = vpop.f32.mrb[0].mxu0
        %v2192 = vpop.f32.mrb[0].mxu0
        %2193 = vdwg.mxu0
        %v2194 = vadd.f32 %v1841, %v2189
        %v2195 = vld [vmem:[%s11] sm:$0x1]
        %v2197 = vlaneseq
        %v2198 = vshrl.u32 %v2197, 7
        %v2199 = vsub.s32 0, %v2198
        %v2200 = vrot.slane %v2195, %v2199
        %v2202 = vadd.f32 %v2194, %v2200
        %v2203 = vadd.f32 %v2202, %v779
        %v2204 = vld [vmem:[%s12] sm:$0x1]
        %v2205 = vld [vmem:[%s13] sm:$0x1]
        %v2206 = vsel %vm751, %v2203, 0.0
        %2207 = vadd.xlane.f32.xlu0 %v2206
        %v2208 = vpop.xlane.xlu0 %2207
        %v2209 = vmul.f32 %v2208, %v755
        %v2210 = vsub.f32 %v2203, %v2209
        %v2211 = vmul.f32 %v2210, %v2210
        %v2212 = vsel %vm751, %v2211, 0.0
        %2213 = vadd.xlane.f32.xlu0 %v2212
        %v2214 = vpop.xlane.xlu0 %2213
        %v2215 = vmul.f32 %v2214, %v755
        %v2216 = vadd.f32 %v2215, 1e-12
        %v2217 = vrsqrt.pop %v2216
        %v2218 = vmul.f32 %v2210, %v2217
        %v2220 = vlaneseq
        %v2221 = vshrl.u32 %v2220, 7
        %v2222 = vsub.s32 0, %v2221
        %v2223 = vrot.slane %v2204, %v2222
        %v2225 = vmul.f32 %v2218, %v2223
        %v2227 = vlaneseq
        %v2228 = vshrl.u32 %v2227, 7
        %v2229 = vsub.s32 0, %v2228
        %v2230 = vrot.slane %v2205, %v2229
        %v2232 = vadd.f32 %v2225, %v2230
        %v2233 = vld [vmem:[%s14] sm:$0xf]
        %v2234 = vld [vmem:[%s14 + $0x4] sm:$0xf]
        %v2235 = vld [vmem:[%s14 + $0x8] sm:$0xf]
        %v2236 = vld [vmem:[%s14 + $0xc] sm:$0xf]
        %v2237 = vpack.c.bf16 %v2232, %v2232
        %v2238 = vld [vmem:[%s15] sm:$0x1]
        %v2240 = vlaneseq
        %v2241 = vshrl.u32 %v2240, 7
        %v2242 = vsub.s32 0, %v2241
        %v2243 = vrot.slane %v2238, %v2242
        %v2249 = vunpack.c.l.b16 %v2233
        %v2250 = vunpack.c.l.b16 %v2234
        %v2251 = vunpack.c.l.b16 %v2235
        %v2252 = vunpack.c.l.b16 %v2236
        %v2253 = vpack.c.b16 %v2250, %v2249
        %v2254 = vpack.c.b16 %v2252, %v2251
        %v2258 = vsel %vm751, %v2237, 0
        %2260 = vmatprep.subr.bf16.mxu0 0
        %2261 = vmatpush1.bf16.msra.mxu0 %v2253
        %2262 = vmatprep.subr.bf16.mxu0 0
        %2263 = vmatpush1.bf16.msra.mxu0 %v2254
        %2264 = vmatprep.subr.bf16.mxu0 0
        %2265 = vmatpush1.bf16.msra.mxu0 0
        %2266 = vmatprep.subr.bf16.mxu0 0
        %2267 = vmatpush1.bf16.msra.mxu0 0
        %2268 = vmatprep.subr.bf16.mxu0 0
        %2269 = vmatpush1.bf16.msra.mxu0 0
        %2270 = vmatprep.subr.bf16.mxu0 0
        %2271 = vmatpush1.bf16.msra.mxu0 0
        %2272 = vmatprep.subr.bf16.mxu0 0
        %2273 = vmatpush1.bf16.msra.mxu0 0
        %2274 = vmatprep.subr.bf16.mxu0 0
        %2275 = vmatpush1.bf16.msra.mxu0 0
        %2276 = vmatprep.subr.bf16.mxu0 0
        %2277 = vmatpush1.bf16.msra.mxu0 0
        %2278 = vmatprep.subr.bf16.mxu0 0
        %2279 = vmatpush1.bf16.msra.mxu0 0
        %2280 = vmatprep.subr.bf16.mxu0 0
        %2281 = vmatpush1.bf16.msra.mxu0 0
        %2282 = vmatprep.subr.bf16.mxu0 0
        %2283 = vmatpush1.bf16.msra.mxu0 0
        %2284 = vmatprep.subr.bf16.mxu0 0
        %2285 = vmatpush1.bf16.msra.mxu0 0
        %2286 = vmatprep.subr.bf16.mxu0 0
        %2287 = vmatpush1.bf16.msra.mxu0 0
        %2288 = vmatprep.subr.bf16.mxu0 0
        %2289 = vmatpush1.bf16.msra.mxu0 0
        %2290 = vmatprep.subr.bf16.mxu0 0
        %2291 = vmatpush1.bf16.msra.mxu0 0
        %2292 = vmatprep.mubr.bf16.mxu0 0
        %2293 = vmatmul.mubr.bf16.gmra.mrb[0].mxu0 %v2258
        %v2294 = vpop.f32.mrb[0].mxu0
        %v2295 = vadd.f32 %v2243, %v2294
        %v2296 = vpop.f32.mrb[0].mxu0
        %v2297 = vpop.f32.mrb[0].mxu0
        %v2298 = vpop.f32.mrb[0].mxu0
        %2299 = vdwg.mxu0
        %v2300 = vmul.f32 %v2295, 0.5
        %v2301 = vmul.f32 %v2295, 0.70710677
        %v2302 = vand.u32 2147483647, %v2301
        %v2303 = vmul.f32 %v2302, 0.3275911
        %v2304 = vadd.f32 %v2303, 1.0
        %v2305 = vrcp.pop %v2304
        %v2306 = vmul.f32 1.0, %v2305
        %v2307 = vmul.f32 %v2306, 1.0614054
        %v2308 = vadd.f32 %v2307, -1.4531521
        %v2309 = vmul.f32 %v2308, %v2306
        %v2310 = vadd.f32 %v2309, 1.4214138
        %v2311 = vmul.f32 %v2310, %v2306
        %v2312 = vadd.f32 %v2311, -0.28449672
        %v2313 = vmul.f32 %v2312, %v2306
        %v2314 = vadd.f32 %v2313, 0.2548296
        %v2315 = vmul.f32 %v2314, %v2306
        %v2316 = vsub.f32 0.0, %v2302
        %v2317 = vmul.f32 %v2316, %v2302
        %v2318 = vmul.f32 %v2317, 1.442695
        %v2319 = vpow.pop %v2318
        %v2320 = vmul.f32 %v2315, %v2319
        %v2321 = vsub.f32 1.0, %v2320
        %vm2322 = vcmp.ge.f32.partialorder %v2301, 0.0
        %v2323 = vsub.f32 0.0, %v2321
        %v2324 = vsel %vm2322, %v2321, %v2323
        %v2325 = vadd.f32 %v2324, 1.0
        %v2326 = vmul.f32 %v2300, %v2325
        %v2327 = vld [vmem:[%s16] sm:$0xf]
        %v2328 = vld [vmem:[%s16 + $0x4] sm:$0xf]
        %v2329 = vld [vmem:[%s16 + $0x8] sm:$0xf]
        %v2330 = vld [vmem:[%s16 + $0xc] sm:$0xf]
        %v2331 = vld [vmem:[%s16 + $0x10] sm:$0xf]
        %v2332 = vld [vmem:[%s16 + $0x14] sm:$0xf]
        %v2333 = vld [vmem:[%s16 + $0x18] sm:$0xf]
        %v2334 = vld [vmem:[%s16 + $0x1c] sm:$0xf]
        %v2335 = vpack.c.bf16 %v2326, %v2326
        %v2336 = vld [vmem:[%s17] sm:$0x1]
        %v2338 = vlaneseq
        %v2339 = vshrl.u32 %v2338, 7
        %v2340 = vsub.s32 0, %v2339
        %v2341 = vrot.slane %v2336, %v2340
        %v2351 = vunpack.c.l.b16 %v2327
        %v2352 = vunpack.c.l.b16 %v2328
        %v2353 = vunpack.c.l.b16 %v2329
        %v2354 = vunpack.c.l.b16 %v2330
        %v2355 = vunpack.c.l.b16 %v2331
        %v2356 = vunpack.c.l.b16 %v2332
        %v2357 = vunpack.c.l.b16 %v2333
        %v2358 = vunpack.c.l.b16 %v2334
        %v2359 = vpack.c.b16 %v2352, %v2351
        %v2360 = vpack.c.b16 %v2354, %v2353
        %v2361 = vpack.c.b16 %v2356, %v2355
        %v2362 = vpack.c.b16 %v2358, %v2357
        %vm2367 = vcmask 523264
        %v2369 = vsel %vm2367, %v2335, 0
        %2371 = vmatprep.subr.bf16.mxu0 0
        %2372 = vmatpush1.bf16.msra.mxu0 %v2359
        %2373 = vmatprep.subr.bf16.mxu0 0
        %2374 = vmatpush1.bf16.msra.mxu0 %v2360
        %2375 = vmatprep.subr.bf16.mxu0 0
        %2376 = vmatpush1.bf16.msra.mxu0 %v2361
        %2377 = vmatprep.subr.bf16.mxu0 0
        %2378 = vmatpush1.bf16.msra.mxu0 %v2362
        %2379 = vmatprep.subr.bf16.mxu0 0
        %2380 = vmatpush1.bf16.msra.mxu0 0
        %2381 = vmatprep.subr.bf16.mxu0 0
        %2382 = vmatpush1.bf16.msra.mxu0 0
        %2383 = vmatprep.subr.bf16.mxu0 0
        %2384 = vmatpush1.bf16.msra.mxu0 0
        %2385 = vmatprep.subr.bf16.mxu0 0
        %2386 = vmatpush1.bf16.msra.mxu0 0
        %2387 = vmatprep.subr.bf16.mxu0 0
        %2388 = vmatpush1.bf16.msra.mxu0 0
        %2389 = vmatprep.subr.bf16.mxu0 0
        %2390 = vmatpush1.bf16.msra.mxu0 0
        %2391 = vmatprep.subr.bf16.mxu0 0
        %2392 = vmatpush1.bf16.msra.mxu0 0
        %2393 = vmatprep.subr.bf16.mxu0 0
        %2394 = vmatpush1.bf16.msra.mxu0 0
        %2395 = vmatprep.subr.bf16.mxu0 0
        %2396 = vmatpush1.bf16.msra.mxu0 0
        %2397 = vmatprep.subr.bf16.mxu0 0
        %2398 = vmatpush1.bf16.msra.mxu0 0
        %2399 = vmatprep.subr.bf16.mxu0 0
        %2400 = vmatpush1.bf16.msra.mxu0 0
        %2401 = vmatprep.subr.bf16.mxu0 0
        %2402 = vmatpush1.bf16.msra.mxu0 0
        %2403 = vmatprep.mubr.bf16.mxu0 0
        %2404 = vmatmul.mubr.bf16.gmra.mrb[0].mxu0 %v2369
        %v2405 = vpop.f32.mrb[0].mxu0
        %v2406 = vadd.f32 %v2341, %v2405
        %v2407 = vpop.f32.mrb[0].mxu0
        %v2408 = vpop.f32.mrb[0].mxu0
        %v2409 = vpop.f32.mrb[0].mxu0
        %2410 = vdwg.mxu0
        %v2411 = vadd.f32 %v2406, %v2232
        %v2412 = vld [vmem:[%s18] sm:$0x1]
        %v2413 = vld [vmem:[%s19] sm:$0x1]
        %v2414 = vsel %vm751, %v2411, 0.0
        %2415 = vadd.xlane.f32.xlu0 %v2414
        %v2416 = vpop.xlane.xlu0 %2415
        %v2417 = vmul.f32 %v2416, %v755
        %v2418 = vsub.f32 %v2411, %v2417
        %v2419 = vmul.f32 %v2418, %v2418
        %v2420 = vsel %vm751, %v2419, 0.0
        %2421 = vadd.xlane.f32.xlu0 %v2420
        %v2422 = vpop.xlane.xlu0 %2421
        %v2423 = vmul.f32 %v2422, %v755
        %v2424 = vadd.f32 %v2423, 1e-12
        %v2425 = vrsqrt.pop %v2424
        %v2426 = vmul.f32 %v2418, %v2425
        %v2428 = vlaneseq
        %v2429 = vshrl.u32 %v2428, 7
        %v2430 = vsub.s32 0, %v2429
        %v2431 = vrot.slane %v2412, %v2430
        %v2433 = vmul.f32 %v2426, %v2431
        %v2435 = vlaneseq
        %v2436 = vshrl.u32 %v2435, 7
        %v2437 = vsub.s32 0, %v2436
        %v2438 = vrot.slane %v2413, %v2437
        %v2440 = vadd.f32 %v2433, %v2438
        %s2441 = scalar_lea.vmem %s4, 64
        %v2442 = vld [vmem:[%s2441] sm:$0xf]
        %v2443 = vld [vmem:[%s2441 + $0x4] sm:$0xf]
        %v2444 = vld [vmem:[%s2441 + $0x8] sm:$0xf]
        %v2445 = vld [vmem:[%s2441 + $0xc] sm:$0xf]
        %v2446 = vpack.c.bf16 %v2440, %v2440
        %s2447 = scalar_lea.vmem %s5, 4
        %v2448 = vld [vmem:[%s2447] sm:$0x1]
        %v2450 = vlaneseq
        %v2451 = vshrl.u32 %v2450, 7
        %v2452 = vsub.s32 0, %v2451
        %v2453 = vrot.slane %v2448, %v2452
        %v2459 = vunpack.c.l.b16 %v2442
        %v2460 = vunpack.c.l.b16 %v2443
        %v2461 = vunpack.c.l.b16 %v2444
        %v2462 = vunpack.c.l.b16 %v2445
        %v2463 = vpack.c.b16 %v2460, %v2459
        %v2464 = vpack.c.b16 %v2462, %v2461
        %v2468 = vsel %vm751, %v2446, 0
        %2470 = vmatprep.subr.bf16.mxu0 0
        %2471 = vmatpush1.bf16.msra.mxu0 %v2463
        %2472 = vmatprep.subr.bf16.mxu0 0
        %2473 = vmatpush1.bf16.msra.mxu0 %v2464
        %2474 = vmatprep.subr.bf16.mxu0 0
        %2475 = vmatpush1.bf16.msra.mxu0 0
        %2476 = vmatprep.subr.bf16.mxu0 0
        %2477 = vmatpush1.bf16.msra.mxu0 0
        %2478 = vmatprep.subr.bf16.mxu0 0
        %2479 = vmatpush1.bf16.msra.mxu0 0
        %2480 = vmatprep.subr.bf16.mxu0 0
        %2481 = vmatpush1.bf16.msra.mxu0 0
        %2482 = vmatprep.subr.bf16.mxu0 0
        %2483 = vmatpush1.bf16.msra.mxu0 0
        %2484 = vmatprep.subr.bf16.mxu0 0
        %2485 = vmatpush1.bf16.msra.mxu0 0
        %2486 = vmatprep.subr.bf16.mxu0 0
        %2487 = vmatpush1.bf16.msra.mxu0 0
        %2488 = vmatprep.subr.bf16.mxu0 0
        %2489 = vmatpush1.bf16.msra.mxu0 0
        %2490 = vmatprep.subr.bf16.mxu0 0
        %2491 = vmatpush1.bf16.msra.mxu0 0
        %2492 = vmatprep.subr.bf16.mxu0 0
        %2493 = vmatpush1.bf16.msra.mxu0 0
        %2494 = vmatprep.subr.bf16.mxu0 0
        %2495 = vmatpush1.bf16.msra.mxu0 0
        %2496 = vmatprep.subr.bf16.mxu0 0
        %2497 = vmatpush1.bf16.msra.mxu0 0
        %2498 = vmatprep.subr.bf16.mxu0 0
        %2499 = vmatpush1.bf16.msra.mxu0 0
        %2500 = vmatprep.subr.bf16.mxu0 0
        %2501 = vmatpush1.bf16.msra.mxu0 0
        %2502 = vmatprep.mubr.bf16.mxu0 0
        %2503 = vmatmul.mubr.bf16.gmra.mrb[0].mxu0 %v2468
        %v2504 = vpop.f32.mrb[0].mxu0
        %v2505 = vadd.f32 %v2453, %v2504
        %v2506 = vpop.f32.mrb[0].mxu0
        %v2507 = vpop.f32.mrb[0].mxu0
        %v2508 = vpop.f32.mrb[0].mxu0
        %2509 = vdwg.mxu0
        %v2510 = vmul.f32 %v2505, 0.35355338
        %s2511 = scalar_lea.vmem %s6, 64
        %v2512 = vld [vmem:[%s2511] sm:$0xf]
        %v2513 = vld [vmem:[%s2511 + $0x4] sm:$0xf]
        %v2514 = vld [vmem:[%s2511 + $0x8] sm:$0xf]
        %v2515 = vld [vmem:[%s2511 + $0xc] sm:$0xf]
        %s2516 = scalar_lea.vmem %s7, 4
        %v2517 = vld [vmem:[%s2516] sm:$0x1]
        %v2519 = vlaneseq
        %v2520 = vshrl.u32 %v2519, 7
        %v2521 = vsub.s32 0, %v2520
        %v2522 = vrot.slane %v2517, %v2521
        %v2528 = vunpack.c.l.b16 %v2512
        %v2529 = vunpack.c.l.b16 %v2513
        %v2530 = vunpack.c.l.b16 %v2514
        %v2531 = vunpack.c.l.b16 %v2515
        %v2532 = vpack.c.b16 %v2529, %v2528
        %v2533 = vpack.c.b16 %v2531, %v2530
        %2536 = vmatprep.subr.bf16.mxu0 0
        %2537 = vmatpush1.bf16.msra.mxu0 %v2532
        %2538 = vmatprep.subr.bf16.mxu0 0
        %2539 = vmatpush1.bf16.msra.mxu0 %v2533
        %2540 = vmatprep.subr.bf16.mxu0 0
        %2541 = vmatpush1.bf16.msra.mxu0 0
        %2542 = vmatprep.subr.bf16.mxu0 0
        %2543 = vmatpush1.bf16.msra.mxu0 0
        %2544 = vmatprep.subr.bf16.mxu0 0
        %2545 = vmatpush1.bf16.msra.mxu0 0
        %2546 = vmatprep.subr.bf16.mxu0 0
        %2547 = vmatpush1.bf16.msra.mxu0 0
        %2548 = vmatprep.subr.bf16.mxu0 0
        %2549 = vmatpush1.bf16.msra.mxu0 0
        %2550 = vmatprep.subr.bf16.mxu0 0
        %2551 = vmatpush1.bf16.msra.mxu0 0
        %2552 = vmatprep.subr.bf16.mxu0 0
        %2553 = vmatpush1.bf16.msra.mxu0 0
        %2554 = vmatprep.subr.bf16.mxu0 0
        %2555 = vmatpush1.bf16.msra.mxu0 0
        %2556 = vmatprep.subr.bf16.mxu0 0
        %2557 = vmatpush1.bf16.msra.mxu0 0
        %2558 = vmatprep.subr.bf16.mxu0 0
        %2559 = vmatpush1.bf16.msra.mxu0 0
        %2560 = vmatprep.subr.bf16.mxu0 0
        %2561 = vmatpush1.bf16.msra.mxu0 0
        %2562 = vmatprep.subr.bf16.mxu0 0
        %2563 = vmatpush1.bf16.msra.mxu0 0
        %2564 = vmatprep.subr.bf16.mxu0 0
        %2565 = vmatpush1.bf16.msra.mxu0 0
        %2566 = vmatprep.subr.bf16.mxu0 0
        %2567 = vmatpush1.bf16.msra.mxu0 0
        %2568 = vmatprep.mubr.bf16.mxu0 0
        %2569 = vmatmul.mubr.bf16.gmra.mrb[0].mxu0 %v2468
        %v2570 = vpop.f32.mrb[0].mxu0
        %v2571 = vadd.f32 %v2522, %v2570
        %v2572 = vpop.f32.mrb[0].mxu0
        %v2573 = vpop.f32.mrb[0].mxu0
        %v2574 = vpop.f32.mrb[0].mxu0
        %2575 = vdwg.mxu0
        %s2576 = scalar_lea.vmem %s8, 64
        %v2577 = vld [vmem:[%s2576] sm:$0xf]
        %v2578 = vld [vmem:[%s2576 + $0x4] sm:$0xf]
        %v2579 = vld [vmem:[%s2576 + $0x8] sm:$0xf]
        %v2580 = vld [vmem:[%s2576 + $0xc] sm:$0xf]
        %s2581 = scalar_lea.vmem %s9, 4
        %v2582 = vld [vmem:[%s2581] sm:$0x1]
        %v2584 = vlaneseq
        %v2585 = vshrl.u32 %v2584, 7
        %v2586 = vsub.s32 0, %v2585
        %v2587 = vrot.slane %v2582, %v2586
        %v2593 = vunpack.c.l.b16 %v2577
        %v2594 = vunpack.c.l.b16 %v2578
        %v2595 = vunpack.c.l.b16 %v2579
        %v2596 = vunpack.c.l.b16 %v2580
        %v2597 = vpack.c.b16 %v2594, %v2593
        %v2598 = vpack.c.b16 %v2596, %v2595
        %2601 = vmatprep.subr.bf16.mxu0 0
        %2602 = vmatpush1.bf16.msra.mxu0 %v2597
        %2603 = vmatprep.subr.bf16.mxu0 0
        %2604 = vmatpush1.bf16.msra.mxu0 %v2598
        %2605 = vmatprep.subr.bf16.mxu0 0
        %2606 = vmatpush1.bf16.msra.mxu0 0
        %2607 = vmatprep.subr.bf16.mxu0 0
        %2608 = vmatpush1.bf16.msra.mxu0 0
        %2609 = vmatprep.subr.bf16.mxu0 0
        %2610 = vmatpush1.bf16.msra.mxu0 0
        %2611 = vmatprep.subr.bf16.mxu0 0
        %2612 = vmatpush1.bf16.msra.mxu0 0
        %2613 = vmatprep.subr.bf16.mxu0 0
        %2614 = vmatpush1.bf16.msra.mxu0 0
        %2615 = vmatprep.subr.bf16.mxu0 0
        %2616 = vmatpush1.bf16.msra.mxu0 0
        %2617 = vmatprep.subr.bf16.mxu0 0
        %2618 = vmatpush1.bf16.msra.mxu0 0
        %2619 = vmatprep.subr.bf16.mxu0 0
        %2620 = vmatpush1.bf16.msra.mxu0 0
        %2621 = vmatprep.subr.bf16.mxu0 0
        %2622 = vmatpush1.bf16.msra.mxu0 0
        %2623 = vmatprep.subr.bf16.mxu0 0
        %2624 = vmatpush1.bf16.msra.mxu0 0
        %2625 = vmatprep.subr.bf16.mxu0 0
        %2626 = vmatpush1.bf16.msra.mxu0 0
        %2627 = vmatprep.subr.bf16.mxu0 0
        %2628 = vmatpush1.bf16.msra.mxu0 0
        %2629 = vmatprep.subr.bf16.mxu0 0
        %2630 = vmatpush1.bf16.msra.mxu0 0
        %2631 = vmatprep.subr.bf16.mxu0 0
        %2632 = vmatpush1.bf16.msra.mxu0 0
        %2633 = vmatprep.mubr.bf16.mxu0 0
        %2634 = vmatmul.mubr.bf16.gmra.mrb[0].mxu0 %v2468
        %v2635 = vpop.f32.mrb[0].mxu0
        %v2636 = vadd.f32 %v2587, %v2635
        %v2637 = vpop.f32.mrb[0].mxu0
        %v2638 = vpop.f32.mrb[0].mxu0
        %v2639 = vpop.f32.mrb[0].mxu0
        %2640 = vdwg.mxu0
        %v2641 = vpack.c.bf16 %v2510, %v2510
        %v2642 = vpack.c.bf16 %v2571, %v2571
        %v2644 = vsel %vm982, %v2641, 0
        %v2647 = vsel %vm982, %v2642, 0
        %2649 = vmatprep.subr.bf16.mxu0 0
        %2650 = vmatpush1.bf16.xpose.msra.mxu0 %v2647
        %2651 = vmatprep.subr.bf16.mxu0 0
        %2652 = vmatpush1.bf16.xpose.msra.mxu0 0
        %2653 = vmatprep.subr.bf16.mxu0 0
        %2654 = vmatpush1.bf16.xpose.msra.mxu0 0
        %2655 = vmatprep.subr.bf16.mxu0 0
        %2656 = vmatpush1.bf16.xpose.msra.mxu0 0
        %2657 = vmatprep.subr.bf16.mxu0 0
        %2658 = vmatpush1.bf16.xpose.msra.mxu0 0
        %2659 = vmatprep.subr.bf16.mxu0 0
        %2660 = vmatpush1.bf16.xpose.msra.mxu0 0
        %2661 = vmatprep.subr.bf16.mxu0 0
        %2662 = vmatpush1.bf16.xpose.msra.mxu0 0
        %2663 = vmatprep.subr.bf16.mxu0 0
        %2664 = vmatpush1.bf16.xpose.msra.mxu0 0
        %2665 = vmatprep.subr.bf16.mxu0 0
        %2666 = vmatpush1.bf16.xpose.msra.mxu0 0
        %2667 = vmatprep.subr.bf16.mxu0 0
        %2668 = vmatpush1.bf16.xpose.msra.mxu0 0
        %2669 = vmatprep.subr.bf16.mxu0 0
        %2670 = vmatpush1.bf16.xpose.msra.mxu0 0
        %2671 = vmatprep.subr.bf16.mxu0 0
        %2672 = vmatpush1.bf16.xpose.msra.mxu0 0
        %2673 = vmatprep.subr.bf16.mxu0 0
        %2674 = vmatpush1.bf16.xpose.msra.mxu0 0
        %2675 = vmatprep.subr.bf16.mxu0 0
        %2676 = vmatpush1.bf16.xpose.msra.mxu0 0
        %2677 = vmatprep.subr.bf16.mxu0 0
        %2678 = vmatpush1.bf16.xpose.msra.mxu0 0
        %2679 = vmatprep.subr.bf16.mxu0 0
        %2680 = vmatpush1.bf16.xpose.msra.mxu0 0
        %2681 = vmatprep.mubr.bf16.mxu0 0
        %2682 = vmatmul.mubr.bf16.gmra.mrb[0].mxu0 %v2644
        %v2683 = vpop.f32.mrb[0].mxu0
        %v2684 = vadd.f32 %v980, %v2683
        %v2685 = vpop.f32.mrb[0].mxu0
        %v2686 = vpop.f32.mrb[0].mxu0
        %v2687 = vpop.f32.mrb[0].mxu0
        %2688 = vdwg.mxu0
        %v2689 = vsel %vm982, %v2684, -inf
        %2690 = vmax.xlane.f32.xlu0 %v2689
        %v2691 = vpop.xlane.xlu0 %2690
        %v2692 = vsub.f32 %v2684, %v2691
        %v2693 = vmul.f32 %v2692, 1.442695
        %v2694 = vpow.pop %v2693
        %v2695 = vsel %vm982, %v2694, 0.0
        %2696 = vadd.xlane.f32.xlu0 %v2695
        %v2697 = vpop.xlane.xlu0 %2696
        %v2698 = vrcp.pop %v2697
        %v2699 = vmul.f32 %v2694, %v2698
        %v2700 = vpack.c.bf16 %v2636, %v2636
        %v2701 = vpack.c.bf16 %v2699, %v2699
        %v2703 = vsel %vm982, %v2701, 0
        %v2706 = vsel %vm1045, %v2700, 0
        %2708 = vmatprep.subr.bf16.mxu0 0
        %2709 = vmatpush1.bf16.msra.mxu0 %v2706
        %2710 = vmatprep.subr.bf16.mxu0 0
        %2711 = vmatpush1.bf16.msra.mxu0 0
        %2712 = vmatprep.subr.bf16.mxu0 0
        %2713 = vmatpush1.bf16.msra.mxu0 0
        %2714 = vmatprep.subr.bf16.mxu0 0
        %2715 = vmatpush1.bf16.msra.mxu0 0
        %2716 = vmatprep.subr.bf16.mxu0 0
        %2717 = vmatpush1.bf16.msra.mxu0 0
        %2718 = vmatprep.subr.bf16.mxu0 0
        %2719 = vmatpush1.bf16.msra.mxu0 0
        %2720 = vmatprep.subr.bf16.mxu0 0
        %2721 = vmatpush1.bf16.msra.mxu0 0
        %2722 = vmatprep.subr.bf16.mxu0 0
        %2723 = vmatpush1.bf16.msra.mxu0 0
        %2724 = vmatprep.subr.bf16.mxu0 0
        %2725 = vmatpush1.bf16.msra.mxu0 0
        %2726 = vmatprep.subr.bf16.mxu0 0
        %2727 = vmatpush1.bf16.msra.mxu0 0
        %2728 = vmatprep.subr.bf16.mxu0 0
        %2729 = vmatpush1.bf16.msra.mxu0 0
        %2730 = vmatprep.subr.bf16.mxu0 0
        %2731 = vmatpush1.bf16.msra.mxu0 0
        %2732 = vmatprep.subr.bf16.mxu0 0
        %2733 = vmatpush1.bf16.msra.mxu0 0
        %2734 = vmatprep.subr.bf16.mxu0 0
        %2735 = vmatpush1.bf16.msra.mxu0 0
        %2736 = vmatprep.subr.bf16.mxu0 0
        %2737 = vmatpush1.bf16.msra.mxu0 0
        %2738 = vmatprep.subr.bf16.mxu0 0
        %2739 = vmatpush1.bf16.msra.mxu0 0
        %2740 = vmatprep.mubr.bf16.mxu0 0
        %2741 = vmatmul.mubr.bf16.gmra.mrb[0].mxu0 %v2703
        %v2742 = vpop.f32.mrb[0].mxu0
        %v2743 = vadd.f32 0.0, %v2742
        %v2744 = vpop.f32.mrb[0].mxu0
        %v2745 = vpop.f32.mrb[0].mxu0
        %v2746 = vpop.f32.mrb[0].mxu0
        %2747 = vdwg.mxu0
        %s2748 = scalar_lea.vmem %s10, 16
        %v2749 = vld [vmem:[%s2748] sm:$0xf]
        %v2750 = vpack.c.bf16 %v2743, %v2743
        %s2751 = scalar_lea.vmem %s4, 80
        %v2752 = vld [vmem:[%s2751] sm:$0xf]
        %v2753 = vld [vmem:[%s2751 + $0x4] sm:$0xf]
        %v2754 = vld [vmem:[%s2751 + $0x8] sm:$0xf]
        %v2755 = vld [vmem:[%s2751 + $0xc] sm:$0xf]
        %s2756 = scalar_lea.vmem %s5, 5
        %v2757 = vld [vmem:[%s2756] sm:$0x1]
        %v2759 = vlaneseq
        %v2760 = vshrl.u32 %v2759, 7
        %v2761 = vsub.s32 0, %v2760
        %v2762 = vrot.slane %v2757, %v2761
        %v2768 = vunpack.c.l.b16 %v2752
        %v2769 = vunpack.c.l.b16 %v2753
        %v2770 = vunpack.c.l.b16 %v2754
        %v2771 = vunpack.c.l.b16 %v2755
        %v2772 = vpack.c.b16 %v2769, %v2768
        %v2773 = vpack.c.b16 %v2771, %v2770
        %2776 = vmatprep.subr.bf16.mxu0 0
        %2777 = vmatpush1.bf16.msra.mxu0 %v2772
        %2778 = vmatprep.subr.bf16.mxu0 0
        %2779 = vmatpush1.bf16.msra.mxu0 %v2773
        %2780 = vmatprep.subr.bf16.mxu0 0
        %2781 = vmatpush1.bf16.msra.mxu0 0
        %2782 = vmatprep.subr.bf16.mxu0 0
        %2783 = vmatpush1.bf16.msra.mxu0 0
        %2784 = vmatprep.subr.bf16.mxu0 0
        %2785 = vmatpush1.bf16.msra.mxu0 0
        %2786 = vmatprep.subr.bf16.mxu0 0
        %2787 = vmatpush1.bf16.msra.mxu0 0
        %2788 = vmatprep.subr.bf16.mxu0 0
        %2789 = vmatpush1.bf16.msra.mxu0 0
        %2790 = vmatprep.subr.bf16.mxu0 0
        %2791 = vmatpush1.bf16.msra.mxu0 0
        %2792 = vmatprep.subr.bf16.mxu0 0
        %2793 = vmatpush1.bf16.msra.mxu0 0
        %2794 = vmatprep.subr.bf16.mxu0 0
        %2795 = vmatpush1.bf16.msra.mxu0 0
        %2796 = vmatprep.subr.bf16.mxu0 0
        %2797 = vmatpush1.bf16.msra.mxu0 0
        %2798 = vmatprep.subr.bf16.mxu0 0
        %2799 = vmatpush1.bf16.msra.mxu0 0
        %2800 = vmatprep.subr.bf16.mxu0 0
        %2801 = vmatpush1.bf16.msra.mxu0 0
        %2802 = vmatprep.subr.bf16.mxu0 0
        %2803 = vmatpush1.bf16.msra.mxu0 0
        %2804 = vmatprep.subr.bf16.mxu0 0
        %2805 = vmatpush1.bf16.msra.mxu0 0
        %2806 = vmatprep.subr.bf16.mxu0 0
        %2807 = vmatpush1.bf16.msra.mxu0 0
        %2808 = vmatprep.mubr.bf16.mxu0 0
        %2809 = vmatmul.mubr.bf16.gmra.mrb[0].mxu0 %v2468
        %v2810 = vpop.f32.mrb[0].mxu0
        %v2811 = vadd.f32 %v2762, %v2810
        %v2812 = vpop.f32.mrb[0].mxu0
        %v2813 = vpop.f32.mrb[0].mxu0
        %v2814 = vpop.f32.mrb[0].mxu0
        %2815 = vdwg.mxu0
        %v2816 = vmul.f32 %v2811, 0.35355338
        %s2817 = scalar_lea.vmem %s6, 80
        %v2818 = vld [vmem:[%s2817] sm:$0xf]
        %v2819 = vld [vmem:[%s2817 + $0x4] sm:$0xf]
        %v2820 = vld [vmem:[%s2817 + $0x8] sm:$0xf]
        %v2821 = vld [vmem:[%s2817 + $0xc] sm:$0xf]
        %s2822 = scalar_lea.vmem %s7, 5
        %v2823 = vld [vmem:[%s2822] sm:$0x1]
        %v2825 = vlaneseq
        %v2826 = vshrl.u32 %v2825, 7
        %v2827 = vsub.s32 0, %v2826
        %v2828 = vrot.slane %v2823, %v2827
        %v2834 = vunpack.c.l.b16 %v2818
        %v2835 = vunpack.c.l.b16 %v2819
        %v2836 = vunpack.c.l.b16 %v2820
        %v2837 = vunpack.c.l.b16 %v2821
        %v2838 = vpack.c.b16 %v2835, %v2834
        %v2839 = vpack.c.b16 %v2837, %v2836
        %2842 = vmatprep.subr.bf16.mxu0 0
        %2843 = vmatpush1.bf16.msra.mxu0 %v2838
        %2844 = vmatprep.subr.bf16.mxu0 0
        %2845 = vmatpush1.bf16.msra.mxu0 %v2839
        %2846 = vmatprep.subr.bf16.mxu0 0
        %2847 = vmatpush1.bf16.msra.mxu0 0
        %2848 = vmatprep.subr.bf16.mxu0 0
        %2849 = vmatpush1.bf16.msra.mxu0 0
        %2850 = vmatprep.subr.bf16.mxu0 0
        %2851 = vmatpush1.bf16.msra.mxu0 0
        %2852 = vmatprep.subr.bf16.mxu0 0
        %2853 = vmatpush1.bf16.msra.mxu0 0
        %2854 = vmatprep.subr.bf16.mxu0 0
        %2855 = vmatpush1.bf16.msra.mxu0 0
        %2856 = vmatprep.subr.bf16.mxu0 0
        %2857 = vmatpush1.bf16.msra.mxu0 0
        %2858 = vmatprep.subr.bf16.mxu0 0
        %2859 = vmatpush1.bf16.msra.mxu0 0
        %2860 = vmatprep.subr.bf16.mxu0 0
        %2861 = vmatpush1.bf16.msra.mxu0 0
        %2862 = vmatprep.subr.bf16.mxu0 0
        %2863 = vmatpush1.bf16.msra.mxu0 0
        %2864 = vmatprep.subr.bf16.mxu0 0
        %2865 = vmatpush1.bf16.msra.mxu0 0
        %2866 = vmatprep.subr.bf16.mxu0 0
        %2867 = vmatpush1.bf16.msra.mxu0 0
        %2868 = vmatprep.subr.bf16.mxu0 0
        %2869 = vmatpush1.bf16.msra.mxu0 0
        %2870 = vmatprep.subr.bf16.mxu0 0
        %2871 = vmatpush1.bf16.msra.mxu0 0
        %2872 = vmatprep.subr.bf16.mxu0 0
        %2873 = vmatpush1.bf16.msra.mxu0 0
        %2874 = vmatprep.mubr.bf16.mxu0 0
        %2875 = vmatmul.mubr.bf16.gmra.mrb[0].mxu0 %v2468
        %v2876 = vpop.f32.mrb[0].mxu0
        %v2877 = vadd.f32 %v2828, %v2876
        %v2878 = vpop.f32.mrb[0].mxu0
        %v2879 = vpop.f32.mrb[0].mxu0
        %v2880 = vpop.f32.mrb[0].mxu0
        %2881 = vdwg.mxu0
        %s2882 = scalar_lea.vmem %s8, 80
        %v2883 = vld [vmem:[%s2882] sm:$0xf]
        %v2884 = vld [vmem:[%s2882 + $0x4] sm:$0xf]
        %v2885 = vld [vmem:[%s2882 + $0x8] sm:$0xf]
        %v2886 = vld [vmem:[%s2882 + $0xc] sm:$0xf]
        %s2887 = scalar_lea.vmem %s9, 5
        %v2888 = vld [vmem:[%s2887] sm:$0x1]
        %v2890 = vlaneseq
        %v2891 = vshrl.u32 %v2890, 7
        %v2892 = vsub.s32 0, %v2891
        %v2893 = vrot.slane %v2888, %v2892
        %v2899 = vunpack.c.l.b16 %v2883
        %v2900 = vunpack.c.l.b16 %v2884
        %v2901 = vunpack.c.l.b16 %v2885
        %v2902 = vunpack.c.l.b16 %v2886
        %v2903 = vpack.c.b16 %v2900, %v2899
        %v2904 = vpack.c.b16 %v2902, %v2901
        %2907 = vmatprep.subr.bf16.mxu0 0
        %2908 = vmatpush1.bf16.msra.mxu0 %v2903
        %2909 = vmatprep.subr.bf16.mxu0 0
        %2910 = vmatpush1.bf16.msra.mxu0 %v2904
        %2911 = vmatprep.subr.bf16.mxu0 0
        %2912 = vmatpush1.bf16.msra.mxu0 0
        %2913 = vmatprep.subr.bf16.mxu0 0
        %2914 = vmatpush1.bf16.msra.mxu0 0
        %2915 = vmatprep.subr.bf16.mxu0 0
        %2916 = vmatpush1.bf16.msra.mxu0 0
        %2917 = vmatprep.subr.bf16.mxu0 0
        %2918 = vmatpush1.bf16.msra.mxu0 0
        %2919 = vmatprep.subr.bf16.mxu0 0
        %2920 = vmatpush1.bf16.msra.mxu0 0
        %2921 = vmatprep.subr.bf16.mxu0 0
        %2922 = vmatpush1.bf16.msra.mxu0 0
        %2923 = vmatprep.subr.bf16.mxu0 0
        %2924 = vmatpush1.bf16.msra.mxu0 0
        %2925 = vmatprep.subr.bf16.mxu0 0
        %2926 = vmatpush1.bf16.msra.mxu0 0
        %2927 = vmatprep.subr.bf16.mxu0 0
        %2928 = vmatpush1.bf16.msra.mxu0 0
        %2929 = vmatprep.subr.bf16.mxu0 0
        %2930 = vmatpush1.bf16.msra.mxu0 0
        %2931 = vmatprep.subr.bf16.mxu0 0
        %2932 = vmatpush1.bf16.msra.mxu0 0
        %2933 = vmatprep.subr.bf16.mxu0 0
        %2934 = vmatpush1.bf16.msra.mxu0 0
        %2935 = vmatprep.subr.bf16.mxu0 0
        %2936 = vmatpush1.bf16.msra.mxu0 0
        %2937 = vmatprep.subr.bf16.mxu0 0
        %2938 = vmatpush1.bf16.msra.mxu0 0
        %2939 = vmatprep.mubr.bf16.mxu0 0
        %2940 = vmatmul.mubr.bf16.gmra.mrb[0].mxu0 %v2468
        %v2941 = vpop.f32.mrb[0].mxu0
        %v2942 = vadd.f32 %v2893, %v2941
        %v2943 = vpop.f32.mrb[0].mxu0
        %v2944 = vpop.f32.mrb[0].mxu0
        %v2945 = vpop.f32.mrb[0].mxu0
        %2946 = vdwg.mxu0
        %v2947 = vpack.c.bf16 %v2816, %v2816
        %v2948 = vpack.c.bf16 %v2877, %v2877
        %v2950 = vsel %vm982, %v2947, 0
        %v2953 = vsel %vm982, %v2948, 0
        %2955 = vmatprep.subr.bf16.mxu0 0
        %2956 = vmatpush1.bf16.xpose.msra.mxu0 %v2953
        %2957 = vmatprep.subr.bf16.mxu0 0
        %2958 = vmatpush1.bf16.xpose.msra.mxu0 0
        %2959 = vmatprep.subr.bf16.mxu0 0
        %2960 = vmatpush1.bf16.xpose.msra.mxu0 0
        %2961 = vmatprep.subr.bf16.mxu0 0
        %2962 = vmatpush1.bf16.xpose.msra.mxu0 0
        %2963 = vmatprep.subr.bf16.mxu0 0
        %2964 = vmatpush1.bf16.xpose.msra.mxu0 0
        %2965 = vmatprep.subr.bf16.mxu0 0
        %2966 = vmatpush1.bf16.xpose.msra.mxu0 0
        %2967 = vmatprep.subr.bf16.mxu0 0
        %2968 = vmatpush1.bf16.xpose.msra.mxu0 0
        %2969 = vmatprep.subr.bf16.mxu0 0
        %2970 = vmatpush1.bf16.xpose.msra.mxu0 0
        %2971 = vmatprep.subr.bf16.mxu0 0
        %2972 = vmatpush1.bf16.xpose.msra.mxu0 0
        %2973 = vmatprep.subr.bf16.mxu0 0
        %2974 = vmatpush1.bf16.xpose.msra.mxu0 0
        %2975 = vmatprep.subr.bf16.mxu0 0
        %2976 = vmatpush1.bf16.xpose.msra.mxu0 0
        %2977 = vmatprep.subr.bf16.mxu0 0
        %2978 = vmatpush1.bf16.xpose.msra.mxu0 0
        %2979 = vmatprep.subr.bf16.mxu0 0
        %2980 = vmatpush1.bf16.xpose.msra.mxu0 0
        %2981 = vmatprep.subr.bf16.mxu0 0
        %2982 = vmatpush1.bf16.xpose.msra.mxu0 0
        %2983 = vmatprep.subr.bf16.mxu0 0
        %2984 = vmatpush1.bf16.xpose.msra.mxu0 0
        %2985 = vmatprep.subr.bf16.mxu0 0
        %2986 = vmatpush1.bf16.xpose.msra.mxu0 0
        %2987 = vmatprep.mubr.bf16.mxu0 0
        %2988 = vmatmul.mubr.bf16.gmra.mrb[0].mxu0 %v2950
        %v2989 = vpop.f32.mrb[0].mxu0
        %v2990 = vadd.f32 %v980, %v2989
        %v2991 = vpop.f32.mrb[0].mxu0
        %v2992 = vpop.f32.mrb[0].mxu0
        %v2993 = vpop.f32.mrb[0].mxu0
        %2994 = vdwg.mxu0
        %v2995 = vsel %vm982, %v2990, -inf
        %2996 = vmax.xlane.f32.xlu0 %v2995
        %v2997 = vpop.xlane.xlu0 %2996
        %v2998 = vsub.f32 %v2990, %v2997
        %v2999 = vmul.f32 %v2998, 1.442695
        %v3000 = vpow.pop %v2999
        %v3001 = vsel %vm982, %v3000, 0.0
        %3002 = vadd.xlane.f32.xlu0 %v3001
        %v3003 = vpop.xlane.xlu0 %3002
        %v3004 = vrcp.pop %v3003
        %v3005 = vmul.f32 %v3000, %v3004
        %v3006 = vpack.c.bf16 %v2942, %v2942
        %v3007 = vpack.c.bf16 %v3005, %v3005
        %v3009 = vsel %vm982, %v3007, 0
        %v3012 = vsel %vm1045, %v3006, 0
        %3014 = vmatprep.subr.bf16.mxu0 0
        %3015 = vmatpush1.bf16.msra.mxu0 %v3012
        %3016 = vmatprep.subr.bf16.mxu0 0
        %3017 = vmatpush1.bf16.msra.mxu0 0
        %3018 = vmatprep.subr.bf16.mxu0 0
        %3019 = vmatpush1.bf16.msra.mxu0 0
        %3020 = vmatprep.subr.bf16.mxu0 0
        %3021 = vmatpush1.bf16.msra.mxu0 0
        %3022 = vmatprep.subr.bf16.mxu0 0
        %3023 = vmatpush1.bf16.msra.mxu0 0
        %3024 = vmatprep.subr.bf16.mxu0 0
        %3025 = vmatpush1.bf16.msra.mxu0 0
        %3026 = vmatprep.subr.bf16.mxu0 0
        %3027 = vmatpush1.bf16.msra.mxu0 0
        %3028 = vmatprep.subr.bf16.mxu0 0
        %3029 = vmatpush1.bf16.msra.mxu0 0
        %3030 = vmatprep.subr.bf16.mxu0 0
        %3031 = vmatpush1.bf16.msra.mxu0 0
        %3032 = vmatprep.subr.bf16.mxu0 0
        %3033 = vmatpush1.bf16.msra.mxu0 0
        %3034 = vmatprep.subr.bf16.mxu0 0
        %3035 = vmatpush1.bf16.msra.mxu0 0
        %3036 = vmatprep.subr.bf16.mxu0 0
        %3037 = vmatpush1.bf16.msra.mxu0 0
        %3038 = vmatprep.subr.bf16.mxu0 0
        %3039 = vmatpush1.bf16.msra.mxu0 0
        %3040 = vmatprep.subr.bf16.mxu0 0
        %3041 = vmatpush1.bf16.msra.mxu0 0
        %3042 = vmatprep.subr.bf16.mxu0 0
        %3043 = vmatpush1.bf16.msra.mxu0 0
        %3044 = vmatprep.subr.bf16.mxu0 0
        %3045 = vmatpush1.bf16.msra.mxu0 0
        %3046 = vmatprep.mubr.bf16.mxu0 0
        %3047 = vmatmul.mubr.bf16.gmra.mrb[0].mxu0 %v3009
        %v3048 = vpop.f32.mrb[0].mxu0
        %v3049 = vadd.f32 0.0, %v3048
        %v3050 = vpop.f32.mrb[0].mxu0
        %v3051 = vpop.f32.mrb[0].mxu0
        %v3052 = vpop.f32.mrb[0].mxu0
        %3053 = vdwg.mxu0
        %s3054 = scalar_lea.vmem %s10, 20
        %v3055 = vld [vmem:[%s3054] sm:$0xf]
        %v3056 = vpack.c.bf16 %v3049, %v3049
        %v3058 = vsel %vm982, %v3056, 0
        %v3061 = vsel %vm1045, %v3055, 0
        %3063 = vmatprep.subr.bf16.mxu0 0
        %3064 = vmatpush1.bf16.msra.mxu0 %v3061
        %3065 = vmatprep.subr.bf16.mxu0 0
        %3066 = vmatpush1.bf16.msra.mxu0 0
        %3067 = vmatprep.subr.bf16.mxu0 0
        %3068 = vmatpush1.bf16.msra.mxu0 0
        %3069 = vmatprep.subr.bf16.mxu0 0
        %3070 = vmatpush1.bf16.msra.mxu0 0
        %3071 = vmatprep.subr.bf16.mxu0 0
        %3072 = vmatpush1.bf16.msra.mxu0 0
        %3073 = vmatprep.subr.bf16.mxu0 0
        %3074 = vmatpush1.bf16.msra.mxu0 0
        %3075 = vmatprep.subr.bf16.mxu0 0
        %3076 = vmatpush1.bf16.msra.mxu0 0
        %3077 = vmatprep.subr.bf16.mxu0 0
        %3078 = vmatpush1.bf16.msra.mxu0 0
        %3079 = vmatprep.subr.bf16.mxu0 0
        %3080 = vmatpush1.bf16.msra.mxu0 0
        %3081 = vmatprep.subr.bf16.mxu0 0
        %3082 = vmatpush1.bf16.msra.mxu0 0
        %3083 = vmatprep.subr.bf16.mxu0 0
        %3084 = vmatpush1.bf16.msra.mxu0 0
        %3085 = vmatprep.subr.bf16.mxu0 0
        %3086 = vmatpush1.bf16.msra.mxu0 0
        %3087 = vmatprep.subr.bf16.mxu0 0
        %3088 = vmatpush1.bf16.msra.mxu0 0
        %3089 = vmatprep.subr.bf16.mxu0 0
        %3090 = vmatpush1.bf16.msra.mxu0 0
        %3091 = vmatprep.subr.bf16.mxu0 0
        %3092 = vmatpush1.bf16.msra.mxu0 0
        %3093 = vmatprep.subr.bf16.mxu0 0
        %3094 = vmatpush1.bf16.msra.mxu0 0
        %3095 = vmatprep.mubr.bf16.mxu0 0
        %3096 = vmatmul.mubr.bf16.gmra.mrb[0].mxu0 %v3058
        %v3097 = vpop.f32.mrb[0].mxu0
        %v3098 = vadd.f32 0.0, %v3097
        %v3099 = vpop.f32.mrb[0].mxu0
        %v3100 = vpop.f32.mrb[0].mxu0
        %v3101 = vpop.f32.mrb[0].mxu0
        %3102 = vdwg.mxu0
        %v3104 = vsel %vm982, %v2750, 0
        %v3107 = vsel %vm1045, %v2749, 0
        %3109 = vmatprep.subr.bf16.mxu0 0
        %3110 = vmatpush1.bf16.msra.mxu0 %v3107
        %3111 = vmatprep.subr.bf16.mxu0 0
        %3112 = vmatpush1.bf16.msra.mxu0 0
        %3113 = vmatprep.subr.bf16.mxu0 0
        %3114 = vmatpush1.bf16.msra.mxu0 0
        %3115 = vmatprep.subr.bf16.mxu0 0
        %3116 = vmatpush1.bf16.msra.mxu0 0
        %3117 = vmatprep.subr.bf16.mxu0 0
        %3118 = vmatpush1.bf16.msra.mxu0 0
        %3119 = vmatprep.subr.bf16.mxu0 0
        %3120 = vmatpush1.bf16.msra.mxu0 0
        %3121 = vmatprep.subr.bf16.mxu0 0
        %3122 = vmatpush1.bf16.msra.mxu0 0
        %3123 = vmatprep.subr.bf16.mxu0 0
        %3124 = vmatpush1.bf16.msra.mxu0 0
        %3125 = vmatprep.subr.bf16.mxu0 0
        %3126 = vmatpush1.bf16.msra.mxu0 0
        %3127 = vmatprep.subr.bf16.mxu0 0
        %3128 = vmatpush1.bf16.msra.mxu0 0
        %3129 = vmatprep.subr.bf16.mxu0 0
        %3130 = vmatpush1.bf16.msra.mxu0 0
        %3131 = vmatprep.subr.bf16.mxu0 0
        %3132 = vmatpush1.bf16.msra.mxu0 0
        %3133 = vmatprep.subr.bf16.mxu0 0
        %3134 = vmatpush1.bf16.msra.mxu0 0
        %3135 = vmatprep.subr.bf16.mxu0 0
        %3136 = vmatpush1.bf16.msra.mxu0 0
        %3137 = vmatprep.subr.bf16.mxu0 0
        %3138 = vmatpush1.bf16.msra.mxu0 0
        %3139 = vmatprep.subr.bf16.mxu0 0
        %3140 = vmatpush1.bf16.msra.mxu0 0
        %3141 = vmatprep.mubr.bf16.mxu0 0
        %3142 = vmatmul.mubr.bf16.gmra.mrb[0].mxu0 %v3104
        %v3143 = vpop.f32.mrb[0].mxu0
        %v3144 = vadd.f32 %v3098, %v3143
        %v3145 = vpop.f32.mrb[0].mxu0
        %v3146 = vpop.f32.mrb[0].mxu0
        %v3147 = vpop.f32.mrb[0].mxu0
        %3148 = vdwg.mxu0
        %s3149 = scalar_lea.vmem %s4, 96
        %v3150 = vld [vmem:[%s3149] sm:$0xf]
        %v3151 = vld [vmem:[%s3149 + $0x4] sm:$0xf]
        %v3152 = vld [vmem:[%s3149 + $0x8] sm:$0xf]
        %v3153 = vld [vmem:[%s3149 + $0xc] sm:$0xf]
        %s3154 = scalar_lea.vmem %s5, 6
        %v3155 = vld [vmem:[%s3154] sm:$0x1]
        %v3157 = vlaneseq
        %v3158 = vshrl.u32 %v3157, 7
        %v3159 = vsub.s32 0, %v3158
        %v3160 = vrot.slane %v3155, %v3159
        %v3166 = vunpack.c.l.b16 %v3150
        %v3167 = vunpack.c.l.b16 %v3151
        %v3168 = vunpack.c.l.b16 %v3152
        %v3169 = vunpack.c.l.b16 %v3153
        %v3170 = vpack.c.b16 %v3167, %v3166
        %v3171 = vpack.c.b16 %v3169, %v3168
        %3174 = vmatprep.subr.bf16.mxu0 0
        %3175 = vmatpush1.bf16.msra.mxu0 %v3170
        %3176 = vmatprep.subr.bf16.mxu0 0
        %3177 = vmatpush1.bf16.msra.mxu0 %v3171
        %3178 = vmatprep.subr.bf16.mxu0 0
        %3179 = vmatpush1.bf16.msra.mxu0 0
        %3180 = vmatprep.subr.bf16.mxu0 0
        %3181 = vmatpush1.bf16.msra.mxu0 0
        %3182 = vmatprep.subr.bf16.mxu0 0
        %3183 = vmatpush1.bf16.msra.mxu0 0
        %3184 = vmatprep.subr.bf16.mxu0 0
        %3185 = vmatpush1.bf16.msra.mxu0 0
        %3186 = vmatprep.subr.bf16.mxu0 0
        %3187 = vmatpush1.bf16.msra.mxu0 0
        %3188 = vmatprep.subr.bf16.mxu0 0
        %3189 = vmatpush1.bf16.msra.mxu0 0
        %3190 = vmatprep.subr.bf16.mxu0 0
        %3191 = vmatpush1.bf16.msra.mxu0 0
        %3192 = vmatprep.subr.bf16.mxu0 0
        %3193 = vmatpush1.bf16.msra.mxu0 0
        %3194 = vmatprep.subr.bf16.mxu0 0
        %3195 = vmatpush1.bf16.msra.mxu0 0
        %3196 = vmatprep.subr.bf16.mxu0 0
        %3197 = vmatpush1.bf16.msra.mxu0 0
        %3198 = vmatprep.subr.bf16.mxu0 0
        %3199 = vmatpush1.bf16.msra.mxu0 0
        %3200 = vmatprep.subr.bf16.mxu0 0
        %3201 = vmatpush1.bf16.msra.mxu0 0
        %3202 = vmatprep.subr.bf16.mxu0 0
        %3203 = vmatpush1.bf16.msra.mxu0 0
        %3204 = vmatprep.subr.bf16.mxu0 0
        %3205 = vmatpush1.bf16.msra.mxu0 0
        %3206 = vmatprep.mubr.bf16.mxu0 0
        %3207 = vmatmul.mubr.bf16.gmra.mrb[0].mxu0 %v2468
        %v3208 = vpop.f32.mrb[0].mxu0
        %v3209 = vadd.f32 %v3160, %v3208
        %v3210 = vpop.f32.mrb[0].mxu0
        %v3211 = vpop.f32.mrb[0].mxu0
        %v3212 = vpop.f32.mrb[0].mxu0
        %3213 = vdwg.mxu0
        %v3214 = vmul.f32 %v3209, 0.35355338
        %s3215 = scalar_lea.vmem %s6, 96
        %v3216 = vld [vmem:[%s3215] sm:$0xf]
        %v3217 = vld [vmem:[%s3215 + $0x4] sm:$0xf]
        %v3218 = vld [vmem:[%s3215 + $0x8] sm:$0xf]
        %v3219 = vld [vmem:[%s3215 + $0xc] sm:$0xf]
        %s3220 = scalar_lea.vmem %s7, 6
        %v3221 = vld [vmem:[%s3220] sm:$0x1]
        %v3223 = vlaneseq
        %v3224 = vshrl.u32 %v3223, 7
        %v3225 = vsub.s32 0, %v3224
        %v3226 = vrot.slane %v3221, %v3225
        %v3232 = vunpack.c.l.b16 %v3216
        %v3233 = vunpack.c.l.b16 %v3217
        %v3234 = vunpack.c.l.b16 %v3218
        %v3235 = vunpack.c.l.b16 %v3219
        %v3236 = vpack.c.b16 %v3233, %v3232
        %v3237 = vpack.c.b16 %v3235, %v3234
        %3240 = vmatprep.subr.bf16.mxu0 0
        %3241 = vmatpush1.bf16.msra.mxu0 %v3236
        %3242 = vmatprep.subr.bf16.mxu0 0
        %3243 = vmatpush1.bf16.msra.mxu0 %v3237
        %3244 = vmatprep.subr.bf16.mxu0 0
        %3245 = vmatpush1.bf16.msra.mxu0 0
        %3246 = vmatprep.subr.bf16.mxu0 0
        %3247 = vmatpush1.bf16.msra.mxu0 0
        %3248 = vmatprep.subr.bf16.mxu0 0
        %3249 = vmatpush1.bf16.msra.mxu0 0
        %3250 = vmatprep.subr.bf16.mxu0 0
        %3251 = vmatpush1.bf16.msra.mxu0 0
        %3252 = vmatprep.subr.bf16.mxu0 0
        %3253 = vmatpush1.bf16.msra.mxu0 0
        %3254 = vmatprep.subr.bf16.mxu0 0
        %3255 = vmatpush1.bf16.msra.mxu0 0
        %3256 = vmatprep.subr.bf16.mxu0 0
        %3257 = vmatpush1.bf16.msra.mxu0 0
        %3258 = vmatprep.subr.bf16.mxu0 0
        %3259 = vmatpush1.bf16.msra.mxu0 0
        %3260 = vmatprep.subr.bf16.mxu0 0
        %3261 = vmatpush1.bf16.msra.mxu0 0
        %3262 = vmatprep.subr.bf16.mxu0 0
        %3263 = vmatpush1.bf16.msra.mxu0 0
        %3264 = vmatprep.subr.bf16.mxu0 0
        %3265 = vmatpush1.bf16.msra.mxu0 0
        %3266 = vmatprep.subr.bf16.mxu0 0
        %3267 = vmatpush1.bf16.msra.mxu0 0
        %3268 = vmatprep.subr.bf16.mxu0 0
        %3269 = vmatpush1.bf16.msra.mxu0 0
        %3270 = vmatprep.subr.bf16.mxu0 0
        %3271 = vmatpush1.bf16.msra.mxu0 0
        %3272 = vmatprep.mubr.bf16.mxu0 0
        %3273 = vmatmul.mubr.bf16.gmra.mrb[0].mxu0 %v2468
        %v3274 = vpop.f32.mrb[0].mxu0
        %v3275 = vadd.f32 %v3226, %v3274
        %v3276 = vpop.f32.mrb[0].mxu0
        %v3277 = vpop.f32.mrb[0].mxu0
        %v3278 = vpop.f32.mrb[0].mxu0
        %3279 = vdwg.mxu0
        %s3280 = scalar_lea.vmem %s8, 96
        %v3281 = vld [vmem:[%s3280] sm:$0xf]
        %v3282 = vld [vmem:[%s3280 + $0x4] sm:$0xf]
        %v3283 = vld [vmem:[%s3280 + $0x8] sm:$0xf]
        %v3284 = vld [vmem:[%s3280 + $0xc] sm:$0xf]
        %s3285 = scalar_lea.vmem %s9, 6
        %v3286 = vld [vmem:[%s3285] sm:$0x1]
        %v3288 = vlaneseq
        %v3289 = vshrl.u32 %v3288, 7
        %v3290 = vsub.s32 0, %v3289
        %v3291 = vrot.slane %v3286, %v3290
        %v3297 = vunpack.c.l.b16 %v3281
        %v3298 = vunpack.c.l.b16 %v3282
        %v3299 = vunpack.c.l.b16 %v3283
        %v3300 = vunpack.c.l.b16 %v3284
        %v3301 = vpack.c.b16 %v3298, %v3297
        %v3302 = vpack.c.b16 %v3300, %v3299
        %3305 = vmatprep.subr.bf16.mxu0 0
        %3306 = vmatpush1.bf16.msra.mxu0 %v3301
        %3307 = vmatprep.subr.bf16.mxu0 0
        %3308 = vmatpush1.bf16.msra.mxu0 %v3302
        %3309 = vmatprep.subr.bf16.mxu0 0
        %3310 = vmatpush1.bf16.msra.mxu0 0
        %3311 = vmatprep.subr.bf16.mxu0 0
        %3312 = vmatpush1.bf16.msra.mxu0 0
        %3313 = vmatprep.subr.bf16.mxu0 0
        %3314 = vmatpush1.bf16.msra.mxu0 0
        %3315 = vmatprep.subr.bf16.mxu0 0
        %3316 = vmatpush1.bf16.msra.mxu0 0
        %3317 = vmatprep.subr.bf16.mxu0 0
        %3318 = vmatpush1.bf16.msra.mxu0 0
        %3319 = vmatprep.subr.bf16.mxu0 0
        %3320 = vmatpush1.bf16.msra.mxu0 0
        %3321 = vmatprep.subr.bf16.mxu0 0
        %3322 = vmatpush1.bf16.msra.mxu0 0
        %3323 = vmatprep.subr.bf16.mxu0 0
        %3324 = vmatpush1.bf16.msra.mxu0 0
        %3325 = vmatprep.subr.bf16.mxu0 0
        %3326 = vmatpush1.bf16.msra.mxu0 0
        %3327 = vmatprep.subr.bf16.mxu0 0
        %3328 = vmatpush1.bf16.msra.mxu0 0
        %3329 = vmatprep.subr.bf16.mxu0 0
        %3330 = vmatpush1.bf16.msra.mxu0 0
        %3331 = vmatprep.subr.bf16.mxu0 0
        %3332 = vmatpush1.bf16.msra.mxu0 0
        %3333 = vmatprep.subr.bf16.mxu0 0
        %3334 = vmatpush1.bf16.msra.mxu0 0
        %3335 = vmatprep.subr.bf16.mxu0 0
        %3336 = vmatpush1.bf16.msra.mxu0 0
        %3337 = vmatprep.mubr.bf16.mxu0 0
        %3338 = vmatmul.mubr.bf16.gmra.mrb[0].mxu0 %v2468
        %v3339 = vpop.f32.mrb[0].mxu0
        %v3340 = vadd.f32 %v3291, %v3339
        %v3341 = vpop.f32.mrb[0].mxu0
        %v3342 = vpop.f32.mrb[0].mxu0
        %v3343 = vpop.f32.mrb[0].mxu0
        %3344 = vdwg.mxu0
        %v3345 = vpack.c.bf16 %v3214, %v3214
        %v3346 = vpack.c.bf16 %v3275, %v3275
        %v3348 = vsel %vm982, %v3345, 0
        %v3351 = vsel %vm982, %v3346, 0
        %3353 = vmatprep.subr.bf16.mxu0 0
        %3354 = vmatpush1.bf16.xpose.msra.mxu0 %v3351
        %3355 = vmatprep.subr.bf16.mxu0 0
        %3356 = vmatpush1.bf16.xpose.msra.mxu0 0
        %3357 = vmatprep.subr.bf16.mxu0 0
        %3358 = vmatpush1.bf16.xpose.msra.mxu0 0
        %3359 = vmatprep.subr.bf16.mxu0 0
        %3360 = vmatpush1.bf16.xpose.msra.mxu0 0
        %3361 = vmatprep.subr.bf16.mxu0 0
        %3362 = vmatpush1.bf16.xpose.msra.mxu0 0
        %3363 = vmatprep.subr.bf16.mxu0 0
        %3364 = vmatpush1.bf16.xpose.msra.mxu0 0
        %3365 = vmatprep.subr.bf16.mxu0 0
        %3366 = vmatpush1.bf16.xpose.msra.mxu0 0
        %3367 = vmatprep.subr.bf16.mxu0 0
        %3368 = vmatpush1.bf16.xpose.msra.mxu0 0
        %3369 = vmatprep.subr.bf16.mxu0 0
        %3370 = vmatpush1.bf16.xpose.msra.mxu0 0
        %3371 = vmatprep.subr.bf16.mxu0 0
        %3372 = vmatpush1.bf16.xpose.msra.mxu0 0
        %3373 = vmatprep.subr.bf16.mxu0 0
        %3374 = vmatpush1.bf16.xpose.msra.mxu0 0
        %3375 = vmatprep.subr.bf16.mxu0 0
        %3376 = vmatpush1.bf16.xpose.msra.mxu0 0
        %3377 = vmatprep.subr.bf16.mxu0 0
        %3378 = vmatpush1.bf16.xpose.msra.mxu0 0
        %3379 = vmatprep.subr.bf16.mxu0 0
        %3380 = vmatpush1.bf16.xpose.msra.mxu0 0
        %3381 = vmatprep.subr.bf16.mxu0 0
        %3382 = vmatpush1.bf16.xpose.msra.mxu0 0
        %3383 = vmatprep.subr.bf16.mxu0 0
        %3384 = vmatpush1.bf16.xpose.msra.mxu0 0
        %3385 = vmatprep.mubr.bf16.mxu0 0
        %3386 = vmatmul.mubr.bf16.gmra.mrb[0].mxu0 %v3348
        %v3387 = vpop.f32.mrb[0].mxu0
        %v3388 = vadd.f32 %v980, %v3387
        %v3389 = vpop.f32.mrb[0].mxu0
        %v3390 = vpop.f32.mrb[0].mxu0
        %v3391 = vpop.f32.mrb[0].mxu0
        %3392 = vdwg.mxu0
        %v3393 = vsel %vm982, %v3388, -inf
        %3394 = vmax.xlane.f32.xlu0 %v3393
        %v3395 = vpop.xlane.xlu0 %3394
        %v3396 = vsub.f32 %v3388, %v3395
        %v3397 = vmul.f32 %v3396, 1.442695
        %v3398 = vpow.pop %v3397
        %v3399 = vsel %vm982, %v3398, 0.0
        %3400 = vadd.xlane.f32.xlu0 %v3399
        %v3401 = vpop.xlane.xlu0 %3400
        %v3402 = vrcp.pop %v3401
        %v3403 = vmul.f32 %v3398, %v3402
        %v3404 = vpack.c.bf16 %v3340, %v3340
        %v3405 = vpack.c.bf16 %v3403, %v3403
        %v3407 = vsel %vm982, %v3405, 0
        %v3410 = vsel %vm1045, %v3404, 0
        %3412 = vmatprep.subr.bf16.mxu0 0
        %3413 = vmatpush1.bf16.msra.mxu0 %v3410
        %3414 = vmatprep.subr.bf16.mxu0 0
        %3415 = vmatpush1.bf16.msra.mxu0 0
        %3416 = vmatprep.subr.bf16.mxu0 0
        %3417 = vmatpush1.bf16.msra.mxu0 0
        %3418 = vmatprep.subr.bf16.mxu0 0
        %3419 = vmatpush1.bf16.msra.mxu0 0
        %3420 = vmatprep.subr.bf16.mxu0 0
        %3421 = vmatpush1.bf16.msra.mxu0 0
        %3422 = vmatprep.subr.bf16.mxu0 0
        %3423 = vmatpush1.bf16.msra.mxu0 0
        %3424 = vmatprep.subr.bf16.mxu0 0
        %3425 = vmatpush1.bf16.msra.mxu0 0
        %3426 = vmatprep.subr.bf16.mxu0 0
        %3427 = vmatpush1.bf16.msra.mxu0 0
        %3428 = vmatprep.subr.bf16.mxu0 0
        %3429 = vmatpush1.bf16.msra.mxu0 0
        %3430 = vmatprep.subr.bf16.mxu0 0
        %3431 = vmatpush1.bf16.msra.mxu0 0
        %3432 = vmatprep.subr.bf16.mxu0 0
        %3433 = vmatpush1.bf16.msra.mxu0 0
        %3434 = vmatprep.subr.bf16.mxu0 0
        %3435 = vmatpush1.bf16.msra.mxu0 0
        %3436 = vmatprep.subr.bf16.mxu0 0
        %3437 = vmatpush1.bf16.msra.mxu0 0
        %3438 = vmatprep.subr.bf16.mxu0 0
        %3439 = vmatpush1.bf16.msra.mxu0 0
        %3440 = vmatprep.subr.bf16.mxu0 0
        %3441 = vmatpush1.bf16.msra.mxu0 0
        %3442 = vmatprep.subr.bf16.mxu0 0
        %3443 = vmatpush1.bf16.msra.mxu0 0
        %3444 = vmatprep.mubr.bf16.mxu0 0
        %3445 = vmatmul.mubr.bf16.gmra.mrb[0].mxu0 %v3407
        %v3446 = vpop.f32.mrb[0].mxu0
        %v3447 = vadd.f32 0.0, %v3446
        %v3448 = vpop.f32.mrb[0].mxu0
        %v3449 = vpop.f32.mrb[0].mxu0
        %v3450 = vpop.f32.mrb[0].mxu0
        %3451 = vdwg.mxu0
        %s3452 = scalar_lea.vmem %s10, 24
        %v3453 = vld [vmem:[%s3452] sm:$0xf]
        %v3454 = vpack.c.bf16 %v3447, %v3447
        %v3456 = vsel %vm982, %v3454, 0
        %v3459 = vsel %vm1045, %v3453, 0
        %3461 = vmatprep.subr.bf16.mxu0 0
        %3462 = vmatpush1.bf16.msra.mxu0 %v3459
        %3463 = vmatprep.subr.bf16.mxu0 0
        %3464 = vmatpush1.bf16.msra.mxu0 0
        %3465 = vmatprep.subr.bf16.mxu0 0
        %3466 = vmatpush1.bf16.msra.mxu0 0
        %3467 = vmatprep.subr.bf16.mxu0 0
        %3468 = vmatpush1.bf16.msra.mxu0 0
        %3469 = vmatprep.subr.bf16.mxu0 0
        %3470 = vmatpush1.bf16.msra.mxu0 0
        %3471 = vmatprep.subr.bf16.mxu0 0
        %3472 = vmatpush1.bf16.msra.mxu0 0
        %3473 = vmatprep.subr.bf16.mxu0 0
        %3474 = vmatpush1.bf16.msra.mxu0 0
        %3475 = vmatprep.subr.bf16.mxu0 0
        %3476 = vmatpush1.bf16.msra.mxu0 0
        %3477 = vmatprep.subr.bf16.mxu0 0
        %3478 = vmatpush1.bf16.msra.mxu0 0
        %3479 = vmatprep.subr.bf16.mxu0 0
        %3480 = vmatpush1.bf16.msra.mxu0 0
        %3481 = vmatprep.subr.bf16.mxu0 0
        %3482 = vmatpush1.bf16.msra.mxu0 0
        %3483 = vmatprep.subr.bf16.mxu0 0
        %3484 = vmatpush1.bf16.msra.mxu0 0
        %3485 = vmatprep.subr.bf16.mxu0 0
        %3486 = vmatpush1.bf16.msra.mxu0 0
        %3487 = vmatprep.subr.bf16.mxu0 0
        %3488 = vmatpush1.bf16.msra.mxu0 0
        %3489 = vmatprep.subr.bf16.mxu0 0
        %3490 = vmatpush1.bf16.msra.mxu0 0
        %3491 = vmatprep.subr.bf16.mxu0 0
        %3492 = vmatpush1.bf16.msra.mxu0 0
        %3493 = vmatprep.mubr.bf16.mxu0 0
        %3494 = vmatmul.mubr.bf16.gmra.mrb[0].mxu0 %v3456
        %v3495 = vpop.f32.mrb[0].mxu0
        %v3496 = vadd.f32 0.0, %v3495
        %v3497 = vpop.f32.mrb[0].mxu0
        %v3498 = vpop.f32.mrb[0].mxu0
        %v3499 = vpop.f32.mrb[0].mxu0
        %3500 = vdwg.mxu0
        %v3501 = vadd.f32 %v3144, %v3496
        %s3502 = scalar_lea.vmem %s4, 112
        %v3503 = vld [vmem:[%s3502] sm:$0xf]
        %v3504 = vld [vmem:[%s3502 + $0x4] sm:$0xf]
        %v3505 = vld [vmem:[%s3502 + $0x8] sm:$0xf]
        %v3506 = vld [vmem:[%s3502 + $0xc] sm:$0xf]
        %s3507 = scalar_lea.vmem %s5, 7
        %v3508 = vld [vmem:[%s3507] sm:$0x1]
        %v3510 = vlaneseq
        %v3511 = vshrl.u32 %v3510, 7
        %v3512 = vsub.s32 0, %v3511
        %v3513 = vrot.slane %v3508, %v3512
        %v3519 = vunpack.c.l.b16 %v3503
        %v3520 = vunpack.c.l.b16 %v3504
        %v3521 = vunpack.c.l.b16 %v3505
        %v3522 = vunpack.c.l.b16 %v3506
        %v3523 = vpack.c.b16 %v3520, %v3519
        %v3524 = vpack.c.b16 %v3522, %v3521
        %3527 = vmatprep.subr.bf16.mxu0 0
        %3528 = vmatpush1.bf16.msra.mxu0 %v3523
        %3529 = vmatprep.subr.bf16.mxu0 0
        %3530 = vmatpush1.bf16.msra.mxu0 %v3524
        %3531 = vmatprep.subr.bf16.mxu0 0
        %3532 = vmatpush1.bf16.msra.mxu0 0
        %3533 = vmatprep.subr.bf16.mxu0 0
        %3534 = vmatpush1.bf16.msra.mxu0 0
        %3535 = vmatprep.subr.bf16.mxu0 0
        %3536 = vmatpush1.bf16.msra.mxu0 0
        %3537 = vmatprep.subr.bf16.mxu0 0
        %3538 = vmatpush1.bf16.msra.mxu0 0
        %3539 = vmatprep.subr.bf16.mxu0 0
        %3540 = vmatpush1.bf16.msra.mxu0 0
        %3541 = vmatprep.subr.bf16.mxu0 0
        %3542 = vmatpush1.bf16.msra.mxu0 0
        %3543 = vmatprep.subr.bf16.mxu0 0
        %3544 = vmatpush1.bf16.msra.mxu0 0
        %3545 = vmatprep.subr.bf16.mxu0 0
        %3546 = vmatpush1.bf16.msra.mxu0 0
        %3547 = vmatprep.subr.bf16.mxu0 0
        %3548 = vmatpush1.bf16.msra.mxu0 0
        %3549 = vmatprep.subr.bf16.mxu0 0
        %3550 = vmatpush1.bf16.msra.mxu0 0
        %3551 = vmatprep.subr.bf16.mxu0 0
        %3552 = vmatpush1.bf16.msra.mxu0 0
        %3553 = vmatprep.subr.bf16.mxu0 0
        %3554 = vmatpush1.bf16.msra.mxu0 0
        %3555 = vmatprep.subr.bf16.mxu0 0
        %3556 = vmatpush1.bf16.msra.mxu0 0
        %3557 = vmatprep.subr.bf16.mxu0 0
        %3558 = vmatpush1.bf16.msra.mxu0 0
        %3559 = vmatprep.mubr.bf16.mxu0 0
        %3560 = vmatmul.mubr.bf16.gmra.mrb[0].mxu0 %v2468
        %v3561 = vpop.f32.mrb[0].mxu0
        %v3562 = vadd.f32 %v3513, %v3561
        %v3563 = vpop.f32.mrb[0].mxu0
        %v3564 = vpop.f32.mrb[0].mxu0
        %v3565 = vpop.f32.mrb[0].mxu0
        %3566 = vdwg.mxu0
        %v3567 = vmul.f32 %v3562, 0.35355338
        %s3568 = scalar_lea.vmem %s6, 112
        %v3569 = vld [vmem:[%s3568] sm:$0xf]
        %v3570 = vld [vmem:[%s3568 + $0x4] sm:$0xf]
        %v3571 = vld [vmem:[%s3568 + $0x8] sm:$0xf]
        %v3572 = vld [vmem:[%s3568 + $0xc] sm:$0xf]
        %s3573 = scalar_lea.vmem %s7, 7
        %v3574 = vld [vmem:[%s3573] sm:$0x1]
        %v3576 = vlaneseq
        %v3577 = vshrl.u32 %v3576, 7
        %v3578 = vsub.s32 0, %v3577
        %v3579 = vrot.slane %v3574, %v3578
        %v3585 = vunpack.c.l.b16 %v3569
        %v3586 = vunpack.c.l.b16 %v3570
        %v3587 = vunpack.c.l.b16 %v3571
        %v3588 = vunpack.c.l.b16 %v3572
        %v3589 = vpack.c.b16 %v3586, %v3585
        %v3590 = vpack.c.b16 %v3588, %v3587
        %3593 = vmatprep.subr.bf16.mxu0 0
        %3594 = vmatpush1.bf16.msra.mxu0 %v3589
        %3595 = vmatprep.subr.bf16.mxu0 0
        %3596 = vmatpush1.bf16.msra.mxu0 %v3590
        %3597 = vmatprep.subr.bf16.mxu0 0
        %3598 = vmatpush1.bf16.msra.mxu0 0
        %3599 = vmatprep.subr.bf16.mxu0 0
        %3600 = vmatpush1.bf16.msra.mxu0 0
        %3601 = vmatprep.subr.bf16.mxu0 0
        %3602 = vmatpush1.bf16.msra.mxu0 0
        %3603 = vmatprep.subr.bf16.mxu0 0
        %3604 = vmatpush1.bf16.msra.mxu0 0
        %3605 = vmatprep.subr.bf16.mxu0 0
        %3606 = vmatpush1.bf16.msra.mxu0 0
        %3607 = vmatprep.subr.bf16.mxu0 0
        %3608 = vmatpush1.bf16.msra.mxu0 0
        %3609 = vmatprep.subr.bf16.mxu0 0
        %3610 = vmatpush1.bf16.msra.mxu0 0
        %3611 = vmatprep.subr.bf16.mxu0 0
        %3612 = vmatpush1.bf16.msra.mxu0 0
        %3613 = vmatprep.subr.bf16.mxu0 0
        %3614 = vmatpush1.bf16.msra.mxu0 0
        %3615 = vmatprep.subr.bf16.mxu0 0
        %3616 = vmatpush1.bf16.msra.mxu0 0
        %3617 = vmatprep.subr.bf16.mxu0 0
        %3618 = vmatpush1.bf16.msra.mxu0 0
        %3619 = vmatprep.subr.bf16.mxu0 0
        %3620 = vmatpush1.bf16.msra.mxu0 0
        %3621 = vmatprep.subr.bf16.mxu0 0
        %3622 = vmatpush1.bf16.msra.mxu0 0
        %3623 = vmatprep.subr.bf16.mxu0 0
        %3624 = vmatpush1.bf16.msra.mxu0 0
        %3625 = vmatprep.mubr.bf16.mxu0 0
        %3626 = vmatmul.mubr.bf16.gmra.mrb[0].mxu0 %v2468
        %v3627 = vpop.f32.mrb[0].mxu0
        %v3628 = vadd.f32 %v3579, %v3627
        %v3629 = vpop.f32.mrb[0].mxu0
        %v3630 = vpop.f32.mrb[0].mxu0
        %v3631 = vpop.f32.mrb[0].mxu0
        %3632 = vdwg.mxu0
        %s3633 = scalar_lea.vmem %s8, 112
        %v3634 = vld [vmem:[%s3633] sm:$0xf]
        %v3635 = vld [vmem:[%s3633 + $0x4] sm:$0xf]
        %v3636 = vld [vmem:[%s3633 + $0x8] sm:$0xf]
        %v3637 = vld [vmem:[%s3633 + $0xc] sm:$0xf]
        %s3638 = scalar_lea.vmem %s9, 7
        %v3639 = vld [vmem:[%s3638] sm:$0x1]
        %v3641 = vlaneseq
        %v3642 = vshrl.u32 %v3641, 7
        %v3643 = vsub.s32 0, %v3642
        %v3644 = vrot.slane %v3639, %v3643
        %v3650 = vunpack.c.l.b16 %v3634
        %v3651 = vunpack.c.l.b16 %v3635
        %v3652 = vunpack.c.l.b16 %v3636
        %v3653 = vunpack.c.l.b16 %v3637
        %v3654 = vpack.c.b16 %v3651, %v3650
        %v3655 = vpack.c.b16 %v3653, %v3652
        %3658 = vmatprep.subr.bf16.mxu0 0
        %3659 = vmatpush1.bf16.msra.mxu0 %v3654
        %3660 = vmatprep.subr.bf16.mxu0 0
        %3661 = vmatpush1.bf16.msra.mxu0 %v3655
        %3662 = vmatprep.subr.bf16.mxu0 0
        %3663 = vmatpush1.bf16.msra.mxu0 0
        %3664 = vmatprep.subr.bf16.mxu0 0
        %3665 = vmatpush1.bf16.msra.mxu0 0
        %3666 = vmatprep.subr.bf16.mxu0 0
        %3667 = vmatpush1.bf16.msra.mxu0 0
        %3668 = vmatprep.subr.bf16.mxu0 0
        %3669 = vmatpush1.bf16.msra.mxu0 0
        %3670 = vmatprep.subr.bf16.mxu0 0
        %3671 = vmatpush1.bf16.msra.mxu0 0
        %3672 = vmatprep.subr.bf16.mxu0 0
        %3673 = vmatpush1.bf16.msra.mxu0 0
        %3674 = vmatprep.subr.bf16.mxu0 0
        %3675 = vmatpush1.bf16.msra.mxu0 0
        %3676 = vmatprep.subr.bf16.mxu0 0
        %3677 = vmatpush1.bf16.msra.mxu0 0
        %3678 = vmatprep.subr.bf16.mxu0 0
        %3679 = vmatpush1.bf16.msra.mxu0 0
        %3680 = vmatprep.subr.bf16.mxu0 0
        %3681 = vmatpush1.bf16.msra.mxu0 0
        %3682 = vmatprep.subr.bf16.mxu0 0
        %3683 = vmatpush1.bf16.msra.mxu0 0
        %3684 = vmatprep.subr.bf16.mxu0 0
        %3685 = vmatpush1.bf16.msra.mxu0 0
        %3686 = vmatprep.subr.bf16.mxu0 0
        %3687 = vmatpush1.bf16.msra.mxu0 0
        %3688 = vmatprep.subr.bf16.mxu0 0
        %3689 = vmatpush1.bf16.msra.mxu0 0
        %3690 = vmatprep.mubr.bf16.mxu0 0
        %3691 = vmatmul.mubr.bf16.gmra.mrb[0].mxu0 %v2468
        %v3692 = vpop.f32.mrb[0].mxu0
        %v3693 = vadd.f32 %v3644, %v3692
        %v3694 = vpop.f32.mrb[0].mxu0
        %v3695 = vpop.f32.mrb[0].mxu0
        %v3696 = vpop.f32.mrb[0].mxu0
        %3697 = vdwg.mxu0
        %v3698 = vpack.c.bf16 %v3567, %v3567
        %v3699 = vpack.c.bf16 %v3628, %v3628
        %v3701 = vsel %vm982, %v3698, 0
        %v3704 = vsel %vm982, %v3699, 0
        %3706 = vmatprep.subr.bf16.mxu0 0
        %3707 = vmatpush1.bf16.xpose.msra.mxu0 %v3704
        %3708 = vmatprep.subr.bf16.mxu0 0
        %3709 = vmatpush1.bf16.xpose.msra.mxu0 0
        %3710 = vmatprep.subr.bf16.mxu0 0
        %3711 = vmatpush1.bf16.xpose.msra.mxu0 0
        %3712 = vmatprep.subr.bf16.mxu0 0
        %3713 = vmatpush1.bf16.xpose.msra.mxu0 0
        %3714 = vmatprep.subr.bf16.mxu0 0
        %3715 = vmatpush1.bf16.xpose.msra.mxu0 0
        %3716 = vmatprep.subr.bf16.mxu0 0
        %3717 = vmatpush1.bf16.xpose.msra.mxu0 0
        %3718 = vmatprep.subr.bf16.mxu0 0
        %3719 = vmatpush1.bf16.xpose.msra.mxu0 0
        %3720 = vmatprep.subr.bf16.mxu0 0
        %3721 = vmatpush1.bf16.xpose.msra.mxu0 0
        %3722 = vmatprep.subr.bf16.mxu0 0
        %3723 = vmatpush1.bf16.xpose.msra.mxu0 0
        %3724 = vmatprep.subr.bf16.mxu0 0
        %3725 = vmatpush1.bf16.xpose.msra.mxu0 0
        %3726 = vmatprep.subr.bf16.mxu0 0
        %3727 = vmatpush1.bf16.xpose.msra.mxu0 0
        %3728 = vmatprep.subr.bf16.mxu0 0
        %3729 = vmatpush1.bf16.xpose.msra.mxu0 0
        %3730 = vmatprep.subr.bf16.mxu0 0
        %3731 = vmatpush1.bf16.xpose.msra.mxu0 0
        %3732 = vmatprep.subr.bf16.mxu0 0
        %3733 = vmatpush1.bf16.xpose.msra.mxu0 0
        %3734 = vmatprep.subr.bf16.mxu0 0
        %3735 = vmatpush1.bf16.xpose.msra.mxu0 0
        %3736 = vmatprep.subr.bf16.mxu0 0
        %3737 = vmatpush1.bf16.xpose.msra.mxu0 0
        %3738 = vmatprep.mubr.bf16.mxu0 0
        %3739 = vmatmul.mubr.bf16.gmra.mrb[0].mxu0 %v3701
        %v3740 = vpop.f32.mrb[0].mxu0
        %v3741 = vadd.f32 %v980, %v3740
        %v3742 = vpop.f32.mrb[0].mxu0
        %v3743 = vpop.f32.mrb[0].mxu0
        %v3744 = vpop.f32.mrb[0].mxu0
        %3745 = vdwg.mxu0
        %v3746 = vsel %vm982, %v3741, -inf
        %3747 = vmax.xlane.f32.xlu0 %v3746
        %v3748 = vpop.xlane.xlu0 %3747
        %v3749 = vsub.f32 %v3741, %v3748
        %v3750 = vmul.f32 %v3749, 1.442695
        %v3751 = vpow.pop %v3750
        %v3752 = vsel %vm982, %v3751, 0.0
        %3753 = vadd.xlane.f32.xlu0 %v3752
        %v3754 = vpop.xlane.xlu0 %3753
        %v3755 = vrcp.pop %v3754
        %v3756 = vmul.f32 %v3751, %v3755
        %v3757 = vpack.c.bf16 %v3693, %v3693
        %v3758 = vpack.c.bf16 %v3756, %v3756
        %v3760 = vsel %vm982, %v3758, 0
        %v3763 = vsel %vm1045, %v3757, 0
        %3765 = vmatprep.subr.bf16.mxu0 0
        %3766 = vmatpush1.bf16.msra.mxu0 %v3763
        %3767 = vmatprep.subr.bf16.mxu0 0
        %3768 = vmatpush1.bf16.msra.mxu0 0
        %3769 = vmatprep.subr.bf16.mxu0 0
        %3770 = vmatpush1.bf16.msra.mxu0 0
        %3771 = vmatprep.subr.bf16.mxu0 0
        %3772 = vmatpush1.bf16.msra.mxu0 0
        %3773 = vmatprep.subr.bf16.mxu0 0
        %3774 = vmatpush1.bf16.msra.mxu0 0
        %3775 = vmatprep.subr.bf16.mxu0 0
        %3776 = vmatpush1.bf16.msra.mxu0 0
        %3777 = vmatprep.subr.bf16.mxu0 0
        %3778 = vmatpush1.bf16.msra.mxu0 0
        %3779 = vmatprep.subr.bf16.mxu0 0
        %3780 = vmatpush1.bf16.msra.mxu0 0
        %3781 = vmatprep.subr.bf16.mxu0 0
        %3782 = vmatpush1.bf16.msra.mxu0 0
        %3783 = vmatprep.subr.bf16.mxu0 0
        %3784 = vmatpush1.bf16.msra.mxu0 0
        %3785 = vmatprep.subr.bf16.mxu0 0
        %3786 = vmatpush1.bf16.msra.mxu0 0
        %3787 = vmatprep.subr.bf16.mxu0 0
        %3788 = vmatpush1.bf16.msra.mxu0 0
        %3789 = vmatprep.subr.bf16.mxu0 0
        %3790 = vmatpush1.bf16.msra.mxu0 0
        %3791 = vmatprep.subr.bf16.mxu0 0
        %3792 = vmatpush1.bf16.msra.mxu0 0
        %3793 = vmatprep.subr.bf16.mxu0 0
        %3794 = vmatpush1.bf16.msra.mxu0 0
        %3795 = vmatprep.subr.bf16.mxu0 0
        %3796 = vmatpush1.bf16.msra.mxu0 0
        %3797 = vmatprep.mubr.bf16.mxu0 0
        %3798 = vmatmul.mubr.bf16.gmra.mrb[0].mxu0 %v3760
        %v3799 = vpop.f32.mrb[0].mxu0
        %v3800 = vadd.f32 0.0, %v3799
        %v3801 = vpop.f32.mrb[0].mxu0
        %v3802 = vpop.f32.mrb[0].mxu0
        %v3803 = vpop.f32.mrb[0].mxu0
        %3804 = vdwg.mxu0
        %s3805 = scalar_lea.vmem %s10, 28
        %v3806 = vld [vmem:[%s3805] sm:$0xf]
        %v3807 = vpack.c.bf16 %v3800, %v3800
        %v3809 = vsel %vm982, %v3807, 0
        %v3812 = vsel %vm1045, %v3806, 0
        %3814 = vmatprep.subr.bf16.mxu0 0
        %3815 = vmatpush1.bf16.msra.mxu0 %v3812
        %3816 = vmatprep.subr.bf16.mxu0 0
        %3817 = vmatpush1.bf16.msra.mxu0 0
        %3818 = vmatprep.subr.bf16.mxu0 0
        %3819 = vmatpush1.bf16.msra.mxu0 0
        %3820 = vmatprep.subr.bf16.mxu0 0
        %3821 = vmatpush1.bf16.msra.mxu0 0
        %3822 = vmatprep.subr.bf16.mxu0 0
        %3823 = vmatpush1.bf16.msra.mxu0 0
        %3824 = vmatprep.subr.bf16.mxu0 0
        %3825 = vmatpush1.bf16.msra.mxu0 0
        %3826 = vmatprep.subr.bf16.mxu0 0
        %3827 = vmatpush1.bf16.msra.mxu0 0
        %3828 = vmatprep.subr.bf16.mxu0 0
        %3829 = vmatpush1.bf16.msra.mxu0 0
        %3830 = vmatprep.subr.bf16.mxu0 0
        %3831 = vmatpush1.bf16.msra.mxu0 0
        %3832 = vmatprep.subr.bf16.mxu0 0
        %3833 = vmatpush1.bf16.msra.mxu0 0
        %3834 = vmatprep.subr.bf16.mxu0 0
        %3835 = vmatpush1.bf16.msra.mxu0 0
        %3836 = vmatprep.subr.bf16.mxu0 0
        %3837 = vmatpush1.bf16.msra.mxu0 0
        %3838 = vmatprep.subr.bf16.mxu0 0
        %3839 = vmatpush1.bf16.msra.mxu0 0
        %3840 = vmatprep.subr.bf16.mxu0 0
        %3841 = vmatpush1.bf16.msra.mxu0 0
        %3842 = vmatprep.subr.bf16.mxu0 0
        %3843 = vmatpush1.bf16.msra.mxu0 0
        %3844 = vmatprep.subr.bf16.mxu0 0
        %3845 = vmatpush1.bf16.msra.mxu0 0
        %3846 = vmatprep.mubr.bf16.mxu0 0
        %3847 = vmatmul.mubr.bf16.gmra.mrb[0].mxu0 %v3809
        %v3848 = vpop.f32.mrb[0].mxu0
        %v3849 = vadd.f32 0.0, %v3848
        %v3850 = vpop.f32.mrb[0].mxu0
        %v3851 = vpop.f32.mrb[0].mxu0
        %v3852 = vpop.f32.mrb[0].mxu0
        %3853 = vdwg.mxu0
        %v3854 = vadd.f32 %v3501, %v3849
        %s3855 = scalar_lea.vmem %s11, 1
        %v3856 = vld [vmem:[%s3855] sm:$0x1]
        %v3858 = vlaneseq
        %v3859 = vshrl.u32 %v3858, 7
        %v3860 = vsub.s32 0, %v3859
        %v3861 = vrot.slane %v3856, %v3860
        %v3863 = vadd.f32 %v3854, %v3861
        %v3864 = vadd.f32 %v3863, %v2440
        %s3865 = scalar_lea.vmem %s12, 1
        %v3866 = vld [vmem:[%s3865] sm:$0x1]
        %s3867 = scalar_lea.vmem %s13, 1
        %v3868 = vld [vmem:[%s3867] sm:$0x1]
        %v3869 = vsel %vm751, %v3864, 0.0
        %3870 = vadd.xlane.f32.xlu0 %v3869
        %v3871 = vpop.xlane.xlu0 %3870
        %v3872 = vmul.f32 %v3871, %v755
        %v3873 = vsub.f32 %v3864, %v3872
        %v3874 = vmul.f32 %v3873, %v3873
        %v3875 = vsel %vm751, %v3874, 0.0
        %3876 = vadd.xlane.f32.xlu0 %v3875
        %v3877 = vpop.xlane.xlu0 %3876
        %v3878 = vmul.f32 %v3877, %v755
        %v3879 = vadd.f32 %v3878, 1e-12
        %v3880 = vrsqrt.pop %v3879
        %v3881 = vmul.f32 %v3873, %v3880
        %v3883 = vlaneseq
        %v3884 = vshrl.u32 %v3883, 7
        %v3885 = vsub.s32 0, %v3884
        %v3886 = vrot.slane %v3866, %v3885
        %v3888 = vmul.f32 %v3881, %v3886
        %v3890 = vlaneseq
        %v3891 = vshrl.u32 %v3890, 7
        %v3892 = vsub.s32 0, %v3891
        %v3893 = vrot.slane %v3868, %v3892
        %v3895 = vadd.f32 %v3888, %v3893
        %s3896 = scalar_lea.vmem %s14, 16
        %v3897 = vld [vmem:[%s3896] sm:$0xf]
        %v3898 = vld [vmem:[%s3896 + $0x4] sm:$0xf]
        %v3899 = vld [vmem:[%s3896 + $0x8] sm:$0xf]
        %v3900 = vld [vmem:[%s3896 + $0xc] sm:$0xf]
        %v3901 = vpack.c.bf16 %v3895, %v3895
        %s3902 = scalar_lea.vmem %s15, 1
        %v3903 = vld [vmem:[%s3902] sm:$0x1]
        %v3905 = vlaneseq
        %v3906 = vshrl.u32 %v3905, 7
        %v3907 = vsub.s32 0, %v3906
        %v3908 = vrot.slane %v3903, %v3907
        %v3914 = vunpack.c.l.b16 %v3897
        %v3915 = vunpack.c.l.b16 %v3898
        %v3916 = vunpack.c.l.b16 %v3899
        %v3917 = vunpack.c.l.b16 %v3900
        %v3918 = vpack.c.b16 %v3915, %v3914
        %v3919 = vpack.c.b16 %v3917, %v3916
        %v3923 = vsel %vm751, %v3901, 0
        %3925 = vmatprep.subr.bf16.mxu0 0
        %3926 = vmatpush1.bf16.msra.mxu0 %v3918
        %3927 = vmatprep.subr.bf16.mxu0 0
        %3928 = vmatpush1.bf16.msra.mxu0 %v3919
        %3929 = vmatprep.subr.bf16.mxu0 0
        %3930 = vmatpush1.bf16.msra.mxu0 0
        %3931 = vmatprep.subr.bf16.mxu0 0
        %3932 = vmatpush1.bf16.msra.mxu0 0
        %3933 = vmatprep.subr.bf16.mxu0 0
        %3934 = vmatpush1.bf16.msra.mxu0 0
        %3935 = vmatprep.subr.bf16.mxu0 0
        %3936 = vmatpush1.bf16.msra.mxu0 0
        %3937 = vmatprep.subr.bf16.mxu0 0
        %3938 = vmatpush1.bf16.msra.mxu0 0
        %3939 = vmatprep.subr.bf16.mxu0 0
        %3940 = vmatpush1.bf16.msra.mxu0 0
        %3941 = vmatprep.subr.bf16.mxu0 0
        %3942 = vmatpush1.bf16.msra.mxu0 0
        %3943 = vmatprep.subr.bf16.mxu0 0
        %3944 = vmatpush1.bf16.msra.mxu0 0
        %3945 = vmatprep.subr.bf16.mxu0 0
        %3946 = vmatpush1.bf16.msra.mxu0 0
        %3947 = vmatprep.subr.bf16.mxu0 0
        %3948 = vmatpush1.bf16.msra.mxu0 0
        %3949 = vmatprep.subr.bf16.mxu0 0
        %3950 = vmatpush1.bf16.msra.mxu0 0
        %3951 = vmatprep.subr.bf16.mxu0 0
        %3952 = vmatpush1.bf16.msra.mxu0 0
        %3953 = vmatprep.subr.bf16.mxu0 0
        %3954 = vmatpush1.bf16.msra.mxu0 0
        %3955 = vmatprep.subr.bf16.mxu0 0
        %3956 = vmatpush1.bf16.msra.mxu0 0
        %3957 = vmatprep.mubr.bf16.mxu0 0
        %3958 = vmatmul.mubr.bf16.gmra.mrb[0].mxu0 %v3923
        %v3959 = vpop.f32.mrb[0].mxu0
        %v3960 = vadd.f32 %v3908, %v3959
        %v3961 = vpop.f32.mrb[0].mxu0
        %v3962 = vpop.f32.mrb[0].mxu0
        %v3963 = vpop.f32.mrb[0].mxu0
        %3964 = vdwg.mxu0
        %v3965 = vmul.f32 %v3960, 0.5
        %v3966 = vmul.f32 %v3960, 0.70710677
        %v3967 = vand.u32 2147483647, %v3966
        %v3968 = vmul.f32 %v3967, 0.3275911
        %v3969 = vadd.f32 %v3968, 1.0
        %v3970 = vrcp.pop %v3969
        %v3971 = vmul.f32 1.0, %v3970
        %v3972 = vmul.f32 %v3971, 1.0614054
        %v3973 = vadd.f32 %v3972, -1.4531521
        %v3974 = vmul.f32 %v3973, %v3971
        %v3975 = vadd.f32 %v3974, 1.4214138
        %v3976 = vmul.f32 %v3975, %v3971
        %v3977 = vadd.f32 %v3976, -0.28449672
        %v3978 = vmul.f32 %v3977, %v3971
        %v3979 = vadd.f32 %v3978, 0.2548296
        %v3980 = vmul.f32 %v3979, %v3971
        %v3981 = vsub.f32 0.0, %v3967
        %v3982 = vmul.f32 %v3981, %v3967
        %v3983 = vmul.f32 %v3982, 1.442695
        %v3984 = vpow.pop %v3983
        %v3985 = vmul.f32 %v3980, %v3984
        %v3986 = vsub.f32 1.0, %v3985
        %vm3987 = vcmp.ge.f32.partialorder %v3966, 0.0
        %v3988 = vsub.f32 0.0, %v3986
        %v3989 = vsel %vm3987, %v3986, %v3988
        %v3990 = vadd.f32 %v3989, 1.0
        %v3991 = vmul.f32 %v3965, %v3990
        %s3992 = scalar_lea.vmem %s16, 32
        %v3993 = vld [vmem:[%s3992] sm:$0xf]
        %v3994 = vld [vmem:[%s3992 + $0x4] sm:$0xf]
        %v3995 = vld [vmem:[%s3992 + $0x8] sm:$0xf]
        %v3996 = vld [vmem:[%s3992 + $0xc] sm:$0xf]
        %v3997 = vld [vmem:[%s3992 + $0x10] sm:$0xf]
        %v3998 = vld [vmem:[%s3992 + $0x14] sm:$0xf]
        %v3999 = vld [vmem:[%s3992 + $0x18] sm:$0xf]
        %v4000 = vld [vmem:[%s3992 + $0x1c] sm:$0xf]
        %v4001 = vpack.c.bf16 %v3991, %v3991
        %s4002 = scalar_lea.vmem %s17, 1
        %v4003 = vld [vmem:[%s4002] sm:$0x1]
        %v4005 = vlaneseq
        %v4006 = vshrl.u32 %v4005, 7
        %v4007 = vsub.s32 0, %v4006
        %v4008 = vrot.slane %v4003, %v4007
        %v4018 = vunpack.c.l.b16 %v3993
        %v4019 = vunpack.c.l.b16 %v3994
        %v4020 = vunpack.c.l.b16 %v3995
        %v4021 = vunpack.c.l.b16 %v3996
        %v4022 = vunpack.c.l.b16 %v3997
        %v4023 = vunpack.c.l.b16 %v3998
        %v4024 = vunpack.c.l.b16 %v3999
        %v4025 = vunpack.c.l.b16 %v4000
        %v4026 = vpack.c.b16 %v4019, %v4018
        %v4027 = vpack.c.b16 %v4021, %v4020
        %v4028 = vpack.c.b16 %v4023, %v4022
        %v4029 = vpack.c.b16 %v4025, %v4024
        %v4035 = vsel %vm2367, %v4001, 0
        %4037 = vmatprep.subr.bf16.mxu0 0
        %4038 = vmatpush1.bf16.msra.mxu0 %v4026
        %4039 = vmatprep.subr.bf16.mxu0 0
        %4040 = vmatpush1.bf16.msra.mxu0 %v4027
        %4041 = vmatprep.subr.bf16.mxu0 0
        %4042 = vmatpush1.bf16.msra.mxu0 %v4028
        %4043 = vmatprep.subr.bf16.mxu0 0
        %4044 = vmatpush1.bf16.msra.mxu0 %v4029
        %4045 = vmatprep.subr.bf16.mxu0 0
        %4046 = vmatpush1.bf16.msra.mxu0 0
        %4047 = vmatprep.subr.bf16.mxu0 0
        %4048 = vmatpush1.bf16.msra.mxu0 0
        %4049 = vmatprep.subr.bf16.mxu0 0
        %4050 = vmatpush1.bf16.msra.mxu0 0
        %4051 = vmatprep.subr.bf16.mxu0 0
        %4052 = vmatpush1.bf16.msra.mxu0 0
        %4053 = vmatprep.subr.bf16.mxu0 0
        %4054 = vmatpush1.bf16.msra.mxu0 0
        %4055 = vmatprep.subr.bf16.mxu0 0
        %4056 = vmatpush1.bf16.msra.mxu0 0
        %4057 = vmatprep.subr.bf16.mxu0 0
        %4058 = vmatpush1.bf16.msra.mxu0 0
        %4059 = vmatprep.subr.bf16.mxu0 0
        %4060 = vmatpush1.bf16.msra.mxu0 0
        %4061 = vmatprep.subr.bf16.mxu0 0
        %4062 = vmatpush1.bf16.msra.mxu0 0
        %4063 = vmatprep.subr.bf16.mxu0 0
        %4064 = vmatpush1.bf16.msra.mxu0 0
        %4065 = vmatprep.subr.bf16.mxu0 0
        %4066 = vmatpush1.bf16.msra.mxu0 0
        %4067 = vmatprep.subr.bf16.mxu0 0
        %4068 = vmatpush1.bf16.msra.mxu0 0
        %4069 = vmatprep.mubr.bf16.mxu0 0
        %4070 = vmatmul.mubr.bf16.gmra.mrb[0].mxu0 %v4035
        %v4071 = vpop.f32.mrb[0].mxu0
        %v4072 = vadd.f32 %v4008, %v4071
        %v4073 = vpop.f32.mrb[0].mxu0
        %v4074 = vpop.f32.mrb[0].mxu0
        %v4075 = vpop.f32.mrb[0].mxu0
        %4076 = vdwg.mxu0
        %v4077 = vadd.f32 %v4072, %v3895
        %s4078 = scalar_lea.vmem %s18, 1
        %v4079 = vld [vmem:[%s4078] sm:$0x1]
        %s4080 = scalar_lea.vmem %s19, 1
        %v4081 = vld [vmem:[%s4080] sm:$0x1]
        %v4082 = vsel %vm751, %v4077, 0.0
        %4083 = vadd.xlane.f32.xlu0 %v4082
        %v4084 = vpop.xlane.xlu0 %4083
        %v4085 = vmul.f32 %v4084, %v755
        %v4086 = vsub.f32 %v4077, %v4085
        %v4087 = vmul.f32 %v4086, %v4086
        %v4088 = vsel %vm751, %v4087, 0.0
        %4089 = vadd.xlane.f32.xlu0 %v4088
        %v4090 = vpop.xlane.xlu0 %4089
        %v4091 = vmul.f32 %v4090, %v755
        %v4092 = vadd.f32 %v4091, 1e-12
        %v4093 = vrsqrt.pop %v4092
        %v4094 = vmul.f32 %v4086, %v4093
        %v4096 = vlaneseq
        %v4097 = vshrl.u32 %v4096, 7
        %v4098 = vsub.s32 0, %v4097
        %v4099 = vrot.slane %v4079, %v4098
        %v4101 = vmul.f32 %v4094, %v4099
        %v4103 = vlaneseq
        %v4104 = vshrl.u32 %v4103, 7
        %v4105 = vsub.s32 0, %v4104
        %v4106 = vrot.slane %v4081, %v4105
        %v4108 = vadd.f32 %v4101, %v4106
        %v4109 = vld [vmem:[%s20] sm:$0xf]
        %v4110 = vld [vmem:[%s20 + $0x4] sm:$0xf]
        %v4111 = vld [vmem:[%s20 + $0x8] sm:$0xf]
        %v4112 = vld [vmem:[%s20 + $0xc] sm:$0xf]
        %v4113 = vpack.c.bf16 %v4108, %v4108
        %v4114 = vld [vmem:[%s21] sm:$0x1]
        %v4119 = vunpack.c.l.b16 %v4109
        %v4120 = vunpack.c.l.b16 %v4110
        %v4121 = vunpack.c.l.b16 %v4111
        %v4122 = vunpack.c.l.b16 %v4112
        %v4123 = vpack.c.b16 %v4120, %v4119
        %v4124 = vpack.c.b16 %v4122, %v4121
        %v4128 = vsel %vm751, %v4113, 0
        %4130 = vmatprep.subr.bf16.mxu0 0
        %4131 = vmatpush1.bf16.msra.mxu0 %v4123
        %4132 = vmatprep.subr.bf16.mxu0 0
        %4133 = vmatpush1.bf16.msra.mxu0 %v4124
        %4134 = vmatprep.subr.bf16.mxu0 0
        %4135 = vmatpush1.bf16.msra.mxu0 0
        %4136 = vmatprep.subr.bf16.mxu0 0
        %4137 = vmatpush1.bf16.msra.mxu0 0
        %4138 = vmatprep.subr.bf16.mxu0 0
        %4139 = vmatpush1.bf16.msra.mxu0 0
        %4140 = vmatprep.subr.bf16.mxu0 0
        %4141 = vmatpush1.bf16.msra.mxu0 0
        %4142 = vmatprep.subr.bf16.mxu0 0
        %4143 = vmatpush1.bf16.msra.mxu0 0
        %4144 = vmatprep.subr.bf16.mxu0 0
        %4145 = vmatpush1.bf16.msra.mxu0 0
        %4146 = vmatprep.subr.bf16.mxu0 0
        %4147 = vmatpush1.bf16.msra.mxu0 0
        %4148 = vmatprep.subr.bf16.mxu0 0
        %4149 = vmatpush1.bf16.msra.mxu0 0
        %4150 = vmatprep.subr.bf16.mxu0 0
        %4151 = vmatpush1.bf16.msra.mxu0 0
        %4152 = vmatprep.subr.bf16.mxu0 0
        %4153 = vmatpush1.bf16.msra.mxu0 0
        %4154 = vmatprep.subr.bf16.mxu0 0
        %4155 = vmatpush1.bf16.msra.mxu0 0
        %4156 = vmatprep.subr.bf16.mxu0 0
        %4157 = vmatpush1.bf16.msra.mxu0 0
        %4158 = vmatprep.subr.bf16.mxu0 0
        %4159 = vmatpush1.bf16.msra.mxu0 0
        %4160 = vmatprep.subr.bf16.mxu0 0
        %4161 = vmatpush1.bf16.msra.mxu0 0
        %4162 = vmatprep.mubr.bf16.mxu0 0
        %4163 = vmatmul.mubr.bf16.gmra.mrb[0].mxu0 %v4128
        %v4164 = vpop.f32.mrb[0].mxu0
        %v4165 = vadd.f32 %v4114, %v4164
        %v4166 = vpop.f32.mrb[0].mxu0
        %v4167 = vpop.f32.mrb[0].mxu0
        %v4168 = vpop.f32.mrb[0].mxu0
        %4169 = vdwg.mxu0
        %v4170 = vtanh.pop %v4165
        %v4171 = vld [vmem:[%s22] sm:$0xf]
        %v4172 = vld [vmem:[%s22 + $0x4] sm:$0xf]
        %v4173 = vld [vmem:[%s22 + $0x8] sm:$0xf]
        %v4174 = vld [vmem:[%s22 + $0xc] sm:$0xf]
        %v4175 = vpack.c.bf16 %v4170, %v4170
        %v4176 = vld [vmem:[%s23] sm:$0x1]
        %v4181 = vunpack.c.l.b16 %v4171
        %v4182 = vunpack.c.l.b16 %v4172
        %v4183 = vunpack.c.l.b16 %v4173
        %v4184 = vunpack.c.l.b16 %v4174
        %v4185 = vpack.c.b16 %v4182, %v4181
        %v4186 = vpack.c.b16 %v4184, %v4183
        %v4190 = vsel %vm751, %v4175, 0
        %4192 = vmatprep.subr.bf16.mxu0 0
        %4193 = vmatpush1.bf16.msra.mxu0 %v4185
        %4194 = vmatprep.subr.bf16.mxu0 0
        %4195 = vmatpush1.bf16.msra.mxu0 %v4186
        %4196 = vmatprep.subr.bf16.mxu0 0
        %4197 = vmatpush1.bf16.msra.mxu0 0
        %4198 = vmatprep.subr.bf16.mxu0 0
        %4199 = vmatpush1.bf16.msra.mxu0 0
        %4200 = vmatprep.subr.bf16.mxu0 0
        %4201 = vmatpush1.bf16.msra.mxu0 0
        %4202 = vmatprep.subr.bf16.mxu0 0
        %4203 = vmatpush1.bf16.msra.mxu0 0
        %4204 = vmatprep.subr.bf16.mxu0 0
        %4205 = vmatpush1.bf16.msra.mxu0 0
        %4206 = vmatprep.subr.bf16.mxu0 0
        %4207 = vmatpush1.bf16.msra.mxu0 0
        %4208 = vmatprep.subr.bf16.mxu0 0
        %4209 = vmatpush1.bf16.msra.mxu0 0
        %4210 = vmatprep.subr.bf16.mxu0 0
        %4211 = vmatpush1.bf16.msra.mxu0 0
        %4212 = vmatprep.subr.bf16.mxu0 0
        %4213 = vmatpush1.bf16.msra.mxu0 0
        %4214 = vmatprep.subr.bf16.mxu0 0
        %4215 = vmatpush1.bf16.msra.mxu0 0
        %4216 = vmatprep.subr.bf16.mxu0 0
        %4217 = vmatpush1.bf16.msra.mxu0 0
        %4218 = vmatprep.subr.bf16.mxu0 0
        %4219 = vmatpush1.bf16.msra.mxu0 0
        %4220 = vmatprep.subr.bf16.mxu0 0
        %4221 = vmatpush1.bf16.msra.mxu0 0
        %4222 = vmatprep.subr.bf16.mxu0 0
        %4223 = vmatpush1.bf16.msra.mxu0 0
        %4224 = vmatprep.mubr.bf16.mxu0 0
        %4225 = vmatmul.mubr.bf16.gmra.mrb[0].mxu0 %v4190
        %v4226 = vpop.f32.mrb[0].mxu0
        %v4227 = vadd.f32 %v4176, %v4226
        %v4228 = vpop.f32.mrb[0].mxu0
        %v4229 = vpop.f32.mrb[0].mxu0
        %v4230 = vpop.f32.mrb[0].mxu0
        %4231 = vdwg.mxu0
        %4232 = vst [vmem:[%s738] sm:$0x1] %v4227
        %s4233 = sand.u32 %s560, 1
        %s4234 = scalar_lea.sflag [#allocation3], %s4233
        %s4235 = sand.u32 %s560, 1
        %s4236 = scalar_lea.vmem [#allocation2], %s4235
        // Predicated region
        $region117: #{custom_bert_forward.1} parent=115 // pred_check
          %p4237 = pneg %p570
        $region118: #{custom_bert_forward.1} parent=115 // pred_check_branch
          %4239 = sbr.rel (%p4237) target = $region120
        $region119: #{custom_bert_forward.1} parent=115 // pred_region
          %s4241 = ssub.s32 16, 16
          %4242 = vsyncadd %s4234, %s4241
          %s4243 = smul.addr %s38, 16
          %s4244 = scalar_lea.hbm %s24, %s4243
          %s4246 = sshll.u32 %s4236, 4
          %s4247 = int_to_ptr.vmem [resolvable:$true] %s4246
          %4249 = dma.vmem_to_hbm [thread:$0]  %s4247, 16, %s4244, %s4234
        $region120: #{custom_bert_forward.1} parent=115 // pred_fallthru
          _
      $region116: #{custom_bert_forward.1} parent=5 // pred_fallthru
        _
      %p4250 = scmp.le.s32.totalorder 2, %s33
      // Predicated region
      $region121: #{custom_bert_forward.1} parent=5 // pred_check
        %p4251 = pneg %p4250
      $region122: #{custom_bert_forward.1} parent=5 // pred_check_branch
        %4253 = sbr.rel (%p4251) target = $region124
      $region123: #{custom_bert_forward.1} parent=5 // pred_region
        %s4254 = ssub.s32 %s33, 2
        // Predicated region
        $region125: #{custom_bert_forward.1} parent=123 // pred_check
          %p4255 = pneg %p576
        $region126: #{custom_bert_forward.1} parent=123 // pred_check_branch
          %4257 = sbr.rel (%p4255) target = $region128
        $region127: #{custom_bert_forward.1} parent=123 // pred_region
          %s4258 = sand.u32 %s561, 1
          %s4259 = scalar_lea.sflag [#allocation3], %s4258
          %s4260 = sand.u32 %s561, 1
          %s4261 = scalar_lea.vmem [#allocation2], %s4260
          %4262 = dma.done %s4259, 16
        $region128: #{custom_bert_forward.1} parent=123 // pred_fallthru
          _
      $region124: #{custom_bert_forward.1} parent=5 // pred_fallthru
        _
    $region6: #{custom_bert_forward.1} parent=1 // loop_footer
      %s37 = sadd.s32 1, %s33
    $region7: #{custom_bert_forward.1} parent=1 // loop_footer_branch
      %32 = sbr.rel target = $region3
    $region8: #{custom_bert_forward.1} parent=1 // loop_exit
      _
    %4263 = vsyncpa [#allocation3], 1
    %s4264 = scalar_lea.sflag [#allocation3], 1
    %4265 = vsyncpa %s4264, 1

</llo_original>
